<compile_context>
chip_gen: v6e
topology: v6e:2x2x1
jax: 0.10.0
libtpu: 0.0.40
codegen_flags: <defaults>
</compile_context>

<pallas_src>
import functools

import jax
import jax.numpy as jnp
import numpy as np
from jax.experimental import pallas as pl
from jax.experimental.pallas import tpu as pltpu

# ----------------------------- model config ---------------------------------
NUM_LAYERS = 2
SEQ_LEN = 8
NO_FEATURES = 16
HIDDEN = 2 * NO_FEATURES          # 32
OUTPUT_SIZE = 8
BATCH = 8
O_PAD = 128                       # lane-dense padded FC output width


# ------------------------------ Pallas kernel -------------------------------
def _decoder_kernel(x_ref, wih0_ref, whh0_ref, b0_ref, wih_ref, whh_ref, brest_ref,
                    wfc_ref, bfc_ref, out_ref, *, num_layers, hidden, seq_len, o_pad):
    """Whole decoder forward in one invocation: unrolled LSTM over time + per-step FC."""
    H = hidden
    B = x_ref.shape[0]

    # Hoisted, time-invariant layer-0 input projection (includes b_ih0 + b_hh0;
    # g-gate columns already carry the 2x scale folded in at init).
    xg0 = (jnp.dot(x_ref[...], wih0_ref[...], preferred_element_type=jnp.float32)
           + b0_ref[...])                                    # (B, 4H)

    # All weights loaded once, outside the unrolled time loop (MXU RHS residency).
    whh0 = whh0_ref[...]                                     # (H, 4H)
    wihs = [wih_ref[l] for l in range(num_layers - 1)]       # (H, 4H) each
    whhs = [whh_ref[l] for l in range(num_layers - 1)]       # (H, 4H) each
    bs = [brest_ref[l] for l in range(num_layers - 1)]       # (1, 4H) each
    wfc = wfc_ref[...]                                       # (H, O_PAD)
    bfc = bfc_ref[...]                                       # (1, O_PAD)

    def lstm_cell(gates, c_prev):
        # ONE full-width EUP op per cell. g-gate tanh recovered on the VPU via
        # tanh(x) = 2*sigmoid(2x) - 1 (the 2x is pre-folded into the g-gate weights).
        sig = jax.nn.sigmoid(gates)                          # (B, 4H)
        i_g = sig[:, 0 * H:1 * H]
        f_g = sig[:, 1 * H:2 * H]
        g_g = 2.0 * sig[:, 2 * H:3 * H] - 1.0
        o_g = sig[:, 3 * H:4 * H]
        c_new = f_g * c_prev + i_g * g_g
        h_new = o_g * jnp.tanh(c_new)                        # only remaining tanh: (B, H)
        return h_new, c_new

    h = [jnp.zeros((B, H), jnp.float32) for _ in range(num_layers)]
    c = [jnp.zeros((B, H), jnp.float32) for _ in range(num_layers)]

    for t in range(seq_len):                 # static unroll: recurrence is sequential
        # Layer 0: only the recurrent matmul remains per step.
        gates0 = xg0 + jnp.dot(h[0], whh0, preferred_element_type=jnp.float32)
        h[0], c[0] = lstm_cell(gates0, c[0])
        inp = h[0]
        # Deeper layers, UN-fused: recurrent dot (on h[l]_{t-1}) can issue before
        # `inp` (this step's lower-layer output) is ready; no per-step lane concat.
        for l in range(1, num_layers):
            gates = (jnp.dot(h[l], whhs[l - 1], preferred_element_type=jnp.float32)
                     + jnp.dot(inp, wihs[l - 1], preferred_element_type=jnp.float32)
                     + bs[l - 1])
            h[l], c[l] = lstm_cell(gates, c[l])
            inp = h[l]
        # Per-step FC (off the recurrence critical path) + lane-aligned unmasked store
        # into a batch-major (B, T*O_PAD) slab at lane offset t*128.
        fc_t = jnp.dot(inp, wfc, preferred_element_type=jnp.float32) + bfc   # (B, O_PAD)
        out_ref[:, t * o_pad:(t + 1) * o_pad] = fc_t


@jax.jit
def decoder_forward(x, params):
    """x: (B, no_features) float32 -> (B, seq_len, output_size) float32."""
    B = x.shape[0]
    F, H, O, L, T = NO_FEATURES, HIDDEN, OUTPUT_SIZE, NUM_LAYERS, SEQ_LEN

    kernel = functools.partial(_decoder_kernel, num_layers=L, hidden=H,
                               seq_len=T, o_pad=O_PAD)

    def full(*shape):
        return pl.BlockSpec(shape, lambda i, _s=shape: (0,) * len(_s))

    out_flat = pl.pallas_call(
        kernel,
        out_shape=jax.ShapeDtypeStruct((B, T * O_PAD), jnp.float32),
        grid_spec=pltpu.PrefetchScalarGridSpec(
            num_scalar_prefetch=0,
            grid=(1,),                                     # single invocation
            in_specs=[
                full(B, F),                                # x
                full(F, 4 * H),                            # W_ih layer 0 (transposed, g-scaled)
                full(H, 4 * H),                            # W_hh layer 0 (transposed, g-scaled)
                full(1, 4 * H),                            # b_ih0 + b_hh0 (g-scaled)
                full(L - 1, H, 4 * H),                     # W_ih layers 1.. (separate, not fused)
                full(L - 1, H, 4 * H),                     # W_hh layers 1..
                full(L - 1, 1, 4 * H),                     # biases layers 1..
                full(H, O_PAD),                            # W_fc (lane-padded)
                full(1, O_PAD),                            # b_fc (lane-padded)
            ],
            out_specs=full(B, T * O_PAD),
        ),
        compiler_params=pltpu.CompilerParams(
            dimension_semantics=("arbitrary",),
        ),
    )(x, params["wih0"], params["whh0"], params["b0"],
      params["wih_rest"], params["whh_rest"], params["brest"],
      params["wfc"], params["bfc"])

    # (B, T*O_PAD) -> (B, T, O_PAD) -> slice padded lanes. Batch-major already,
    # so no transpose is needed; under jit this fuses with the pallas_call output.
    return out_flat.reshape(B, T, O_PAD)[:, :, :O]


# --------------------------- parameter construction -------------------------
def init_params(key):
    """Deterministic init mimicking PyTorch's U(-1/sqrt(H), 1/sqrt(H))."""
    H, F, O, L = HIDDEN, NO_FEATURES, OUTPUT_SIZE, NUM_LAYERS
    bound = 1.0 / np.sqrt(H)
    keys = jax.random.split(key, 4 * L + 2)

    # Fold the 2x of tanh(x) = 2*sigmoid(2x) - 1 into the g-gate columns (PyTorch
    # gate order i, f, g, o), so the kernel needs only one full-width sigmoid per cell.
    g_scale = jnp.ones((4 * H,), jnp.float32).at[2 * H:3 * H].set(2.0)

    torch_layers = []
    wih_rest, whh_rest, b_rest = [], [], []
    wih0 = whh0 = b0 = None
    for l in range(L):
        in_dim = F if l == 0 else H
        w_ih = jax.random.uniform(keys[4 * l + 0], (4 * H, in_dim), jnp.float32, -bound, bound)
        w_hh = jax.random.uniform(keys[4 * l + 1], (4 * H, H), jnp.float32, -bound, bound)
        b_ih = jax.random.uniform(keys[4 * l + 2], (4 * H,), jnp.float32, -bound, bound)
        b_hh = jax.random.uniform(keys[4 * l + 3], (4 * H,), jnp.float32, -bound, bound)
        torch_layers.append((w_ih, w_hh, b_ih, b_hh))

        wih_t = w_ih.T * g_scale[None, :]                    # (in_dim, 4H)
        whh_t = w_hh.T * g_scale[None, :]                    # (H, 4H)
        b = ((b_ih + b_hh) * g_scale)[None, :]               # (1, 4H)
        if l == 0:
            wih0, whh0, b0 = wih_t, whh_t, b
        else:
            wih_rest.append(wih_t)
            whh_rest.append(whh_t)
            b_rest.append(b)

    w_fc = jax.random.uniform(keys[-2], (O, H), jnp.float32, -bound, bound)
    b_fc = jax.random.uniform(keys[-1], (O,), jnp.float32, -bound, bound)

    # Lane-dense padded FC weights (columns O..O_PAD-1 are zero, sliced off in wrapper).
    wfc_pad = jnp.zeros((H, O_PAD), jnp.float32).at[:, :O].set(w_fc.T)
    bfc_pad = jnp.zeros((1, O_PAD), jnp.float32).at[:, :O].set(b_fc)

    kernel_params = dict(
        wih0=wih0,                         # (F, 4H)
        whh0=whh0,                         # (H, 4H)
        b0=b0,                             # (1, 4H)
        wih_rest=jnp.stack(wih_rest),      # (L-1, H, 4H)
        whh_rest=jnp.stack(whh_rest),      # (L-1, H, 4H)
        brest=jnp.stack(b_rest),           # (L-1, 1, 4H)
        wfc=wfc_pad,                       # (H, O_PAD)
        bfc=bfc_pad,                       # (1, O_PAD)
    )
    torch_params = dict(layers=torch_layers, wfc=w_fc, bfc=b_fc)
    return kernel_params, torch_params


# ------------------------------ pure-JAX reference ---------------------------
def decoder_reference(x, torch_params):
    B = x.shape[0]
    inp = jnp.repeat(x[:, None, :], SEQ_LEN, axis=1)          # (B, T, F)
    for l in range(NUM_LAYERS):
        w_ih, w_hh, b_ih, b_hh = torch_params["layers"][l]

        def step(carry, x_t):
            h, c = carry
            gates = x_t @ w_ih.T + h @ w_hh.T + b_ih + b_hh
            i, f, g, o = jnp.split(gates, 4, axis=-1)
            i = jax.nn.sigmoid(i)
            f = jax.nn.sigmoid(f)
            g = jnp.tanh(g)
            o = jax.nn.sigmoid(o)
            c = f * c + i * g
            h = o * jnp.tanh(c)
            return (h, c), h

        h0 = jnp.zeros((B, HIDDEN), jnp.float32)
        c0 = jnp.zeros((B, HIDDEN), jnp.float32)
        (_, _), hs = jax.lax.scan(step, (h0, c0), jnp.swapaxes(inp, 0, 1))
        inp = jnp.swapaxes(hs, 0, 1)                           # (B, T, H)
    return inp @ torch_params["wfc"].T + torch_params["bfc"]   # (B, T, O)


# ---------------------------------- main -------------------------------------
if __name__ == "__main__":
    key = jax.random.PRNGKey(0)
    k_param, k_x = jax.random.split(key)
    kernel_params, torch_params = init_params(k_param)

    x = jax.random.normal(k_x, (BATCH, NO_FEATURES), jnp.float32)

    out = jax.block_until_ready(decoder_forward(x, kernel_params))
    ref = jax.block_until_ready(decoder_reference(x, torch_params))

    assert out.shape == (BATCH, SEQ_LEN, OUTPUT_SIZE), out.shape
    np.testing.assert_allclose(np.asarray(out), np.asarray(ref), rtol=1e-5, atol=1e-5)

    print("KERNEL_OK")
</pallas_src>

<mosaic_0001>
module attributes {stable_mosaic.version = 11 : i64} {
  func.func @_decoder_kernel(%arg0: i32, %arg1: memref<8x16xf32, #tpu.memory_space<vmem>>, %arg2: memref<16x128xf32, #tpu.memory_space<vmem>>, %arg3: memref<32x128xf32, #tpu.memory_space<vmem>>, %arg4: memref<1x128xf32, #tpu.memory_space<vmem>>, %arg5: memref<1x32x128xf32, #tpu.memory_space<vmem>>, %arg6: memref<1x32x128xf32, #tpu.memory_space<vmem>>, %arg7: memref<1x1x128xf32, #tpu.memory_space<vmem>>, %arg8: memref<32x128xf32, #tpu.memory_space<vmem>>, %arg9: memref<1x128xf32, #tpu.memory_space<vmem>>, %arg10: memref<8x1024xf32, #tpu.memory_space<vmem>>) attributes {dimension_semantics = [#tpu.dimension_semantics<arbitrary>], iteration_bounds = array<i64: 1>, scalar_prefetch = 0 : i64, scratch_operands = 0 : i64, tpu.core_type = #tpu.core_type<tc>, window_params = [{pipeline_mode = #tpu.pipeline_mode<synchronous>, transform_indices = @transform_0, window_bounds = array<i64: 8, 16>}, {pipeline_mode = #tpu.pipeline_mode<synchronous>, transform_indices = @transform_1, window_bounds = array<i64: 16, 128>}, {pipeline_mode = #tpu.pipeline_mode<synchronous>, transform_indices = @transform_2, window_bounds = array<i64: 32, 128>}, {pipeline_mode = #tpu.pipeline_mode<synchronous>, transform_indices = @transform_3, window_bounds = array<i64: 1, 128>}, {pipeline_mode = #tpu.pipeline_mode<synchronous>, transform_indices = @transform_4, window_bounds = array<i64: 1, 32, 128>}, {pipeline_mode = #tpu.pipeline_mode<synchronous>, transform_indices = @transform_5, window_bounds = array<i64: 1, 32, 128>}, {pipeline_mode = #tpu.pipeline_mode<synchronous>, transform_indices = @transform_6, window_bounds = array<i64: 1, 1, 128>}, {pipeline_mode = #tpu.pipeline_mode<synchronous>, transform_indices = @transform_7, window_bounds = array<i64: 32, 128>}, {pipeline_mode = #tpu.pipeline_mode<synchronous>, transform_indices = @transform_8, window_bounds = array<i64: 1, 128>}, {pipeline_mode = #tpu.pipeline_mode<synchronous>, transform_indices = @transform_9, window_bounds = array<i64: 8, 1024>}]} {
    %c0 = arith.constant 0 : index
    %c0_0 = arith.constant 0 : index
    %0 = vector.load %arg1[%c0, %c0_0] : memref<8x16xf32, #tpu.memory_space<vmem>>, vector<8x16xf32>
    %c0_1 = arith.constant 0 : index
    %c0_2 = arith.constant 0 : index
    %1 = vector.load %arg2[%c0_1, %c0_2] : memref<16x128xf32, #tpu.memory_space<vmem>>, vector<16x128xf32>
    %cst = arith.constant dense<0.000000e+00> : vector<8x128xf32>
    %2 = tpu.matmul %0, %1, %cst {dimension_numbers = #tpu.dot_dimension_numbers<[1], [0], [0], [1], [0, 0, 1, 1], [], []>} : vector<8x16xf32>, vector<16x128xf32>, vector<8x128xf32> -> vector<8x128xf32>
    %c0_3 = arith.constant 0 : index
    %c0_4 = arith.constant 0 : index
    %3 = vector.load %arg4[%c0_3, %c0_4] : memref<1x128xf32, #tpu.memory_space<vmem>>, vector<1x128xf32>
    %4 = vector.broadcast %3 : vector<1x128xf32> to vector<8x128xf32>
    %5 = arith.addf %2, %4 : vector<8x128xf32>
    %c0_5 = arith.constant 0 : index
    %c0_6 = arith.constant 0 : index
    %6 = vector.load %arg3[%c0_5, %c0_6] : memref<32x128xf32, #tpu.memory_space<vmem>>, vector<32x128xf32>
    %c0_7 = arith.constant 0 : index
    %c0_8 = arith.constant 0 : index
    %c0_9 = arith.constant 0 : index
    %7 = vector.load %arg5[%c0_7, %c0_8, %c0_9] : memref<1x32x128xf32, #tpu.memory_space<vmem>>, vector<1x32x128xf32>
    %8 = vector.shape_cast %7 : vector<1x32x128xf32> to vector<32x128xf32>
    %c0_10 = arith.constant 0 : index
    %c0_11 = arith.constant 0 : index
    %c0_12 = arith.constant 0 : index
    %9 = vector.load %arg6[%c0_10, %c0_11, %c0_12] : memref<1x32x128xf32, #tpu.memory_space<vmem>>, vector<1x32x128xf32>
    %10 = vector.shape_cast %9 : vector<1x32x128xf32> to vector<32x128xf32>
    %c0_13 = arith.constant 0 : index
    %c0_14 = arith.constant 0 : index
    %c0_15 = arith.constant 0 : index
    %11 = vector.load %arg7[%c0_13, %c0_14, %c0_15] : memref<1x1x128xf32, #tpu.memory_space<vmem>>, vector<1x1x128xf32>
    %12 = vector.shape_cast %11 : vector<1x1x128xf32> to vector<1x128xf32>
    %c0_16 = arith.constant 0 : index
    %c0_17 = arith.constant 0 : index
    %13 = vector.load %arg8[%c0_16, %c0_17] : memref<32x128xf32, #tpu.memory_space<vmem>>, vector<32x128xf32>
    %c0_18 = arith.constant 0 : index
    %c0_19 = arith.constant 0 : index
    %14 = vector.load %arg9[%c0_18, %c0_19] : memref<1x128xf32, #tpu.memory_space<vmem>>, vector<1x128xf32>
    %cst_20 = arith.constant 0.000000e+00 : f32
    %15 = vector.broadcast %cst_20 : f32 to vector<8x32xf32>
    %cst_21 = arith.constant 0.000000e+00 : f32
    %16 = vector.broadcast %cst_21 : f32 to vector<8x32xf32>
    %cst_22 = arith.constant 0.000000e+00 : f32
    %17 = vector.broadcast %cst_22 : f32 to vector<8x32xf32>
    %cst_23 = arith.constant 0.000000e+00 : f32
    %18 = vector.broadcast %cst_23 : f32 to vector<8x32xf32>
    %cst_24 = arith.constant dense<0.000000e+00> : vector<8x128xf32>
    %19 = tpu.matmul %15, %6, %cst_24 {dimension_numbers = #tpu.dot_dimension_numbers<[1], [0], [0], [1], [0, 0, 1, 1], [], []>} : vector<8x32xf32>, vector<32x128xf32>, vector<8x128xf32> -> vector<8x128xf32>
    %20 = arith.addf %5, %19 : vector<8x128xf32>
    %21 = arith.negf %20 : vector<8x128xf32>
    %22 = math.exp %21 : vector<8x128xf32>
    %cst_25 = arith.constant 1.000000e+00 : f32
    %23 = vector.broadcast %cst_25 : f32 to vector<8x128xf32>
    %24 = arith.addf %23, %22 : vector<8x128xf32>
    %25 = arith.divf %23, %24 : vector<8x128xf32>
    %26 = vector.extract_strided_slice %25 {offsets = [0, 0], sizes = [8, 32], strides = [1, 1]} : vector<8x128xf32> to vector<8x32xf32>
    %27 = vector.extract_strided_slice %25 {offsets = [0, 32], sizes = [8, 32], strides = [1, 1]} : vector<8x128xf32> to vector<8x32xf32>
    %28 = vector.extract_strided_slice %25 {offsets = [0, 64], sizes = [8, 32], strides = [1, 1]} : vector<8x128xf32> to vector<8x32xf32>
    %cst_26 = arith.constant 2.000000e+00 : f32
    %29 = vector.broadcast %cst_26 : f32 to vector<8x32xf32>
    %30 = arith.mulf %29, %28 : vector<8x32xf32>
    %cst_27 = arith.constant 1.000000e+00 : f32
    %31 = vector.broadcast %cst_27 : f32 to vector<8x32xf32>
    %32 = arith.subf %30, %31 : vector<8x32xf32>
    %33 = vector.extract_strided_slice %25 {offsets = [0, 96], sizes = [8, 32], strides = [1, 1]} : vector<8x128xf32> to vector<8x32xf32>
    %34 = arith.mulf %27, %17 : vector<8x32xf32>
    %35 = arith.mulf %26, %32 : vector<8x32xf32>
    %36 = arith.addf %34, %35 : vector<8x32xf32>
    %37 = math.tanh %36 : vector<8x32xf32>
    %38 = arith.mulf %33, %37 : vector<8x32xf32>
    %cst_28 = arith.constant dense<0.000000e+00> : vector<8x128xf32>
    %39 = tpu.matmul %16, %10, %cst_28 {dimension_numbers = #tpu.dot_dimension_numbers<[1], [0], [0], [1], [0, 0, 1, 1], [], []>} : vector<8x32xf32>, vector<32x128xf32>, vector<8x128xf32> -> vector<8x128xf32>
    %cst_29 = arith.constant dense<0.000000e+00> : vector<8x128xf32>
    %40 = tpu.matmul %38, %8, %cst_29 {dimension_numbers = #tpu.dot_dimension_numbers<[1], [0], [0], [1], [0, 0, 1, 1], [], []>} : vector<8x32xf32>, vector<32x128xf32>, vector<8x128xf32> -> vector<8x128xf32>
    %41 = arith.addf %39, %40 : vector<8x128xf32>
    %42 = vector.broadcast %12 : vector<1x128xf32> to vector<8x128xf32>
    %43 = arith.addf %41, %42 : vector<8x128xf32>
    %44 = arith.negf %43 : vector<8x128xf32>
    %45 = math.exp %44 : vector<8x128xf32>
    %cst_30 = arith.constant 1.000000e+00 : f32
    %46 = vector.broadcast %cst_30 : f32 to vector<8x128xf32>
    %47 = arith.addf %46, %45 : vector<8x128xf32>
    %48 = arith.divf %46, %47 : vector<8x128xf32>
    %49 = vector.extract_strided_slice %48 {offsets = [0, 0], sizes = [8, 32], strides = [1, 1]} : vector<8x128xf32> to vector<8x32xf32>
    %50 = vector.extract_strided_slice %48 {offsets = [0, 32], sizes = [8, 32], strides = [1, 1]} : vector<8x128xf32> to vector<8x32xf32>
    %51 = vector.extract_strided_slice %48 {offsets = [0, 64], sizes = [8, 32], strides = [1, 1]} : vector<8x128xf32> to vector<8x32xf32>
    %cst_31 = arith.constant 2.000000e+00 : f32
    %52 = vector.broadcast %cst_31 : f32 to vector<8x32xf32>
    %53 = arith.mulf %52, %51 : vector<8x32xf32>
    %cst_32 = arith.constant 1.000000e+00 : f32
    %54 = vector.broadcast %cst_32 : f32 to vector<8x32xf32>
    %55 = arith.subf %53, %54 : vector<8x32xf32>
    %56 = vector.extract_strided_slice %48 {offsets = [0, 96], sizes = [8, 32], strides = [1, 1]} : vector<8x128xf32> to vector<8x32xf32>
    %57 = arith.mulf %50, %18 : vector<8x32xf32>
    %58 = arith.mulf %49, %55 : vector<8x32xf32>
    %59 = arith.addf %57, %58 : vector<8x32xf32>
    %60 = math.tanh %59 : vector<8x32xf32>
    %61 = arith.mulf %56, %60 : vector<8x32xf32>
    %cst_33 = arith.constant dense<0.000000e+00> : vector<8x128xf32>
    %62 = tpu.matmul %61, %13, %cst_33 {dimension_numbers = #tpu.dot_dimension_numbers<[1], [0], [0], [1], [0, 0, 1, 1], [], []>} : vector<8x32xf32>, vector<32x128xf32>, vector<8x128xf32> -> vector<8x128xf32>
    %63 = vector.broadcast %14 : vector<1x128xf32> to vector<8x128xf32>
    %64 = arith.addf %62, %63 : vector<8x128xf32>
    %c0_34 = arith.constant 0 : index
    %c0_35 = arith.constant 0 : index
    %65 = vector.load %arg10[%c0_34, %c0_35] : memref<8x1024xf32, #tpu.memory_space<vmem>>, vector<8x128xf32>
    tpu.vector_store %arg10[%c0_34, %c0_35], %64 {strides = array<i32>} : memref<8x1024xf32, #tpu.memory_space<vmem>>, vector<8x128xf32>,
    %cst_36 = arith.constant dense<0.000000e+00> : vector<8x128xf32>
    %66 = tpu.matmul %38, %6, %cst_36 {dimension_numbers = #tpu.dot_dimension_numbers<[1], [0], [0], [1], [0, 0, 1, 1], [], []>} : vector<8x32xf32>, vector<32x128xf32>, vector<8x128xf32> -> vector<8x128xf32>
    %67 = arith.addf %5, %66 : vector<8x128xf32>
    %68 = arith.negf %67 : vector<8x128xf32>
    %69 = math.exp %68 : vector<8x128xf32>
    %cst_37 = arith.constant 1.000000e+00 : f32
    %70 = vector.broadcast %cst_37 : f32 to vector<8x128xf32>
    %71 = arith.addf %70, %69 : vector<8x128xf32>
    %72 = arith.divf %70, %71 : vector<8x128xf32>
    %73 = vector.extract_strided_slice %72 {offsets = [0, 0], sizes = [8, 32], strides = [1, 1]} : vector<8x128xf32> to vector<8x32xf32>
    %74 = vector.extract_strided_slice %72 {offsets = [0, 32], sizes = [8, 32], strides = [1, 1]} : vector<8x128xf32> to vector<8x32xf32>
    %75 = vector.extract_strided_slice %72 {offsets = [0, 64], sizes = [8, 32], strides = [1, 1]} : vector<8x128xf32> to vector<8x32xf32>
    %cst_38 = arith.constant 2.000000e+00 : f32
    %76 = vector.broadcast %cst_38 : f32 to vector<8x32xf32>
    %77 = arith.mulf %76, %75 : vector<8x32xf32>
    %cst_39 = arith.constant 1.000000e+00 : f32
    %78 = vector.broadcast %cst_39 : f32 to vector<8x32xf32>
    %79 = arith.subf %77, %78 : vector<8x32xf32>
    %80 = vector.extract_strided_slice %72 {offsets = [0, 96], sizes = [8, 32], strides = [1, 1]} : vector<8x128xf32> to vector<8x32xf32>
    %81 = arith.mulf %74, %36 : vector<8x32xf32>
    %82 = arith.mulf %73, %79 : vector<8x32xf32>
    %83 = arith.addf %81, %82 : vector<8x32xf32>
    %84 = math.tanh %83 : vector<8x32xf32>
    %85 = arith.mulf %80, %84 : vector<8x32xf32>
    %cst_40 = arith.constant dense<0.000000e+00> : vector<8x128xf32>
    %86 = tpu.matmul %61, %10, %cst_40 {dimension_numbers = #tpu.dot_dimension_numbers<[1], [0], [0], [1], [0, 0, 1, 1], [], []>} : vector<8x32xf32>, vector<32x128xf32>, vector<8x128xf32> -> vector<8x128xf32>
    %cst_41 = arith.constant dense<0.000000e+00> : vector<8x128xf32>
    %87 = tpu.matmul %85, %8, %cst_41 {dimension_numbers = #tpu.dot_dimension_numbers<[1], [0], [0], [1], [0, 0, 1, 1], [], []>} : vector<8x32xf32>, vector<32x128xf32>, vector<8x128xf32> -> vector<8x128xf32>
    %88 = arith.addf %86, %87 : vector<8x128xf32>
    %89 = vector.broadcast %12 : vector<1x128xf32> to vector<8x128xf32>
    %90 = arith.addf %88, %89 : vector<8x128xf32>
    %91 = arith.negf %90 : vector<8x128xf32>
    %92 = math.exp %91 : vector<8x128xf32>
    %cst_42 = arith.constant 1.000000e+00 : f32
    %93 = vector.broadcast %cst_42 : f32 to vector<8x128xf32>
    %94 = arith.addf %93, %92 : vector<8x128xf32>
    %95 = arith.divf %93, %94 : vector<8x128xf32>
    %96 = vector.extract_strided_slice %95 {offsets = [0, 0], sizes = [8, 32], strides = [1, 1]} : vector<8x128xf32> to vector<8x32xf32>
    %97 = vector.extract_strided_slice %95 {offsets = [0, 32], sizes = [8, 32], strides = [1, 1]} : vector<8x128xf32> to vector<8x32xf32>
    %98 = vector.extract_strided_slice %95 {offsets = [0, 64], sizes = [8, 32], strides = [1, 1]} : vector<8x128xf32> to vector<8x32xf32>
    %cst_43 = arith.constant 2.000000e+00 : f32
    %99 = vector.broadcast %cst_43 : f32 to vector<8x32xf32>
    %100 = arith.mulf %99, %98 : vector<8x32xf32>
    %cst_44 = arith.constant 1.000000e+00 : f32
    %101 = vector.broadcast %cst_44 : f32 to vector<8x32xf32>
    %102 = arith.subf %100, %101 : vector<8x32xf32>
    %103 = vector.extract_strided_slice %95 {offsets = [0, 96], sizes = [8, 32], strides = [1, 1]} : vector<8x128xf32> to vector<8x32xf32>
    %104 = arith.mulf %97, %59 : vector<8x32xf32>
    %105 = arith.mulf %96, %102 : vector<8x32xf32>
    %106 = arith.addf %104, %105 : vector<8x32xf32>
    %107 = math.tanh %106 : vector<8x32xf32>
    %108 = arith.mulf %103, %107 : vector<8x32xf32>
    %cst_45 = arith.constant dense<0.000000e+00> : vector<8x128xf32>
    %109 = tpu.matmul %108, %13, %cst_45 {dimension_numbers = #tpu.dot_dimension_numbers<[1], [0], [0], [1], [0, 0, 1, 1], [], []>} : vector<8x32xf32>, vector<32x128xf32>, vector<8x128xf32> -> vector<8x128xf32>
    %110 = vector.broadcast %14 : vector<1x128xf32> to vector<8x128xf32>
    %111 = arith.addf %109, %110 : vector<8x128xf32>
    %c0_46 = arith.constant 0 : index
    %c128 = arith.constant 128 : index
    %112 = vector.load %arg10[%c0_46, %c128] : memref<8x1024xf32, #tpu.memory_space<vmem>>, vector<8x128xf32>
    tpu.vector_store %arg10[%c0_46, %c128], %111 {strides = array<i32>} : memref<8x1024xf32, #tpu.memory_space<vmem>>, vector<8x128xf32>,
    %cst_47 = arith.constant dense<0.000000e+00> : vector<8x128xf32>
    %113 = tpu.matmul %85, %6, %cst_47 {dimension_numbers = #tpu.dot_dimension_numbers<[1], [0], [0], [1], [0, 0, 1, 1], [], []>} : vector<8x32xf32>, vector<32x128xf32>, vector<8x128xf32> -> vector<8x128xf32>
    %114 = arith.addf %5, %113 : vector<8x128xf32>
    %115 = arith.negf %114 : vector<8x128xf32>
    %116 = math.exp %115 : vector<8x128xf32>
    %cst_48 = arith.constant 1.000000e+00 : f32
    %117 = vector.broadcast %cst_48 : f32 to vector<8x128xf32>
    %118 = arith.addf %117, %116 : vector<8x128xf32>
    %119 = arith.divf %117, %118 : vector<8x128xf32>
    %120 = vector.extract_strided_slice %119 {offsets = [0, 0], sizes = [8, 32], strides = [1, 1]} : vector<8x128xf32> to vector<8x32xf32>
    %121 = vector.extract_strided_slice %119 {offsets = [0, 32], sizes = [8, 32], strides = [1, 1]} : vector<8x128xf32> to vector<8x32xf32>
    %122 = vector.extract_strided_slice %119 {offsets = [0, 64], sizes = [8, 32], strides = [1, 1]} : vector<8x128xf32> to vector<8x32xf32>
    %cst_49 = arith.constant 2.000000e+00 : f32
    %123 = vector.broadcast %cst_49 : f32 to vector<8x32xf32>
    %124 = arith.mulf %123, %122 : vector<8x32xf32>
    %cst_50 = arith.constant 1.000000e+00 : f32
    %125 = vector.broadcast %cst_50 : f32 to vector<8x32xf32>
    %126 = arith.subf %124, %125 : vector<8x32xf32>
    %127 = vector.extract_strided_slice %119 {offsets = [0, 96], sizes = [8, 32], strides = [1, 1]} : vector<8x128xf32> to vector<8x32xf32>
    %128 = arith.mulf %121, %83 : vector<8x32xf32>
    %129 = arith.mulf %120, %126 : vector<8x32xf32>
    %130 = arith.addf %128, %129 : vector<8x32xf32>
    %131 = math.tanh %130 : vector<8x32xf32>
    %132 = arith.mulf %127, %131 : vector<8x32xf32>
    %cst_51 = arith.constant dense<0.000000e+00> : vector<8x128xf32>
    %133 = tpu.matmul %108, %10, %cst_51 {dimension_numbers = #tpu.dot_dimension_numbers<[1], [0], [0], [1], [0, 0, 1, 1], [], []>} : vector<8x32xf32>, vector<32x128xf32>, vector<8x128xf32> -> vector<8x128xf32>
    %cst_52 = arith.constant dense<0.000000e+00> : vector<8x128xf32>
    %134 = tpu.matmul %132, %8, %cst_52 {dimension_numbers = #tpu.dot_dimension_numbers<[1], [0], [0], [1], [0, 0, 1, 1], [], []>} : vector<8x32xf32>, vector<32x128xf32>, vector<8x128xf32> -> vector<8x128xf32>
    %135 = arith.addf %133, %134 : vector<8x128xf32>
    %136 = vector.broadcast %12 : vector<1x128xf32> to vector<8x128xf32>
    %137 = arith.addf %135, %136 : vector<8x128xf32>
    %138 = arith.negf %137 : vector<8x128xf32>
    %139 = math.exp %138 : vector<8x128xf32>
    %cst_53 = arith.constant 1.000000e+00 : f32
    %140 = vector.broadcast %cst_53 : f32 to vector<8x128xf32>
    %141 = arith.addf %140, %139 : vector<8x128xf32>
    %142 = arith.divf %140, %141 : vector<8x128xf32>
    %143 = vector.extract_strided_slice %142 {offsets = [0, 0], sizes = [8, 32], strides = [1, 1]} : vector<8x128xf32> to vector<8x32xf32>
    %144 = vector.extract_strided_slice %142 {offsets = [0, 32], sizes = [8, 32], strides = [1, 1]} : vector<8x128xf32> to vector<8x32xf32>
    %145 = vector.extract_strided_slice %142 {offsets = [0, 64], sizes = [8, 32], strides = [1, 1]} : vector<8x128xf32> to vector<8x32xf32>
    %cst_54 = arith.constant 2.000000e+00 : f32
    %146 = vector.broadcast %cst_54 : f32 to vector<8x32xf32>
    %147 = arith.mulf %146, %145 : vector<8x32xf32>
    %cst_55 = arith.constant 1.000000e+00 : f32
    %148 = vector.broadcast %cst_55 : f32 to vector<8x32xf32>
    %149 = arith.subf %147, %148 : vector<8x32xf32>
    %150 = vector.extract_strided_slice %142 {offsets = [0, 96], sizes = [8, 32], strides = [1, 1]} : vector<8x128xf32> to vector<8x32xf32>
    %151 = arith.mulf %144, %106 : vector<8x32xf32>
    %152 = arith.mulf %143, %149 : vector<8x32xf32>
    %153 = arith.addf %151, %152 : vector<8x32xf32>
    %154 = math.tanh %153 : vector<8x32xf32>
    %155 = arith.mulf %150, %154 : vector<8x32xf32>
    %cst_56 = arith.constant dense<0.000000e+00> : vector<8x128xf32>
    %156 = tpu.matmul %155, %13, %cst_56 {dimension_numbers = #tpu.dot_dimension_numbers<[1], [0], [0], [1], [0, 0, 1, 1], [], []>} : vector<8x32xf32>, vector<32x128xf32>, vector<8x128xf32> -> vector<8x128xf32>
    %157 = vector.broadcast %14 : vector<1x128xf32> to vector<8x128xf32>
    %158 = arith.addf %156, %157 : vector<8x128xf32>
    %c0_57 = arith.constant 0 : index
    %c256 = arith.constant 256 : index
    %159 = vector.load %arg10[%c0_57, %c256] : memref<8x1024xf32, #tpu.memory_space<vmem>>, vector<8x128xf32>
    tpu.vector_store %arg10[%c0_57, %c256], %158 {strides = array<i32>} : memref<8x1024xf32, #tpu.memory_space<vmem>>, vector<8x128xf32>,
    %cst_58 = arith.constant dense<0.000000e+00> : vector<8x128xf32>
    %160 = tpu.matmul %132, %6, %cst_58 {dimension_numbers = #tpu.dot_dimension_numbers<[1], [0], [0], [1], [0, 0, 1, 1], [], []>} : vector<8x32xf32>, vector<32x128xf32>, vector<8x128xf32> -> vector<8x128xf32>
    %161 = arith.addf %5, %160 : vector<8x128xf32>
    %162 = arith.negf %161 : vector<8x128xf32>
    %163 = math.exp %162 : vector<8x128xf32>
    %cst_59 = arith.constant 1.000000e+00 : f32
    %164 = vector.broadcast %cst_59 : f32 to vector<8x128xf32>
    %165 = arith.addf %164, %163 : vector<8x128xf32>
    %166 = arith.divf %164, %165 : vector<8x128xf32>
    %167 = vector.extract_strided_slice %166 {offsets = [0, 0], sizes = [8, 32], strides = [1, 1]} : vector<8x128xf32> to vector<8x32xf32>
    %168 = vector.extract_strided_slice %166 {offsets = [0, 32], sizes = [8, 32], strides = [1, 1]} : vector<8x128xf32> to vector<8x32xf32>
    %169 = vector.extract_strided_slice %166 {offsets = [0, 64], sizes = [8, 32], strides = [1, 1]} : vector<8x128xf32> to vector<8x32xf32>
    %cst_60 = arith.constant 2.000000e+00 : f32
    %170 = vector.broadcast %cst_60 : f32 to vector<8x32xf32>
    %171 = arith.mulf %170, %169 : vector<8x32xf32>
    %cst_61 = arith.constant 1.000000e+00 : f32
    %172 = vector.broadcast %cst_61 : f32 to vector<8x32xf32>
    %173 = arith.subf %171, %172 : vector<8x32xf32>
    %174 = vector.extract_strided_slice %166 {offsets = [0, 96], sizes = [8, 32], strides = [1, 1]} : vector<8x128xf32> to vector<8x32xf32>
    %175 = arith.mulf %168, %130 : vector<8x32xf32>
    %176 = arith.mulf %167, %173 : vector<8x32xf32>
    %177 = arith.addf %175, %176 : vector<8x32xf32>
    %178 = math.tanh %177 : vector<8x32xf32>
    %179 = arith.mulf %174, %178 : vector<8x32xf32>
    %cst_62 = arith.constant dense<0.000000e+00> : vector<8x128xf32>
    %180 = tpu.matmul %155, %10, %cst_62 {dimension_numbers = #tpu.dot_dimension_numbers<[1], [0], [0], [1], [0, 0, 1, 1], [], []>} : vector<8x32xf32>, vector<32x128xf32>, vector<8x128xf32> -> vector<8x128xf32>
    %cst_63 = arith.constant dense<0.000000e+00> : vector<8x128xf32>
    %181 = tpu.matmul %179, %8, %cst_63 {dimension_numbers = #tpu.dot_dimension_numbers<[1], [0], [0], [1], [0, 0, 1, 1], [], []>} : vector<8x32xf32>, vector<32x128xf32>, vector<8x128xf32> -> vector<8x128xf32>
    %182 = arith.addf %180, %181 : vector<8x128xf32>
    %183 = vector.broadcast %12 : vector<1x128xf32> to vector<8x128xf32>
    %184 = arith.addf %182, %183 : vector<8x128xf32>
    %185 = arith.negf %184 : vector<8x128xf32>
    %186 = math.exp %185 : vector<8x128xf32>
    %cst_64 = arith.constant 1.000000e+00 : f32
    %187 = vector.broadcast %cst_64 : f32 to vector<8x128xf32>
    %188 = arith.addf %187, %186 : vector<8x128xf32>
    %189 = arith.divf %187, %188 : vector<8x128xf32>
    %190 = vector.extract_strided_slice %189 {offsets = [0, 0], sizes = [8, 32], strides = [1, 1]} : vector<8x128xf32> to vector<8x32xf32>
    %191 = vector.extract_strided_slice %189 {offsets = [0, 32], sizes = [8, 32], strides = [1, 1]} : vector<8x128xf32> to vector<8x32xf32>
    %192 = vector.extract_strided_slice %189 {offsets = [0, 64], sizes = [8, 32], strides = [1, 1]} : vector<8x128xf32> to vector<8x32xf32>
    %cst_65 = arith.constant 2.000000e+00 : f32
    %193 = vector.broadcast %cst_65 : f32 to vector<8x32xf32>
    %194 = arith.mulf %193, %192 : vector<8x32xf32>
    %cst_66 = arith.constant 1.000000e+00 : f32
    %195 = vector.broadcast %cst_66 : f32 to vector<8x32xf32>
    %196 = arith.subf %194, %195 : vector<8x32xf32>
    %197 = vector.extract_strided_slice %189 {offsets = [0, 96], sizes = [8, 32], strides = [1, 1]} : vector<8x128xf32> to vector<8x32xf32>
    %198 = arith.mulf %191, %153 : vector<8x32xf32>
    %199 = arith.mulf %190, %196 : vector<8x32xf32>
    %200 = arith.addf %198, %199 : vector<8x32xf32>
    %201 = math.tanh %200 : vector<8x32xf32>
    %202 = arith.mulf %197, %201 : vector<8x32xf32>
    %cst_67 = arith.constant dense<0.000000e+00> : vector<8x128xf32>
    %203 = tpu.matmul %202, %13, %cst_67 {dimension_numbers = #tpu.dot_dimension_numbers<[1], [0], [0], [1], [0, 0, 1, 1], [], []>} : vector<8x32xf32>, vector<32x128xf32>, vector<8x128xf32> -> vector<8x128xf32>
    %204 = vector.broadcast %14 : vector<1x128xf32> to vector<8x128xf32>
    %205 = arith.addf %203, %204 : vector<8x128xf32>
    %c0_68 = arith.constant 0 : index
    %c384 = arith.constant 384 : index
    %206 = vector.load %arg10[%c0_68, %c384] : memref<8x1024xf32, #tpu.memory_space<vmem>>, vector<8x128xf32>
    tpu.vector_store %arg10[%c0_68, %c384], %205 {strides = array<i32>} : memref<8x1024xf32, #tpu.memory_space<vmem>>, vector<8x128xf32>,
    %cst_69 = arith.constant dense<0.000000e+00> : vector<8x128xf32>
    %207 = tpu.matmul %179, %6, %cst_69 {dimension_numbers = #tpu.dot_dimension_numbers<[1], [0], [0], [1], [0, 0, 1, 1], [], []>} : vector<8x32xf32>, vector<32x128xf32>, vector<8x128xf32> -> vector<8x128xf32>
    %208 = arith.addf %5, %207 : vector<8x128xf32>
    %209 = arith.negf %208 : vector<8x128xf32>
    %210 = math.exp %209 : vector<8x128xf32>
    %cst_70 = arith.constant 1.000000e+00 : f32
    %211 = vector.broadcast %cst_70 : f32 to vector<8x128xf32>
    %212 = arith.addf %211, %210 : vector<8x128xf32>
    %213 = arith.divf %211, %212 : vector<8x128xf32>
    %214 = vector.extract_strided_slice %213 {offsets = [0, 0], sizes = [8, 32], strides = [1, 1]} : vector<8x128xf32> to vector<8x32xf32>
    %215 = vector.extract_strided_slice %213 {offsets = [0, 32], sizes = [8, 32], strides = [1, 1]} : vector<8x128xf32> to vector<8x32xf32>
    %216 = vector.extract_strided_slice %213 {offsets = [0, 64], sizes = [8, 32], strides = [1, 1]} : vector<8x128xf32> to vector<8x32xf32>
    %cst_71 = arith.constant 2.000000e+00 : f32
    %217 = vector.broadcast %cst_71 : f32 to vector<8x32xf32>
    %218 = arith.mulf %217, %216 : vector<8x32xf32>
    %cst_72 = arith.constant 1.000000e+00 : f32
    %219 = vector.broadcast %cst_72 : f32 to vector<8x32xf32>
    %220 = arith.subf %218, %219 : vector<8x32xf32>
    %221 = vector.extract_strided_slice %213 {offsets = [0, 96], sizes = [8, 32], strides = [1, 1]} : vector<8x128xf32> to vector<8x32xf32>
    %222 = arith.mulf %215, %177 : vector<8x32xf32>
    %223 = arith.mulf %214, %220 : vector<8x32xf32>
    %224 = arith.addf %222, %223 : vector<8x32xf32>
    %225 = math.tanh %224 : vector<8x32xf32>
    %226 = arith.mulf %221, %225 : vector<8x32xf32>
    %cst_73 = arith.constant dense<0.000000e+00> : vector<8x128xf32>
    %227 = tpu.matmul %202, %10, %cst_73 {dimension_numbers = #tpu.dot_dimension_numbers<[1], [0], [0], [1], [0, 0, 1, 1], [], []>} : vector<8x32xf32>, vector<32x128xf32>, vector<8x128xf32> -> vector<8x128xf32>
    %cst_74 = arith.constant dense<0.000000e+00> : vector<8x128xf32>
    %228 = tpu.matmul %226, %8, %cst_74 {dimension_numbers = #tpu.dot_dimension_numbers<[1], [0], [0], [1], [0, 0, 1, 1], [], []>} : vector<8x32xf32>, vector<32x128xf32>, vector<8x128xf32> -> vector<8x128xf32>
    %229 = arith.addf %227, %228 : vector<8x128xf32>
    %230 = vector.broadcast %12 : vector<1x128xf32> to vector<8x128xf32>
    %231 = arith.addf %229, %230 : vector<8x128xf32>
    %232 = arith.negf %231 : vector<8x128xf32>
    %233 = math.exp %232 : vector<8x128xf32>
    %cst_75 = arith.constant 1.000000e+00 : f32
    %234 = vector.broadcast %cst_75 : f32 to vector<8x128xf32>
    %235 = arith.addf %234, %233 : vector<8x128xf32>
    %236 = arith.divf %234, %235 : vector<8x128xf32>
    %237 = vector.extract_strided_slice %236 {offsets = [0, 0], sizes = [8, 32], strides = [1, 1]} : vector<8x128xf32> to vector<8x32xf32>
    %238 = vector.extract_strided_slice %236 {offsets = [0, 32], sizes = [8, 32], strides = [1, 1]} : vector<8x128xf32> to vector<8x32xf32>
    %239 = vector.extract_strided_slice %236 {offsets = [0, 64], sizes = [8, 32], strides = [1, 1]} : vector<8x128xf32> to vector<8x32xf32>
    %cst_76 = arith.constant 2.000000e+00 : f32
    %240 = vector.broadcast %cst_76 : f32 to vector<8x32xf32>
    %241 = arith.mulf %240, %239 : vector<8x32xf32>
    %cst_77 = arith.constant 1.000000e+00 : f32
    %242 = vector.broadcast %cst_77 : f32 to vector<8x32xf32>
    %243 = arith.subf %241, %242 : vector<8x32xf32>
    %244 = vector.extract_strided_slice %236 {offsets = [0, 96], sizes = [8, 32], strides = [1, 1]} : vector<8x128xf32> to vector<8x32xf32>
    %245 = arith.mulf %238, %200 : vector<8x32xf32>
    %246 = arith.mulf %237, %243 : vector<8x32xf32>
    %247 = arith.addf %245, %246 : vector<8x32xf32>
    %248 = math.tanh %247 : vector<8x32xf32>
    %249 = arith.mulf %244, %248 : vector<8x32xf32>
    %cst_78 = arith.constant dense<0.000000e+00> : vector<8x128xf32>
    %250 = tpu.matmul %249, %13, %cst_78 {dimension_numbers = #tpu.dot_dimension_numbers<[1], [0], [0], [1], [0, 0, 1, 1], [], []>} : vector<8x32xf32>, vector<32x128xf32>, vector<8x128xf32> -> vector<8x128xf32>
    %251 = vector.broadcast %14 : vector<1x128xf32> to vector<8x128xf32>
    %252 = arith.addf %250, %251 : vector<8x128xf32>
    %c0_79 = arith.constant 0 : index
    %c512 = arith.constant 512 : index
    %253 = vector.load %arg10[%c0_79, %c512] : memref<8x1024xf32, #tpu.memory_space<vmem>>, vector<8x128xf32>
    tpu.vector_store %arg10[%c0_79, %c512], %252 {strides = array<i32>} : memref<8x1024xf32, #tpu.memory_space<vmem>>, vector<8x128xf32>,
    %cst_80 = arith.constant dense<0.000000e+00> : vector<8x128xf32>
    %254 = tpu.matmul %226, %6, %cst_80 {dimension_numbers = #tpu.dot_dimension_numbers<[1], [0], [0], [1], [0, 0, 1, 1], [], []>} : vector<8x32xf32>, vector<32x128xf32>, vector<8x128xf32> -> vector<8x128xf32>
    %255 = arith.addf %5, %254 : vector<8x128xf32>
    %256 = arith.negf %255 : vector<8x128xf32>
    %257 = math.exp %256 : vector<8x128xf32>
    %cst_81 = arith.constant 1.000000e+00 : f32
    %258 = vector.broadcast %cst_81 : f32 to vector<8x128xf32>
    %259 = arith.addf %258, %257 : vector<8x128xf32>
    %260 = arith.divf %258, %259 : vector<8x128xf32>
    %261 = vector.extract_strided_slice %260 {offsets = [0, 0], sizes = [8, 32], strides = [1, 1]} : vector<8x128xf32> to vector<8x32xf32>
    %262 = vector.extract_strided_slice %260 {offsets = [0, 32], sizes = [8, 32], strides = [1, 1]} : vector<8x128xf32> to vector<8x32xf32>
    %263 = vector.extract_strided_slice %260 {offsets = [0, 64], sizes = [8, 32], strides = [1, 1]} : vector<8x128xf32> to vector<8x32xf32>
    %cst_82 = arith.constant 2.000000e+00 : f32
    %264 = vector.broadcast %cst_82 : f32 to vector<8x32xf32>
    %265 = arith.mulf %264, %263 : vector<8x32xf32>
    %cst_83 = arith.constant 1.000000e+00 : f32
    %266 = vector.broadcast %cst_83 : f32 to vector<8x32xf32>
    %267 = arith.subf %265, %266 : vector<8x32xf32>
    %268 = vector.extract_strided_slice %260 {offsets = [0, 96], sizes = [8, 32], strides = [1, 1]} : vector<8x128xf32> to vector<8x32xf32>
    %269 = arith.mulf %262, %224 : vector<8x32xf32>
    %270 = arith.mulf %261, %267 : vector<8x32xf32>
    %271 = arith.addf %269, %270 : vector<8x32xf32>
    %272 = math.tanh %271 : vector<8x32xf32>
    %273 = arith.mulf %268, %272 : vector<8x32xf32>
    %cst_84 = arith.constant dense<0.000000e+00> : vector<8x128xf32>
    %274 = tpu.matmul %249, %10, %cst_84 {dimension_numbers = #tpu.dot_dimension_numbers<[1], [0], [0], [1], [0, 0, 1, 1], [], []>} : vector<8x32xf32>, vector<32x128xf32>, vector<8x128xf32> -> vector<8x128xf32>
    %cst_85 = arith.constant dense<0.000000e+00> : vector<8x128xf32>
    %275 = tpu.matmul %273, %8, %cst_85 {dimension_numbers = #tpu.dot_dimension_numbers<[1], [0], [0], [1], [0, 0, 1, 1], [], []>} : vector<8x32xf32>, vector<32x128xf32>, vector<8x128xf32> -> vector<8x128xf32>
    %276 = arith.addf %274, %275 : vector<8x128xf32>
    %277 = vector.broadcast %12 : vector<1x128xf32> to vector<8x128xf32>
    %278 = arith.addf %276, %277 : vector<8x128xf32>
    %279 = arith.negf %278 : vector<8x128xf32>
    %280 = math.exp %279 : vector<8x128xf32>
    %cst_86 = arith.constant 1.000000e+00 : f32
    %281 = vector.broadcast %cst_86 : f32 to vector<8x128xf32>
    %282 = arith.addf %281, %280 : vector<8x128xf32>
    %283 = arith.divf %281, %282 : vector<8x128xf32>
    %284 = vector.extract_strided_slice %283 {offsets = [0, 0], sizes = [8, 32], strides = [1, 1]} : vector<8x128xf32> to vector<8x32xf32>
    %285 = vector.extract_strided_slice %283 {offsets = [0, 32], sizes = [8, 32], strides = [1, 1]} : vector<8x128xf32> to vector<8x32xf32>
    %286 = vector.extract_strided_slice %283 {offsets = [0, 64], sizes = [8, 32], strides = [1, 1]} : vector<8x128xf32> to vector<8x32xf32>
    %cst_87 = arith.constant 2.000000e+00 : f32
    %287 = vector.broadcast %cst_87 : f32 to vector<8x32xf32>
    %288 = arith.mulf %287, %286 : vector<8x32xf32>
    %cst_88 = arith.constant 1.000000e+00 : f32
    %289 = vector.broadcast %cst_88 : f32 to vector<8x32xf32>
    %290 = arith.subf %288, %289 : vector<8x32xf32>
    %291 = vector.extract_strided_slice %283 {offsets = [0, 96], sizes = [8, 32], strides = [1, 1]} : vector<8x128xf32> to vector<8x32xf32>
    %292 = arith.mulf %285, %247 : vector<8x32xf32>
    %293 = arith.mulf %284, %290 : vector<8x32xf32>
    %294 = arith.addf %292, %293 : vector<8x32xf32>
    %295 = math.tanh %294 : vector<8x32xf32>
    %296 = arith.mulf %291, %295 : vector<8x32xf32>
    %cst_89 = arith.constant dense<0.000000e+00> : vector<8x128xf32>
    %297 = tpu.matmul %296, %13, %cst_89 {dimension_numbers = #tpu.dot_dimension_numbers<[1], [0], [0], [1], [0, 0, 1, 1], [], []>} : vector<8x32xf32>, vector<32x128xf32>, vector<8x128xf32> -> vector<8x128xf32>
    %298 = vector.broadcast %14 : vector<1x128xf32> to vector<8x128xf32>
    %299 = arith.addf %297, %298 : vector<8x128xf32>
    %c0_90 = arith.constant 0 : index
    %c640 = arith.constant 640 : index
    %300 = vector.load %arg10[%c0_90, %c640] : memref<8x1024xf32, #tpu.memory_space<vmem>>, vector<8x128xf32>
    tpu.vector_store %arg10[%c0_90, %c640], %299 {strides = array<i32>} : memref<8x1024xf32, #tpu.memory_space<vmem>>, vector<8x128xf32>,
    %cst_91 = arith.constant dense<0.000000e+00> : vector<8x128xf32>
    %301 = tpu.matmul %273, %6, %cst_91 {dimension_numbers = #tpu.dot_dimension_numbers<[1], [0], [0], [1], [0, 0, 1, 1], [], []>} : vector<8x32xf32>, vector<32x128xf32>, vector<8x128xf32> -> vector<8x128xf32>
    %302 = arith.addf %5, %301 : vector<8x128xf32>
    %303 = arith.negf %302 : vector<8x128xf32>
    %304 = math.exp %303 : vector<8x128xf32>
    %cst_92 = arith.constant 1.000000e+00 : f32
    %305 = vector.broadcast %cst_92 : f32 to vector<8x128xf32>
    %306 = arith.addf %305, %304 : vector<8x128xf32>
    %307 = arith.divf %305, %306 : vector<8x128xf32>
    %308 = vector.extract_strided_slice %307 {offsets = [0, 0], sizes = [8, 32], strides = [1, 1]} : vector<8x128xf32> to vector<8x32xf32>
    %309 = vector.extract_strided_slice %307 {offsets = [0, 32], sizes = [8, 32], strides = [1, 1]} : vector<8x128xf32> to vector<8x32xf32>
    %310 = vector.extract_strided_slice %307 {offsets = [0, 64], sizes = [8, 32], strides = [1, 1]} : vector<8x128xf32> to vector<8x32xf32>
    %cst_93 = arith.constant 2.000000e+00 : f32
    %311 = vector.broadcast %cst_93 : f32 to vector<8x32xf32>
    %312 = arith.mulf %311, %310 : vector<8x32xf32>
    %cst_94 = arith.constant 1.000000e+00 : f32
    %313 = vector.broadcast %cst_94 : f32 to vector<8x32xf32>
    %314 = arith.subf %312, %313 : vector<8x32xf32>
    %315 = vector.extract_strided_slice %307 {offsets = [0, 96], sizes = [8, 32], strides = [1, 1]} : vector<8x128xf32> to vector<8x32xf32>
    %316 = arith.mulf %309, %271 : vector<8x32xf32>
    %317 = arith.mulf %308, %314 : vector<8x32xf32>
    %318 = arith.addf %316, %317 : vector<8x32xf32>
    %319 = math.tanh %318 : vector<8x32xf32>
    %320 = arith.mulf %315, %319 : vector<8x32xf32>
    %cst_95 = arith.constant dense<0.000000e+00> : vector<8x128xf32>
    %321 = tpu.matmul %296, %10, %cst_95 {dimension_numbers = #tpu.dot_dimension_numbers<[1], [0], [0], [1], [0, 0, 1, 1], [], []>} : vector<8x32xf32>, vector<32x128xf32>, vector<8x128xf32> -> vector<8x128xf32>
    %cst_96 = arith.constant dense<0.000000e+00> : vector<8x128xf32>
    %322 = tpu.matmul %320, %8, %cst_96 {dimension_numbers = #tpu.dot_dimension_numbers<[1], [0], [0], [1], [0, 0, 1, 1], [], []>} : vector<8x32xf32>, vector<32x128xf32>, vector<8x128xf32> -> vector<8x128xf32>
    %323 = arith.addf %321, %322 : vector<8x128xf32>
    %324 = vector.broadcast %12 : vector<1x128xf32> to vector<8x128xf32>
    %325 = arith.addf %323, %324 : vector<8x128xf32>
    %326 = arith.negf %325 : vector<8x128xf32>
    %327 = math.exp %326 : vector<8x128xf32>
    %cst_97 = arith.constant 1.000000e+00 : f32
    %328 = vector.broadcast %cst_97 : f32 to vector<8x128xf32>
    %329 = arith.addf %328, %327 : vector<8x128xf32>
    %330 = arith.divf %328, %329 : vector<8x128xf32>
    %331 = vector.extract_strided_slice %330 {offsets = [0, 0], sizes = [8, 32], strides = [1, 1]} : vector<8x128xf32> to vector<8x32xf32>
    %332 = vector.extract_strided_slice %330 {offsets = [0, 32], sizes = [8, 32], strides = [1, 1]} : vector<8x128xf32> to vector<8x32xf32>
    %333 = vector.extract_strided_slice %330 {offsets = [0, 64], sizes = [8, 32], strides = [1, 1]} : vector<8x128xf32> to vector<8x32xf32>
    %cst_98 = arith.constant 2.000000e+00 : f32
    %334 = vector.broadcast %cst_98 : f32 to vector<8x32xf32>
    %335 = arith.mulf %334, %333 : vector<8x32xf32>
    %cst_99 = arith.constant 1.000000e+00 : f32
    %336 = vector.broadcast %cst_99 : f32 to vector<8x32xf32>
    %337 = arith.subf %335, %336 : vector<8x32xf32>
    %338 = vector.extract_strided_slice %330 {offsets = [0, 96], sizes = [8, 32], strides = [1, 1]} : vector<8x128xf32> to vector<8x32xf32>
    %339 = arith.mulf %332, %294 : vector<8x32xf32>
    %340 = arith.mulf %331, %337 : vector<8x32xf32>
    %341 = arith.addf %339, %340 : vector<8x32xf32>
    %342 = math.tanh %341 : vector<8x32xf32>
    %343 = arith.mulf %338, %342 : vector<8x32xf32>
    %cst_100 = arith.constant dense<0.000000e+00> : vector<8x128xf32>
    %344 = tpu.matmul %343, %13, %cst_100 {dimension_numbers = #tpu.dot_dimension_numbers<[1], [0], [0], [1], [0, 0, 1, 1], [], []>} : vector<8x32xf32>, vector<32x128xf32>, vector<8x128xf32> -> vector<8x128xf32>
    %345 = vector.broadcast %14 : vector<1x128xf32> to vector<8x128xf32>
    %346 = arith.addf %344, %345 : vector<8x128xf32>
    %c0_101 = arith.constant 0 : index
    %c768 = arith.constant 768 : index
    %347 = vector.load %arg10[%c0_101, %c768] : memref<8x1024xf32, #tpu.memory_space<vmem>>, vector<8x128xf32>
    tpu.vector_store %arg10[%c0_101, %c768], %346 {strides = array<i32>} : memref<8x1024xf32, #tpu.memory_space<vmem>>, vector<8x128xf32>,
    %cst_102 = arith.constant dense<0.000000e+00> : vector<8x128xf32>
    %348 = tpu.matmul %320, %6, %cst_102 {dimension_numbers = #tpu.dot_dimension_numbers<[1], [0], [0], [1], [0, 0, 1, 1], [], []>} : vector<8x32xf32>, vector<32x128xf32>, vector<8x128xf32> -> vector<8x128xf32>
    %349 = arith.addf %5, %348 : vector<8x128xf32>
    %350 = arith.negf %349 : vector<8x128xf32>
    %351 = math.exp %350 : vector<8x128xf32>
    %cst_103 = arith.constant 1.000000e+00 : f32
    %352 = vector.broadcast %cst_103 : f32 to vector<8x128xf32>
    %353 = arith.addf %352, %351 : vector<8x128xf32>
    %354 = arith.divf %352, %353 : vector<8x128xf32>
    %355 = vector.extract_strided_slice %354 {offsets = [0, 0], sizes = [8, 32], strides = [1, 1]} : vector<8x128xf32> to vector<8x32xf32>
    %356 = vector.extract_strided_slice %354 {offsets = [0, 32], sizes = [8, 32], strides = [1, 1]} : vector<8x128xf32> to vector<8x32xf32>
    %357 = vector.extract_strided_slice %354 {offsets = [0, 64], sizes = [8, 32], strides = [1, 1]} : vector<8x128xf32> to vector<8x32xf32>
    %cst_104 = arith.constant 2.000000e+00 : f32
    %358 = vector.broadcast %cst_104 : f32 to vector<8x32xf32>
    %359 = arith.mulf %358, %357 : vector<8x32xf32>
    %cst_105 = arith.constant 1.000000e+00 : f32
    %360 = vector.broadcast %cst_105 : f32 to vector<8x32xf32>
    %361 = arith.subf %359, %360 : vector<8x32xf32>
    %362 = vector.extract_strided_slice %354 {offsets = [0, 96], sizes = [8, 32], strides = [1, 1]} : vector<8x128xf32> to vector<8x32xf32>
    %363 = arith.mulf %356, %318 : vector<8x32xf32>
    %364 = arith.mulf %355, %361 : vector<8x32xf32>
    %365 = arith.addf %363, %364 : vector<8x32xf32>
    %366 = math.tanh %365 : vector<8x32xf32>
    %367 = arith.mulf %362, %366 : vector<8x32xf32>
    %cst_106 = arith.constant dense<0.000000e+00> : vector<8x128xf32>
    %368 = tpu.matmul %343, %10, %cst_106 {dimension_numbers = #tpu.dot_dimension_numbers<[1], [0], [0], [1], [0, 0, 1, 1], [], []>} : vector<8x32xf32>, vector<32x128xf32>, vector<8x128xf32> -> vector<8x128xf32>
    %cst_107 = arith.constant dense<0.000000e+00> : vector<8x128xf32>
    %369 = tpu.matmul %367, %8, %cst_107 {dimension_numbers = #tpu.dot_dimension_numbers<[1], [0], [0], [1], [0, 0, 1, 1], [], []>} : vector<8x32xf32>, vector<32x128xf32>, vector<8x128xf32> -> vector<8x128xf32>
    %370 = arith.addf %368, %369 : vector<8x128xf32>
    %371 = vector.broadcast %12 : vector<1x128xf32> to vector<8x128xf32>
    %372 = arith.addf %370, %371 : vector<8x128xf32>
    %373 = arith.negf %372 : vector<8x128xf32>
    %374 = math.exp %373 : vector<8x128xf32>
    %cst_108 = arith.constant 1.000000e+00 : f32
    %375 = vector.broadcast %cst_108 : f32 to vector<8x128xf32>
    %376 = arith.addf %375, %374 : vector<8x128xf32>
    %377 = arith.divf %375, %376 : vector<8x128xf32>
    %378 = vector.extract_strided_slice %377 {offsets = [0, 0], sizes = [8, 32], strides = [1, 1]} : vector<8x128xf32> to vector<8x32xf32>
    %379 = vector.extract_strided_slice %377 {offsets = [0, 32], sizes = [8, 32], strides = [1, 1]} : vector<8x128xf32> to vector<8x32xf32>
    %380 = vector.extract_strided_slice %377 {offsets = [0, 64], sizes = [8, 32], strides = [1, 1]} : vector<8x128xf32> to vector<8x32xf32>
    %cst_109 = arith.constant 2.000000e+00 : f32
    %381 = vector.broadcast %cst_109 : f32 to vector<8x32xf32>
    %382 = arith.mulf %381, %380 : vector<8x32xf32>
    %cst_110 = arith.constant 1.000000e+00 : f32
    %383 = vector.broadcast %cst_110 : f32 to vector<8x32xf32>
    %384 = arith.subf %382, %383 : vector<8x32xf32>
    %385 = vector.extract_strided_slice %377 {offsets = [0, 96], sizes = [8, 32], strides = [1, 1]} : vector<8x128xf32> to vector<8x32xf32>
    %386 = arith.mulf %379, %341 : vector<8x32xf32>
    %387 = arith.mulf %378, %384 : vector<8x32xf32>
    %388 = arith.addf %386, %387 : vector<8x32xf32>
    %389 = math.tanh %388 : vector<8x32xf32>
    %390 = arith.mulf %385, %389 : vector<8x32xf32>
    %cst_111 = arith.constant dense<0.000000e+00> : vector<8x128xf32>
    %391 = tpu.matmul %390, %13, %cst_111 {dimension_numbers = #tpu.dot_dimension_numbers<[1], [0], [0], [1], [0, 0, 1, 1], [], []>} : vector<8x32xf32>, vector<32x128xf32>, vector<8x128xf32> -> vector<8x128xf32>
    %392 = vector.broadcast %14 : vector<1x128xf32> to vector<8x128xf32>
    %393 = arith.addf %391, %392 : vector<8x128xf32>
    %c0_112 = arith.constant 0 : index
    %c896 = arith.constant 896 : index
    %394 = vector.load %arg10[%c0_112, %c896] : memref<8x1024xf32, #tpu.memory_space<vmem>>, vector<8x128xf32>
    tpu.vector_store %arg10[%c0_112, %c896], %393 {strides = array<i32>} : memref<8x1024xf32, #tpu.memory_space<vmem>>, vector<8x128xf32>,
    return
  }
  func.func @transform_0(%arg0: i32) -> (i32, i32) {
    %c0_i32 = arith.constant 0 : i32
    %c0_i32_0 = arith.constant 0 : i32
    %c0_i32_1 = arith.constant 0 : i32
    return %c0_i32, %c0_i32_0 : i32, i32
  }
  func.func @transform_1(%arg0: i32) -> (i32, i32) {
    %c0_i32 = arith.constant 0 : i32
    %c0_i32_0 = arith.constant 0 : i32
    %c0_i32_1 = arith.constant 0 : i32
    return %c0_i32, %c0_i32_0 : i32, i32
  }
  func.func @transform_2(%arg0: i32) -> (i32, i32) {
    %c0_i32 = arith.constant 0 : i32
    %c0_i32_0 = arith.constant 0 : i32
    %c0_i32_1 = arith.constant 0 : i32
    return %c0_i32, %c0_i32_0 : i32, i32
  }
  func.func @transform_3(%arg0: i32) -> (i32, i32) {
    %c0_i32 = arith.constant 0 : i32
    %c0_i32_0 = arith.constant 0 : i32
    %c0_i32_1 = arith.constant 0 : i32
    return %c0_i32, %c0_i32_0 : i32, i32
  }
  func.func @transform_4(%arg0: i32) -> (i32, i32, i32) {
    %c0_i32 = arith.constant 0 : i32
    %c0_i32_0 = arith.constant 0 : i32
    %c0_i32_1 = arith.constant 0 : i32
    %c0_i32_2 = arith.constant 0 : i32
    return %c0_i32, %c0_i32_0, %c0_i32_1 : i32, i32, i32
  }
  func.func @transform_5(%arg0: i32) -> (i32, i32, i32) {
    %c0_i32 = arith.constant 0 : i32
    %c0_i32_0 = arith.constant 0 : i32
    %c0_i32_1 = arith.constant 0 : i32
    %c0_i32_2 = arith.constant 0 : i32
    return %c0_i32, %c0_i32_0, %c0_i32_1 : i32, i32, i32
  }
  func.func @transform_6(%arg0: i32) -> (i32, i32, i32) {
    %c0_i32 = arith.constant 0 : i32
    %c0_i32_0 = arith.constant 0 : i32
    %c0_i32_1 = arith.constant 0 : i32
    %c0_i32_2 = arith.constant 0 : i32
    return %c0_i32, %c0_i32_0, %c0_i32_1 : i32, i32, i32
  }
  func.func @transform_7(%arg0: i32) -> (i32, i32) {
    %c0_i32 = arith.constant 0 : i32
    %c0_i32_0 = arith.constant 0 : i32
    %c0_i32_1 = arith.constant 0 : i32
    return %c0_i32, %c0_i32_0 : i32, i32
  }
  func.func @transform_8(%arg0: i32) -> (i32, i32) {
    %c0_i32 = arith.constant 0 : i32
    %c0_i32_0 = arith.constant 0 : i32
    %c0_i32_1 = arith.constant 0 : i32
    return %c0_i32, %c0_i32_0 : i32, i32
  }
  func.func @transform_9(%arg0: i32) -> (i32, i32) {
    %c0_i32 = arith.constant 0 : i32
    %c0_i32_0 = arith.constant 0 : i32
    %c0_i32_1 = arith.constant 0 : i32
    return %c0_i32, %c0_i32_0 : i32, i32
  }
}

</mosaic_0001>

<llo_original>
// kernel: decoder_forward.1
$region0: #{decoder_forward.1}
  #allocation0 [shape = 'u32[]', space=smem, size = 0x4, offset = 0x4, fixed_abs, tag = 'smem constant byte address 0x4 - core index']
  #allocation1 [shape = 'u32[144,128]{1,0:T(1,128)}', space=vmem, size = 0x12000, scoped, tag = 'internal scratch']
  %s0 = inlined_call_operand.hbm [shape: f32[8,16], index: 0, kind: input, shape index: {}]
  %s1 = inlined_call_operand.hbm [shape: f32[16,128], index: 1, kind: input, shape index: {}]
  %s2 = inlined_call_operand.hbm [shape: f32[32,128], index: 2, kind: input, shape index: {}]
  %s3 = inlined_call_operand.vmem [shape: f32[1,128], index: 3, kind: input, shape index: {}]
  %s4 = inlined_call_operand.hbm [shape: f32[1,32,128], index: 4, kind: input, shape index: {}]
  %s5 = inlined_call_operand.hbm [shape: f32[1,32,128], index: 5, kind: input, shape index: {}]
  %s6 = inlined_call_operand.vmem [shape: f32[1,1,128], index: 6, kind: input, shape index: {}]
  %s7 = inlined_call_operand.hbm [shape: f32[32,128], index: 7, kind: input, shape index: {}]
  %s8 = inlined_call_operand.vmem [shape: f32[1,128], index: 8, kind: input, shape index: {}]
  %s9 = inlined_call_operand.vmem [shape: f32[8,1024], index: 9, kind: output, shape index: {}]
  %s10 = sld [smem:[#allocation0]]
  $region70: #{decoder_forward.1} parent=0
    _
  %s12 = ssub.s32 1, %s10
  %s13 = scalar_select 0, %s12, %s10
  $region1: #{decoder_forward.1} parent=0
    #allocation2 [shape = 'u8[4096]{0}', space=vmem, size = 0x1000, scoped, tag = 'input window, operand 0, single buffered']
    #allocation3 [shape = 's32[1]{0}', space=sflag, size = 0x4, scoped, tag = 'scoped memory for decoder_forward.1']
    #allocation4 [shape = 'u8[8192]{0}', space=vmem, size = 0x2000, scoped, tag = 'input window, operand 1, single buffered']
    #allocation5 [shape = 's32[1]{0}', space=sflag, size = 0x4, scoped, tag = 'scoped memory for decoder_forward.1']
    #allocation6 [shape = 'u8[16384]{0}', space=vmem, size = 0x4000, scoped, tag = 'input window, operand 2, single buffered']
    #allocation7 [shape = 'u8[16384]{0}', space=vmem, size = 0x4000, scoped, tag = 'input window, operand 4, single buffered']
    #allocation8 [shape = 's32[1]{0}', space=sflag, size = 0x4, scoped, tag = 'scoped memory for decoder_forward.1']
    #allocation9 [shape = 'u8[16384]{0}', space=vmem, size = 0x4000, scoped, tag = 'input window, operand 5, single buffered']
    #allocation10 [shape = 'u8[16384]{0}', space=vmem, size = 0x4000, scoped, tag = 'input window, operand 7, single buffered']
    #allocation11 [shape = 's32[1]{0}', space=sflag, size = 0x4, scoped, tag = 'scoped memory for decoder_forward.1']
    %14 = vsyncpa [#allocation3], 0
    %15 = vsyncpa [#allocation5], 0
    %16 = vsyncpa [#allocation8], 0
    %17 = vsyncpa [#allocation11], 0
    // Predicated region
    $region2: #{decoder_forward.1} parent=1 // pred_check
      _
    $region3: #{decoder_forward.1} parent=1 // pred_check_branch
      %19 = sbr.rel (0) target = $region5
    $region4: #{decoder_forward.1} parent=1 // pred_region
      %s21 = ssub.s32 128, 128
      %22 = vsyncadd [#allocation3], %s21
      %s24 = sshll.u32 [#allocation2], 4
      %s25 = int_to_ptr.vmem [resolvable:$true] %s24
      %27 = dma.hbm_to_vmem [thread:$0]  %s0, 128, %s25, [#allocation3]
    $region5: #{decoder_forward.1} parent=1 // pred_fallthru
      _
    // Predicated region
    $region6: #{decoder_forward.1} parent=1 // pred_check
      _
    $region7: #{decoder_forward.1} parent=1 // pred_check_branch
      %29 = sbr.rel (0) target = $region9
    $region8: #{decoder_forward.1} parent=1 // pred_region
      %s31 = ssub.s32 256, 256
      %32 = vsyncadd [#allocation5], %s31
      %s33 = sshll.u32 [#allocation4], 4
      %s34 = int_to_ptr.vmem [resolvable:$true] %s33
      %39 = dma.hbm_to_vmem [thread:$0]  %s1, 256, %s34, [#allocation5], 128, 128, 8
    $region9: #{decoder_forward.1} parent=1 // pred_fallthru
      _
    // Predicated region
    $region10: #{decoder_forward.1} parent=1 // pred_check
      _
    $region11: #{decoder_forward.1} parent=1 // pred_check_branch
      %41 = sbr.rel (0) target = $region13
    $region12: #{decoder_forward.1} parent=1 // pred_region
      %s43 = ssub.s32 512, 512
      %44 = vsyncadd [#allocation5], %s43
      %s45 = sshll.u32 [#allocation6], 4
      %s46 = int_to_ptr.vmem [resolvable:$true] %s45
      %51 = dma.hbm_to_vmem [thread:$0]  %s2, 512, %s46, [#allocation5], 128, 128, 8
    $region13: #{decoder_forward.1} parent=1 // pred_fallthru
      _
    // Predicated region
    $region14: #{decoder_forward.1} parent=1 // pred_check
      _
    $region15: #{decoder_forward.1} parent=1 // pred_check_branch
      %53 = sbr.rel (0) target = $region17
    $region16: #{decoder_forward.1} parent=1 // pred_region
      _
    $region17: #{decoder_forward.1} parent=1 // pred_fallthru
      _
    // Predicated region
    $region18: #{decoder_forward.1} parent=1 // pred_check
      _
    $region19: #{decoder_forward.1} parent=1 // pred_check_branch
      %55 = sbr.rel (0) target = $region21
    $region20: #{decoder_forward.1} parent=1 // pred_region
      %s57 = ssub.s32 512, 512
      %58 = vsyncadd [#allocation8], %s57
      %s59 = sshll.u32 [#allocation7], 4
      %s60 = int_to_ptr.vmem [resolvable:$true] %s59
      %65 = dma.hbm_to_vmem [thread:$0]  %s4, 512, %s60, [#allocation8], 128, 128, 8
    $region21: #{decoder_forward.1} parent=1 // pred_fallthru
      _
    // Predicated region
    $region22: #{decoder_forward.1} parent=1 // pred_check
      _
    $region23: #{decoder_forward.1} parent=1 // pred_check_branch
      %67 = sbr.rel (0) target = $region25
    $region24: #{decoder_forward.1} parent=1 // pred_region
      %s69 = ssub.s32 512, 512
      %70 = vsyncadd [#allocation8], %s69
      %s71 = sshll.u32 [#allocation9], 4
      %s72 = int_to_ptr.vmem [resolvable:$true] %s71
      %77 = dma.hbm_to_vmem [thread:$0]  %s5, 512, %s72, [#allocation8], 128, 128, 8
    $region25: #{decoder_forward.1} parent=1 // pred_fallthru
      _
    // Predicated region
    $region26: #{decoder_forward.1} parent=1 // pred_check
      _
    $region27: #{decoder_forward.1} parent=1 // pred_check_branch
      %79 = sbr.rel (0) target = $region29
    $region28: #{decoder_forward.1} parent=1 // pred_region
      _
    $region29: #{decoder_forward.1} parent=1 // pred_fallthru
      _
    // Predicated region
    $region30: #{decoder_forward.1} parent=1 // pred_check
      _
    $region31: #{decoder_forward.1} parent=1 // pred_check_branch
      %81 = sbr.rel (0) target = $region33
    $region32: #{decoder_forward.1} parent=1 // pred_region
      %s83 = ssub.s32 512, 512
      %84 = vsyncadd [#allocation11], %s83
      %s85 = sshll.u32 [#allocation10], 4
      %s86 = int_to_ptr.vmem [resolvable:$true] %s85
      %91 = dma.hbm_to_vmem [thread:$0]  %s7, 512, %s86, [#allocation11], 128, 128, 8
    $region33: #{decoder_forward.1} parent=1 // pred_fallthru
      _
    // Predicated region
    $region34: #{decoder_forward.1} parent=1 // pred_check
      _
    $region35: #{decoder_forward.1} parent=1 // pred_check_branch
      %93 = sbr.rel (0) target = $region37
    $region36: #{decoder_forward.1} parent=1 // pred_region
      _
    $region37: #{decoder_forward.1} parent=1 // pred_fallthru
      _
    // Predicated region
    $region38: #{decoder_forward.1} parent=1 // pred_check
      _
    $region39: #{decoder_forward.1} parent=1 // pred_check_branch
      %95 = sbr.rel (0) target = $region41
    $region40: #{decoder_forward.1} parent=1 // pred_region
      %96 = dma.done [#allocation3], 128
    $region41: #{decoder_forward.1} parent=1 // pred_fallthru
      _
    // Predicated region
    $region42: #{decoder_forward.1} parent=1 // pred_check
      _
    $region43: #{decoder_forward.1} parent=1 // pred_check_branch
      %98 = sbr.rel (0) target = $region45
    $region44: #{decoder_forward.1} parent=1 // pred_region
      %99 = dma.done [#allocation5], 256
    $region45: #{decoder_forward.1} parent=1 // pred_fallthru
      _
    // Predicated region
    $region46: #{decoder_forward.1} parent=1 // pred_check
      _
    $region47: #{decoder_forward.1} parent=1 // pred_check_branch
      %101 = sbr.rel (0) target = $region49
    $region48: #{decoder_forward.1} parent=1 // pred_region
      %102 = dma.done [#allocation5], 512
    $region49: #{decoder_forward.1} parent=1 // pred_fallthru
      _
    // Predicated region
    $region50: #{decoder_forward.1} parent=1 // pred_check
      _
    $region51: #{decoder_forward.1} parent=1 // pred_check_branch
      %104 = sbr.rel (0) target = $region53
    $region52: #{decoder_forward.1} parent=1 // pred_region
      %105 = dma.done [#allocation8], 512
    $region53: #{decoder_forward.1} parent=1 // pred_fallthru
      _
    // Predicated region
    $region54: #{decoder_forward.1} parent=1 // pred_check
      _
    $region55: #{decoder_forward.1} parent=1 // pred_check_branch
      %107 = sbr.rel (0) target = $region57
    $region56: #{decoder_forward.1} parent=1 // pred_region
      %108 = dma.done [#allocation8], 512
    $region57: #{decoder_forward.1} parent=1 // pred_fallthru
      _
    // Predicated region
    $region58: #{decoder_forward.1} parent=1 // pred_check
      _
    $region59: #{decoder_forward.1} parent=1 // pred_check_branch
      %110 = sbr.rel (0) target = $region61
    $region60: #{decoder_forward.1} parent=1 // pred_region
      %111 = dma.done [#allocation11], 512
    $region61: #{decoder_forward.1} parent=1 // pred_fallthru
      _
    %v112 = vld [vmem:[#allocation2] sm:$0xff]
    %v113 = vld [vmem:[#allocation4] sm:$0xff]
    %v114 = vld [vmem:[#allocation4 + $0x8] sm:$0xff]
    %v115 = vld [vmem:[%s3] sm:$0x1]
    %v117 = vlaneseq
    %v118 = vshrl.u32 %v117, 7
    %v119 = vsub.s32 0, %v118
    %v120 = vrot.slane %v115, %v119
    %vm122 = vcmask 130048
    %v124 = vsel %vm122, %v112, 0
    %126 = vmatprep.subr.mxu0 0.0
    %127 = vmatpush1.msra.mxu0 0.0
    %128 = vmatprep.subr.mxu0 0.0
    %129 = vmatpush1.msra.mxu0 0.0
    %130 = vmatprep.subr.mxu0 0.0
    %131 = vmatpush1.msra.mxu0 0.0
    %132 = vmatprep.subr.mxu0 0.0
    %133 = vmatpush1.msra.mxu0 0.0
    %134 = vmatprep.subr.mxu0 0.0
    %135 = vmatpush1.msra.mxu0 0.0
    %136 = vmatprep.subr.mxu0 0.0
    %137 = vmatpush1.msra.mxu0 0.0
    %138 = vmatprep.subr.mxu0 0.0
    %139 = vmatpush1.msra.mxu0 0.0
    %140 = vmatprep.subr.mxu0 0.0
    %141 = vmatpush1.msra.mxu0 0.0
    %142 = vmatprep.subr.mxu0 0.0
    %143 = vmatpush1.msra.mxu0 0.0
    %144 = vmatprep.subr.mxu0 0.0
    %145 = vmatpush1.msra.mxu0 0.0
    %146 = vmatprep.subr.mxu0 0.0
    %147 = vmatpush1.msra.mxu0 0.0
    %148 = vmatprep.subr.mxu0 0.0
    %149 = vmatpush1.msra.mxu0 0.0
    %150 = vmatprep.subr.mxu0 0.0
    %151 = vmatpush1.msra.mxu0 0.0
    %152 = vmatprep.subr.mxu0 0.0
    %153 = vmatpush1.msra.mxu0 0.0
    %154 = vmatprep.subr.mxu0 0.0
    %155 = vmatpush1.msra.mxu0 %v114
    %156 = vmatprep.subr.mxu0 0.0
    %157 = vmatpush1.msra.mxu0 %v113
    %158 = vmatprep.subr.mxu0 0.0
    %159 = vmatpush2.msra.mxu0 0.0
    %160 = vmatprep.subr.mxu0 0.0
    %161 = vmatpush2.msra.mxu0 0.0
    %162 = vmatprep.subr.mxu0 0.0
    %163 = vmatpush2.msra.mxu0 0.0
    %164 = vmatprep.subr.mxu0 0.0
    %165 = vmatpush2.msra.mxu0 0.0
    %166 = vmatprep.subr.mxu0 0.0
    %167 = vmatpush2.msra.mxu0 0.0
    %168 = vmatprep.subr.mxu0 0.0
    %169 = vmatpush2.msra.mxu0 0.0
    %170 = vmatprep.subr.mxu0 0.0
    %171 = vmatpush2.msra.mxu0 0.0
    %172 = vmatprep.subr.mxu0 0.0
    %173 = vmatpush2.msra.mxu0 0.0
    %174 = vmatprep.subr.mxu0 0.0
    %175 = vmatpush2.msra.mxu0 0.0
    %176 = vmatprep.subr.mxu0 0.0
    %177 = vmatpush2.msra.mxu0 0.0
    %178 = vmatprep.subr.mxu0 0.0
    %179 = vmatpush2.msra.mxu0 0.0
    %180 = vmatprep.subr.mxu0 0.0
    %181 = vmatpush2.msra.mxu0 0.0
    %182 = vmatprep.subr.mxu0 0.0
    %183 = vmatpush2.msra.mxu0 0.0
    %184 = vmatprep.subr.mxu0 0.0
    %185 = vmatpush2.msra.mxu0 0.0
    %186 = vmatprep.subr.mxu0 0.0
    %187 = vmatpush2.msra.mxu0 0.0
    %188 = vmatprep.subr.mxu0 0.0
    %189 = vmatpush2.msra.mxu0 0.0
    %190 = vmatprep.mubr.f32.mxu0 0.0
    %191 = vmatmul.mubr.f32.gmra.mxu0 %v124
    %v192 = vpop.f32.mrf.mxu0
    %v193 = vadd.f32 %v120, %v192
    %v194 = vpop.f32.mrf.mxu0
    %195 = vdwg.mxu0
    %v196 = vld [vmem:[#allocation6] sm:$0xff]
    %v197 = vld [vmem:[#allocation6 + $0x8] sm:$0xff]
    %v198 = vld [vmem:[#allocation6 + $0x10] sm:$0xff]
    %v199 = vld [vmem:[#allocation6 + $0x18] sm:$0xff]
    %v200 = vld [vmem:[#allocation7] sm:$0xff]
    %v201 = vld [vmem:[#allocation7 + $0x8] sm:$0xff]
    %v202 = vld [vmem:[#allocation7 + $0x10] sm:$0xff]
    %v203 = vld [vmem:[#allocation7 + $0x18] sm:$0xff]
    %v204 = vld [vmem:[#allocation9] sm:$0xff]
    %v205 = vld [vmem:[#allocation9 + $0x8] sm:$0xff]
    %v206 = vld [vmem:[#allocation9 + $0x10] sm:$0xff]
    %v207 = vld [vmem:[#allocation9 + $0x18] sm:$0xff]
    %v208 = vld [vmem:[%s6] sm:$0x1]
    %v209 = vld [vmem:[#allocation10] sm:$0xff]
    %v210 = vld [vmem:[#allocation10 + $0x8] sm:$0xff]
    %v211 = vld [vmem:[#allocation10 + $0x10] sm:$0xff]
    %v212 = vld [vmem:[#allocation10 + $0x18] sm:$0xff]
    %v213 = vld [vmem:[%s8] sm:$0x1]
    %vm214 = vcmask 261120
    %v216 = vsel %vm214, 0.0, 0
    %218 = vmatprep.subr.mxu0 0.0
    %219 = vmatpush1.msra.mxu0 0.0
    %220 = vmatprep.subr.mxu0 0.0
    %221 = vmatpush1.msra.mxu0 0.0
    %222 = vmatprep.subr.mxu0 0.0
    %223 = vmatpush1.msra.mxu0 0.0
    %224 = vmatprep.subr.mxu0 0.0
    %225 = vmatpush1.msra.mxu0 0.0
    %226 = vmatprep.subr.mxu0 0.0
    %227 = vmatpush1.msra.mxu0 0.0
    %228 = vmatprep.subr.mxu0 0.0
    %229 = vmatpush1.msra.mxu0 0.0
    %230 = vmatprep.subr.mxu0 0.0
    %231 = vmatpush1.msra.mxu0 0.0
    %232 = vmatprep.subr.mxu0 0.0
    %233 = vmatpush1.msra.mxu0 0.0
    %234 = vmatprep.subr.mxu0 0.0
    %235 = vmatpush1.msra.mxu0 0.0
    %236 = vmatprep.subr.mxu0 0.0
    %237 = vmatpush1.msra.mxu0 0.0
    %238 = vmatprep.subr.mxu0 0.0
    %239 = vmatpush1.msra.mxu0 0.0
    %240 = vmatprep.subr.mxu0 0.0
    %241 = vmatpush1.msra.mxu0 0.0
    %242 = vmatprep.subr.mxu0 0.0
    %243 = vmatpush1.msra.mxu0 %v199
    %244 = vmatprep.subr.mxu0 0.0
    %245 = vmatpush1.msra.mxu0 %v198
    %246 = vmatprep.subr.mxu0 0.0
    %247 = vmatpush1.msra.mxu0 %v197
    %248 = vmatprep.subr.mxu0 0.0
    %249 = vmatpush1.msra.mxu0 %v196
    %250 = vmatprep.subr.mxu0 0.0
    %251 = vmatpush2.msra.mxu0 0.0
    %252 = vmatprep.subr.mxu0 0.0
    %253 = vmatpush2.msra.mxu0 0.0
    %254 = vmatprep.subr.mxu0 0.0
    %255 = vmatpush2.msra.mxu0 0.0
    %256 = vmatprep.subr.mxu0 0.0
    %257 = vmatpush2.msra.mxu0 0.0
    %258 = vmatprep.subr.mxu0 0.0
    %259 = vmatpush2.msra.mxu0 0.0
    %260 = vmatprep.subr.mxu0 0.0
    %261 = vmatpush2.msra.mxu0 0.0
    %262 = vmatprep.subr.mxu0 0.0
    %263 = vmatpush2.msra.mxu0 0.0
    %264 = vmatprep.subr.mxu0 0.0
    %265 = vmatpush2.msra.mxu0 0.0
    %266 = vmatprep.subr.mxu0 0.0
    %267 = vmatpush2.msra.mxu0 0.0
    %268 = vmatprep.subr.mxu0 0.0
    %269 = vmatpush2.msra.mxu0 0.0
    %270 = vmatprep.subr.mxu0 0.0
    %271 = vmatpush2.msra.mxu0 0.0
    %272 = vmatprep.subr.mxu0 0.0
    %273 = vmatpush2.msra.mxu0 0.0
    %274 = vmatprep.subr.mxu0 0.0
    %275 = vmatpush2.msra.mxu0 0.0
    %276 = vmatprep.subr.mxu0 0.0
    %277 = vmatpush2.msra.mxu0 0.0
    %278 = vmatprep.subr.mxu0 0.0
    %279 = vmatpush2.msra.mxu0 0.0
    %280 = vmatprep.subr.mxu0 0.0
    %281 = vmatpush2.msra.mxu0 0.0
    %282 = vmatprep.mubr.f32.mxu0 0.0
    %283 = vmatmul.mubr.f32.gmra.mxu0 %v216
    %v284 = vpop.f32.mrf.mxu0
    %v285 = vadd.f32 0.0, %v284
    %v286 = vpop.f32.mrf.mxu0
    %287 = vdwg.mxu0
    %v288 = vadd.f32 %v193, %v285
    %v289 = vxor.u32 %v288, 2147483648
    %v290 = vmul.f32 %v289, 1.442695
    %v291 = vpow.pop %v290
    %v292 = vadd.f32 %v291, 1.0
    %v293 = vrcp.pop %v292
    %v294 = vmul.f32 1.0, %v293
    %v295 = vmul.f32 %v294, 2.0
    %v296 = vsub.f32 %v295, 1.0
    %v297 = vmul.f32 %v294, 0.0
    %299 = vrot.lane.b32.xlu0 %v296, 64
    %v300 = vpop.permute.xlu0 %299
    %v302 = vmul.f32 %v294, %v300
    %304 = vrot.lane.b32.xlu0 %v302, 32
    %v305 = vpop.permute.xlu0 %304
    %v307 = vadd.f32 %v297, %v305
    %v308 = vtanh.pop %v307
    %310 = vrot.lane.b32.xlu0 %v308, 64
    %v311 = vpop.permute.xlu0 %310
    %v313 = vmul.f32 %v294, %v311
    %315 = vrot.lane.b32.xlu0 %v313, 32
    %v316 = vpop.permute.xlu0 %315
    %v317 = vsel %vm214, %v316, 0
    %319 = vmatprep.subr.mxu0 0.0
    %320 = vmatpush1.msra.mxu0 0.0
    %321 = vmatprep.subr.mxu0 0.0
    %322 = vmatpush1.msra.mxu0 0.0
    %323 = vmatprep.subr.mxu0 0.0
    %324 = vmatpush1.msra.mxu0 0.0
    %325 = vmatprep.subr.mxu0 0.0
    %326 = vmatpush1.msra.mxu0 0.0
    %327 = vmatprep.subr.mxu0 0.0
    %328 = vmatpush1.msra.mxu0 0.0
    %329 = vmatprep.subr.mxu0 0.0
    %330 = vmatpush1.msra.mxu0 0.0
    %331 = vmatprep.subr.mxu0 0.0
    %332 = vmatpush1.msra.mxu0 0.0
    %333 = vmatprep.subr.mxu0 0.0
    %334 = vmatpush1.msra.mxu0 0.0
    %335 = vmatprep.subr.mxu0 0.0
    %336 = vmatpush1.msra.mxu0 0.0
    %337 = vmatprep.subr.mxu0 0.0
    %338 = vmatpush1.msra.mxu0 0.0
    %339 = vmatprep.subr.mxu0 0.0
    %340 = vmatpush1.msra.mxu0 0.0
    %341 = vmatprep.subr.mxu0 0.0
    %342 = vmatpush1.msra.mxu0 0.0
    %343 = vmatprep.subr.mxu0 0.0
    %344 = vmatpush1.msra.mxu0 %v203
    %345 = vmatprep.subr.mxu0 0.0
    %346 = vmatpush1.msra.mxu0 %v202
    %347 = vmatprep.subr.mxu0 0.0
    %348 = vmatpush1.msra.mxu0 %v201
    %349 = vmatprep.subr.mxu0 0.0
    %350 = vmatpush1.msra.mxu0 %v200
    %351 = vmatprep.subr.mxu0 0.0
    %352 = vmatpush2.msra.mxu0 0.0
    %353 = vmatprep.subr.mxu0 0.0
    %354 = vmatpush2.msra.mxu0 0.0
    %355 = vmatprep.subr.mxu0 0.0
    %356 = vmatpush2.msra.mxu0 0.0
    %357 = vmatprep.subr.mxu0 0.0
    %358 = vmatpush2.msra.mxu0 0.0
    %359 = vmatprep.subr.mxu0 0.0
    %360 = vmatpush2.msra.mxu0 0.0
    %361 = vmatprep.subr.mxu0 0.0
    %362 = vmatpush2.msra.mxu0 0.0
    %363 = vmatprep.subr.mxu0 0.0
    %364 = vmatpush2.msra.mxu0 0.0
    %365 = vmatprep.subr.mxu0 0.0
    %366 = vmatpush2.msra.mxu0 0.0
    %367 = vmatprep.subr.mxu0 0.0
    %368 = vmatpush2.msra.mxu0 0.0
    %369 = vmatprep.subr.mxu0 0.0
    %370 = vmatpush2.msra.mxu0 0.0
    %371 = vmatprep.subr.mxu0 0.0
    %372 = vmatpush2.msra.mxu0 0.0
    %373 = vmatprep.subr.mxu0 0.0
    %374 = vmatpush2.msra.mxu0 0.0
    %375 = vmatprep.subr.mxu0 0.0
    %376 = vmatpush2.msra.mxu0 0.0
    %377 = vmatprep.subr.mxu0 0.0
    %378 = vmatpush2.msra.mxu0 0.0
    %379 = vmatprep.subr.mxu0 0.0
    %380 = vmatpush2.msra.mxu0 0.0
    %381 = vmatprep.subr.mxu0 0.0
    %382 = vmatpush2.msra.mxu0 0.0
    %383 = vmatprep.mubr.f32.mxu0 0.0
    %384 = vmatmul.mubr.f32.gmra.mxu0 %v317
    %v385 = vpop.f32.mrf.mxu0
    %v386 = vadd.f32 0.0, %v385
    %v387 = vpop.f32.mrf.mxu0
    %388 = vdwg.mxu0
    %389 = vmatprep.subr.mxu0 0.0
    %390 = vmatpush1.msra.mxu0 0.0
    %391 = vmatprep.subr.mxu0 0.0
    %392 = vmatpush1.msra.mxu0 0.0
    %393 = vmatprep.subr.mxu0 0.0
    %394 = vmatpush1.msra.mxu0 0.0
    %395 = vmatprep.subr.mxu0 0.0
    %396 = vmatpush1.msra.mxu0 0.0
    %397 = vmatprep.subr.mxu0 0.0
    %398 = vmatpush1.msra.mxu0 0.0
    %399 = vmatprep.subr.mxu0 0.0
    %400 = vmatpush1.msra.mxu0 0.0
    %401 = vmatprep.subr.mxu0 0.0
    %402 = vmatpush1.msra.mxu0 0.0
    %403 = vmatprep.subr.mxu0 0.0
    %404 = vmatpush1.msra.mxu0 0.0
    %405 = vmatprep.subr.mxu0 0.0
    %406 = vmatpush1.msra.mxu0 0.0
    %407 = vmatprep.subr.mxu0 0.0
    %408 = vmatpush1.msra.mxu0 0.0
    %409 = vmatprep.subr.mxu0 0.0
    %410 = vmatpush1.msra.mxu0 0.0
    %411 = vmatprep.subr.mxu0 0.0
    %412 = vmatpush1.msra.mxu0 0.0
    %413 = vmatprep.subr.mxu0 0.0
    %414 = vmatpush1.msra.mxu0 %v207
    %415 = vmatprep.subr.mxu0 0.0
    %416 = vmatpush1.msra.mxu0 %v206
    %417 = vmatprep.subr.mxu0 0.0
    %418 = vmatpush1.msra.mxu0 %v205
    %419 = vmatprep.subr.mxu0 0.0
    %420 = vmatpush1.msra.mxu0 %v204
    %421 = vmatprep.subr.mxu0 0.0
    %422 = vmatpush2.msra.mxu0 0.0
    %423 = vmatprep.subr.mxu0 0.0
    %424 = vmatpush2.msra.mxu0 0.0
    %425 = vmatprep.subr.mxu0 0.0
    %426 = vmatpush2.msra.mxu0 0.0
    %427 = vmatprep.subr.mxu0 0.0
    %428 = vmatpush2.msra.mxu0 0.0
    %429 = vmatprep.subr.mxu0 0.0
    %430 = vmatpush2.msra.mxu0 0.0
    %431 = vmatprep.subr.mxu0 0.0
    %432 = vmatpush2.msra.mxu0 0.0
    %433 = vmatprep.subr.mxu0 0.0
    %434 = vmatpush2.msra.mxu0 0.0
    %435 = vmatprep.subr.mxu0 0.0
    %436 = vmatpush2.msra.mxu0 0.0
    %437 = vmatprep.subr.mxu0 0.0
    %438 = vmatpush2.msra.mxu0 0.0
    %439 = vmatprep.subr.mxu0 0.0
    %440 = vmatpush2.msra.mxu0 0.0
    %441 = vmatprep.subr.mxu0 0.0
    %442 = vmatpush2.msra.mxu0 0.0
    %443 = vmatprep.subr.mxu0 0.0
    %444 = vmatpush2.msra.mxu0 0.0
    %445 = vmatprep.subr.mxu0 0.0
    %446 = vmatpush2.msra.mxu0 0.0
    %447 = vmatprep.subr.mxu0 0.0
    %448 = vmatpush2.msra.mxu0 0.0
    %449 = vmatprep.subr.mxu0 0.0
    %450 = vmatpush2.msra.mxu0 0.0
    %451 = vmatprep.subr.mxu0 0.0
    %452 = vmatpush2.msra.mxu0 0.0
    %453 = vmatprep.mubr.f32.mxu0 0.0
    %454 = vmatmul.mubr.f32.gmra.mxu0 %v216
    %v455 = vpop.f32.mrf.mxu0
    %v456 = vadd.f32 %v386, %v455
    %v457 = vpop.f32.mrf.mxu0
    %458 = vdwg.mxu0
    %v460 = vlaneseq
    %v461 = vshrl.u32 %v460, 7
    %v462 = vsub.s32 0, %v461
    %v463 = vrot.slane %v208, %v462
    %v465 = vadd.f32 %v456, %v463
    %v466 = vxor.u32 %v465, 2147483648
    %v467 = vmul.f32 %v466, 1.442695
    %v468 = vpow.pop %v467
    %v469 = vadd.f32 %v468, 1.0
    %v470 = vrcp.pop %v469
    %v471 = vmul.f32 1.0, %v470
    %v472 = vmul.f32 %v471, 2.0
    %v473 = vsub.f32 %v472, 1.0
    %v474 = vmul.f32 %v471, 0.0
    %476 = vrot.lane.b32.xlu0 %v473, 64
    %v477 = vpop.permute.xlu0 %476
    %v479 = vmul.f32 %v471, %v477
    %481 = vrot.lane.b32.xlu0 %v479, 32
    %v482 = vpop.permute.xlu0 %481
    %v484 = vadd.f32 %v474, %v482
    %v485 = vtanh.pop %v484
    %487 = vrot.lane.b32.xlu0 %v485, 64
    %v488 = vpop.permute.xlu0 %487
    %v490 = vmul.f32 %v471, %v488
    %v492 = vlaneseq
    %v493 = vshrl.u32 %v492, 7
    %v494 = vsub.s32 0, %v493
    %v495 = vrot.slane %v213, %v494
    %498 = vrot.lane.b32.xlu0 %v490, 32
    %v499 = vpop.permute.xlu0 %498
    %v500 = vsel %vm214, %v499, 0
    %502 = vmatprep.subr.mxu0 0.0
    %503 = vmatpush1.msra.mxu0 0.0
    %504 = vmatprep.subr.mxu0 0.0
    %505 = vmatpush1.msra.mxu0 0.0
    %506 = vmatprep.subr.mxu0 0.0
    %507 = vmatpush1.msra.mxu0 0.0
    %508 = vmatprep.subr.mxu0 0.0
    %509 = vmatpush1.msra.mxu0 0.0
    %510 = vmatprep.subr.mxu0 0.0
    %511 = vmatpush1.msra.mxu0 0.0
    %512 = vmatprep.subr.mxu0 0.0
    %513 = vmatpush1.msra.mxu0 0.0
    %514 = vmatprep.subr.mxu0 0.0
    %515 = vmatpush1.msra.mxu0 0.0
    %516 = vmatprep.subr.mxu0 0.0
    %517 = vmatpush1.msra.mxu0 0.0
    %518 = vmatprep.subr.mxu0 0.0
    %519 = vmatpush1.msra.mxu0 0.0
    %520 = vmatprep.subr.mxu0 0.0
    %521 = vmatpush1.msra.mxu0 0.0
    %522 = vmatprep.subr.mxu0 0.0
    %523 = vmatpush1.msra.mxu0 0.0
    %524 = vmatprep.subr.mxu0 0.0
    %525 = vmatpush1.msra.mxu0 0.0
    %526 = vmatprep.subr.mxu0 0.0
    %527 = vmatpush1.msra.mxu0 %v212
    %528 = vmatprep.subr.mxu0 0.0
    %529 = vmatpush1.msra.mxu0 %v211
    %530 = vmatprep.subr.mxu0 0.0
    %531 = vmatpush1.msra.mxu0 %v210
    %532 = vmatprep.subr.mxu0 0.0
    %533 = vmatpush1.msra.mxu0 %v209
    %534 = vmatprep.subr.mxu0 0.0
    %535 = vmatpush2.msra.mxu0 0.0
    %536 = vmatprep.subr.mxu0 0.0
    %537 = vmatpush2.msra.mxu0 0.0
    %538 = vmatprep.subr.mxu0 0.0
    %539 = vmatpush2.msra.mxu0 0.0
    %540 = vmatprep.subr.mxu0 0.0
    %541 = vmatpush2.msra.mxu0 0.0
    %542 = vmatprep.subr.mxu0 0.0
    %543 = vmatpush2.msra.mxu0 0.0
    %544 = vmatprep.subr.mxu0 0.0
    %545 = vmatpush2.msra.mxu0 0.0
    %546 = vmatprep.subr.mxu0 0.0
    %547 = vmatpush2.msra.mxu0 0.0
    %548 = vmatprep.subr.mxu0 0.0
    %549 = vmatpush2.msra.mxu0 0.0
    %550 = vmatprep.subr.mxu0 0.0
    %551 = vmatpush2.msra.mxu0 0.0
    %552 = vmatprep.subr.mxu0 0.0
    %553 = vmatpush2.msra.mxu0 0.0
    %554 = vmatprep.subr.mxu0 0.0
    %555 = vmatpush2.msra.mxu0 0.0
    %556 = vmatprep.subr.mxu0 0.0
    %557 = vmatpush2.msra.mxu0 0.0
    %558 = vmatprep.subr.mxu0 0.0
    %559 = vmatpush2.msra.mxu0 0.0
    %560 = vmatprep.subr.mxu0 0.0
    %561 = vmatpush2.msra.mxu0 0.0
    %562 = vmatprep.subr.mxu0 0.0
    %563 = vmatpush2.msra.mxu0 0.0
    %564 = vmatprep.subr.mxu0 0.0
    %565 = vmatpush2.msra.mxu0 0.0
    %566 = vmatprep.mubr.f32.mxu0 0.0
    %567 = vmatmul.mubr.f32.gmra.mxu0 %v500
    %v568 = vpop.f32.mrf.mxu0
    %v569 = vadd.f32 %v495, %v568
    %v570 = vpop.f32.mrf.mxu0
    %571 = vdwg.mxu0
    %572 = vst [vmem:[%s9] sm:$0xff] %v569
    %573 = vmatprep.subr.mxu0 0.0
    %574 = vmatpush1.msra.mxu0 0.0
    %575 = vmatprep.subr.mxu0 0.0
    %576 = vmatpush1.msra.mxu0 0.0
    %577 = vmatprep.subr.mxu0 0.0
    %578 = vmatpush1.msra.mxu0 0.0
    %579 = vmatprep.subr.mxu0 0.0
    %580 = vmatpush1.msra.mxu0 0.0
    %581 = vmatprep.subr.mxu0 0.0
    %582 = vmatpush1.msra.mxu0 0.0
    %583 = vmatprep.subr.mxu0 0.0
    %584 = vmatpush1.msra.mxu0 0.0
    %585 = vmatprep.subr.mxu0 0.0
    %586 = vmatpush1.msra.mxu0 0.0
    %587 = vmatprep.subr.mxu0 0.0
    %588 = vmatpush1.msra.mxu0 0.0
    %589 = vmatprep.subr.mxu0 0.0
    %590 = vmatpush1.msra.mxu0 0.0
    %591 = vmatprep.subr.mxu0 0.0
    %592 = vmatpush1.msra.mxu0 0.0
    %593 = vmatprep.subr.mxu0 0.0
    %594 = vmatpush1.msra.mxu0 0.0
    %595 = vmatprep.subr.mxu0 0.0
    %596 = vmatpush1.msra.mxu0 0.0
    %597 = vmatprep.subr.mxu0 0.0
    %598 = vmatpush1.msra.mxu0 %v199
    %599 = vmatprep.subr.mxu0 0.0
    %600 = vmatpush1.msra.mxu0 %v198
    %601 = vmatprep.subr.mxu0 0.0
    %602 = vmatpush1.msra.mxu0 %v197
    %603 = vmatprep.subr.mxu0 0.0
    %604 = vmatpush1.msra.mxu0 %v196
    %605 = vmatprep.subr.mxu0 0.0
    %606 = vmatpush2.msra.mxu0 0.0
    %607 = vmatprep.subr.mxu0 0.0
    %608 = vmatpush2.msra.mxu0 0.0
    %609 = vmatprep.subr.mxu0 0.0
    %610 = vmatpush2.msra.mxu0 0.0
    %611 = vmatprep.subr.mxu0 0.0
    %612 = vmatpush2.msra.mxu0 0.0
    %613 = vmatprep.subr.mxu0 0.0
    %614 = vmatpush2.msra.mxu0 0.0
    %615 = vmatprep.subr.mxu0 0.0
    %616 = vmatpush2.msra.mxu0 0.0
    %617 = vmatprep.subr.mxu0 0.0
    %618 = vmatpush2.msra.mxu0 0.0
    %619 = vmatprep.subr.mxu0 0.0
    %620 = vmatpush2.msra.mxu0 0.0
    %621 = vmatprep.subr.mxu0 0.0
    %622 = vmatpush2.msra.mxu0 0.0
    %623 = vmatprep.subr.mxu0 0.0
    %624 = vmatpush2.msra.mxu0 0.0
    %625 = vmatprep.subr.mxu0 0.0
    %626 = vmatpush2.msra.mxu0 0.0
    %627 = vmatprep.subr.mxu0 0.0
    %628 = vmatpush2.msra.mxu0 0.0
    %629 = vmatprep.subr.mxu0 0.0
    %630 = vmatpush2.msra.mxu0 0.0
    %631 = vmatprep.subr.mxu0 0.0
    %632 = vmatpush2.msra.mxu0 0.0
    %633 = vmatprep.subr.mxu0 0.0
    %634 = vmatpush2.msra.mxu0 0.0
    %635 = vmatprep.subr.mxu0 0.0
    %636 = vmatpush2.msra.mxu0 0.0
    %637 = vmatprep.mubr.f32.mxu0 0.0
    %638 = vmatmul.mubr.f32.gmra.mxu0 %v317
    %v639 = vpop.f32.mrf.mxu0
    %v640 = vadd.f32 0.0, %v639
    %v641 = vpop.f32.mrf.mxu0
    %642 = vdwg.mxu0
    %v643 = vadd.f32 %v193, %v640
    %v644 = vxor.u32 %v643, 2147483648
    %v645 = vmul.f32 %v644, 1.442695
    %v646 = vpow.pop %v645
    %v647 = vadd.f32 %v646, 1.0
    %v648 = vrcp.pop %v647
    %v649 = vmul.f32 1.0, %v648
    %v650 = vmul.f32 %v649, 2.0
    %v651 = vsub.f32 %v650, 1.0
    %v652 = vmul.f32 %v649, %v307
    %654 = vrot.lane.b32.xlu0 %v651, 64
    %v655 = vpop.permute.xlu0 %654
    %v657 = vmul.f32 %v649, %v655
    %659 = vrot.lane.b32.xlu0 %v657, 32
    %v660 = vpop.permute.xlu0 %659
    %v662 = vadd.f32 %v652, %v660
    %v663 = vtanh.pop %v662
    %665 = vrot.lane.b32.xlu0 %v663, 64
    %v666 = vpop.permute.xlu0 %665
    %v668 = vmul.f32 %v649, %v666
    %670 = vrot.lane.b32.xlu0 %v668, 32
    %v671 = vpop.permute.xlu0 %670
    %v672 = vsel %vm214, %v671, 0
    %674 = vmatprep.subr.mxu0 0.0
    %675 = vmatpush1.msra.mxu0 0.0
    %676 = vmatprep.subr.mxu0 0.0
    %677 = vmatpush1.msra.mxu0 0.0
    %678 = vmatprep.subr.mxu0 0.0
    %679 = vmatpush1.msra.mxu0 0.0
    %680 = vmatprep.subr.mxu0 0.0
    %681 = vmatpush1.msra.mxu0 0.0
    %682 = vmatprep.subr.mxu0 0.0
    %683 = vmatpush1.msra.mxu0 0.0
    %684 = vmatprep.subr.mxu0 0.0
    %685 = vmatpush1.msra.mxu0 0.0
    %686 = vmatprep.subr.mxu0 0.0
    %687 = vmatpush1.msra.mxu0 0.0
    %688 = vmatprep.subr.mxu0 0.0
    %689 = vmatpush1.msra.mxu0 0.0
    %690 = vmatprep.subr.mxu0 0.0
    %691 = vmatpush1.msra.mxu0 0.0
    %692 = vmatprep.subr.mxu0 0.0
    %693 = vmatpush1.msra.mxu0 0.0
    %694 = vmatprep.subr.mxu0 0.0
    %695 = vmatpush1.msra.mxu0 0.0
    %696 = vmatprep.subr.mxu0 0.0
    %697 = vmatpush1.msra.mxu0 0.0
    %698 = vmatprep.subr.mxu0 0.0
    %699 = vmatpush1.msra.mxu0 %v203
    %700 = vmatprep.subr.mxu0 0.0
    %701 = vmatpush1.msra.mxu0 %v202
    %702 = vmatprep.subr.mxu0 0.0
    %703 = vmatpush1.msra.mxu0 %v201
    %704 = vmatprep.subr.mxu0 0.0
    %705 = vmatpush1.msra.mxu0 %v200
    %706 = vmatprep.subr.mxu0 0.0
    %707 = vmatpush2.msra.mxu0 0.0
    %708 = vmatprep.subr.mxu0 0.0
    %709 = vmatpush2.msra.mxu0 0.0
    %710 = vmatprep.subr.mxu0 0.0
    %711 = vmatpush2.msra.mxu0 0.0
    %712 = vmatprep.subr.mxu0 0.0
    %713 = vmatpush2.msra.mxu0 0.0
    %714 = vmatprep.subr.mxu0 0.0
    %715 = vmatpush2.msra.mxu0 0.0
    %716 = vmatprep.subr.mxu0 0.0
    %717 = vmatpush2.msra.mxu0 0.0
    %718 = vmatprep.subr.mxu0 0.0
    %719 = vmatpush2.msra.mxu0 0.0
    %720 = vmatprep.subr.mxu0 0.0
    %721 = vmatpush2.msra.mxu0 0.0
    %722 = vmatprep.subr.mxu0 0.0
    %723 = vmatpush2.msra.mxu0 0.0
    %724 = vmatprep.subr.mxu0 0.0
    %725 = vmatpush2.msra.mxu0 0.0
    %726 = vmatprep.subr.mxu0 0.0
    %727 = vmatpush2.msra.mxu0 0.0
    %728 = vmatprep.subr.mxu0 0.0
    %729 = vmatpush2.msra.mxu0 0.0
    %730 = vmatprep.subr.mxu0 0.0
    %731 = vmatpush2.msra.mxu0 0.0
    %732 = vmatprep.subr.mxu0 0.0
    %733 = vmatpush2.msra.mxu0 0.0
    %734 = vmatprep.subr.mxu0 0.0
    %735 = vmatpush2.msra.mxu0 0.0
    %736 = vmatprep.subr.mxu0 0.0
    %737 = vmatpush2.msra.mxu0 0.0
    %738 = vmatprep.mubr.f32.mxu0 0.0
    %739 = vmatmul.mubr.f32.gmra.mxu0 %v672
    %v740 = vpop.f32.mrf.mxu0
    %v741 = vadd.f32 0.0, %v740
    %v742 = vpop.f32.mrf.mxu0
    %743 = vdwg.mxu0
    %744 = vmatprep.subr.mxu0 0.0
    %745 = vmatpush1.msra.mxu0 0.0
    %746 = vmatprep.subr.mxu0 0.0
    %747 = vmatpush1.msra.mxu0 0.0
    %748 = vmatprep.subr.mxu0 0.0
    %749 = vmatpush1.msra.mxu0 0.0
    %750 = vmatprep.subr.mxu0 0.0
    %751 = vmatpush1.msra.mxu0 0.0
    %752 = vmatprep.subr.mxu0 0.0
    %753 = vmatpush1.msra.mxu0 0.0
    %754 = vmatprep.subr.mxu0 0.0
    %755 = vmatpush1.msra.mxu0 0.0
    %756 = vmatprep.subr.mxu0 0.0
    %757 = vmatpush1.msra.mxu0 0.0
    %758 = vmatprep.subr.mxu0 0.0
    %759 = vmatpush1.msra.mxu0 0.0
    %760 = vmatprep.subr.mxu0 0.0
    %761 = vmatpush1.msra.mxu0 0.0
    %762 = vmatprep.subr.mxu0 0.0
    %763 = vmatpush1.msra.mxu0 0.0
    %764 = vmatprep.subr.mxu0 0.0
    %765 = vmatpush1.msra.mxu0 0.0
    %766 = vmatprep.subr.mxu0 0.0
    %767 = vmatpush1.msra.mxu0 0.0
    %768 = vmatprep.subr.mxu0 0.0
    %769 = vmatpush1.msra.mxu0 %v207
    %770 = vmatprep.subr.mxu0 0.0
    %771 = vmatpush1.msra.mxu0 %v206
    %772 = vmatprep.subr.mxu0 0.0
    %773 = vmatpush1.msra.mxu0 %v205
    %774 = vmatprep.subr.mxu0 0.0
    %775 = vmatpush1.msra.mxu0 %v204
    %776 = vmatprep.subr.mxu0 0.0
    %777 = vmatpush2.msra.mxu0 0.0
    %778 = vmatprep.subr.mxu0 0.0
    %779 = vmatpush2.msra.mxu0 0.0
    %780 = vmatprep.subr.mxu0 0.0
    %781 = vmatpush2.msra.mxu0 0.0
    %782 = vmatprep.subr.mxu0 0.0
    %783 = vmatpush2.msra.mxu0 0.0
    %784 = vmatprep.subr.mxu0 0.0
    %785 = vmatpush2.msra.mxu0 0.0
    %786 = vmatprep.subr.mxu0 0.0
    %787 = vmatpush2.msra.mxu0 0.0
    %788 = vmatprep.subr.mxu0 0.0
    %789 = vmatpush2.msra.mxu0 0.0
    %790 = vmatprep.subr.mxu0 0.0
    %791 = vmatpush2.msra.mxu0 0.0
    %792 = vmatprep.subr.mxu0 0.0
    %793 = vmatpush2.msra.mxu0 0.0
    %794 = vmatprep.subr.mxu0 0.0
    %795 = vmatpush2.msra.mxu0 0.0
    %796 = vmatprep.subr.mxu0 0.0
    %797 = vmatpush2.msra.mxu0 0.0
    %798 = vmatprep.subr.mxu0 0.0
    %799 = vmatpush2.msra.mxu0 0.0
    %800 = vmatprep.subr.mxu0 0.0
    %801 = vmatpush2.msra.mxu0 0.0
    %802 = vmatprep.subr.mxu0 0.0
    %803 = vmatpush2.msra.mxu0 0.0
    %804 = vmatprep.subr.mxu0 0.0
    %805 = vmatpush2.msra.mxu0 0.0
    %806 = vmatprep.subr.mxu0 0.0
    %807 = vmatpush2.msra.mxu0 0.0
    %808 = vmatprep.mubr.f32.mxu0 0.0
    %809 = vmatmul.mubr.f32.gmra.mxu0 %v500
    %v810 = vpop.f32.mrf.mxu0
    %v811 = vadd.f32 %v741, %v810
    %v812 = vpop.f32.mrf.mxu0
    %813 = vdwg.mxu0
    %v814 = vadd.f32 %v811, %v463
    %v815 = vxor.u32 %v814, 2147483648
    %v816 = vmul.f32 %v815, 1.442695
    %v817 = vpow.pop %v816
    %v818 = vadd.f32 %v817, 1.0
    %v819 = vrcp.pop %v818
    %v820 = vmul.f32 1.0, %v819
    %v821 = vmul.f32 %v820, 2.0
    %v822 = vsub.f32 %v821, 1.0
    %v823 = vmul.f32 %v820, %v484
    %825 = vrot.lane.b32.xlu0 %v822, 64
    %v826 = vpop.permute.xlu0 %825
    %v828 = vmul.f32 %v820, %v826
    %830 = vrot.lane.b32.xlu0 %v828, 32
    %v831 = vpop.permute.xlu0 %830
    %v833 = vadd.f32 %v823, %v831
    %v834 = vtanh.pop %v833
    %836 = vrot.lane.b32.xlu0 %v834, 64
    %v837 = vpop.permute.xlu0 %836
    %v839 = vmul.f32 %v820, %v837
    %841 = vrot.lane.b32.xlu0 %v839, 32
    %v842 = vpop.permute.xlu0 %841
    %v843 = vsel %vm214, %v842, 0
    %845 = vmatprep.subr.mxu0 0.0
    %846 = vmatpush1.msra.mxu0 0.0
    %847 = vmatprep.subr.mxu0 0.0
    %848 = vmatpush1.msra.mxu0 0.0
    %849 = vmatprep.subr.mxu0 0.0
    %850 = vmatpush1.msra.mxu0 0.0
    %851 = vmatprep.subr.mxu0 0.0
    %852 = vmatpush1.msra.mxu0 0.0
    %853 = vmatprep.subr.mxu0 0.0
    %854 = vmatpush1.msra.mxu0 0.0
    %855 = vmatprep.subr.mxu0 0.0
    %856 = vmatpush1.msra.mxu0 0.0
    %857 = vmatprep.subr.mxu0 0.0
    %858 = vmatpush1.msra.mxu0 0.0
    %859 = vmatprep.subr.mxu0 0.0
    %860 = vmatpush1.msra.mxu0 0.0
    %861 = vmatprep.subr.mxu0 0.0
    %862 = vmatpush1.msra.mxu0 0.0
    %863 = vmatprep.subr.mxu0 0.0
    %864 = vmatpush1.msra.mxu0 0.0
    %865 = vmatprep.subr.mxu0 0.0
    %866 = vmatpush1.msra.mxu0 0.0
    %867 = vmatprep.subr.mxu0 0.0
    %868 = vmatpush1.msra.mxu0 0.0
    %869 = vmatprep.subr.mxu0 0.0
    %870 = vmatpush1.msra.mxu0 %v212
    %871 = vmatprep.subr.mxu0 0.0
    %872 = vmatpush1.msra.mxu0 %v211
    %873 = vmatprep.subr.mxu0 0.0
    %874 = vmatpush1.msra.mxu0 %v210
    %875 = vmatprep.subr.mxu0 0.0
    %876 = vmatpush1.msra.mxu0 %v209
    %877 = vmatprep.subr.mxu0 0.0
    %878 = vmatpush2.msra.mxu0 0.0
    %879 = vmatprep.subr.mxu0 0.0
    %880 = vmatpush2.msra.mxu0 0.0
    %881 = vmatprep.subr.mxu0 0.0
    %882 = vmatpush2.msra.mxu0 0.0
    %883 = vmatprep.subr.mxu0 0.0
    %884 = vmatpush2.msra.mxu0 0.0
    %885 = vmatprep.subr.mxu0 0.0
    %886 = vmatpush2.msra.mxu0 0.0
    %887 = vmatprep.subr.mxu0 0.0
    %888 = vmatpush2.msra.mxu0 0.0
    %889 = vmatprep.subr.mxu0 0.0
    %890 = vmatpush2.msra.mxu0 0.0
    %891 = vmatprep.subr.mxu0 0.0
    %892 = vmatpush2.msra.mxu0 0.0
    %893 = vmatprep.subr.mxu0 0.0
    %894 = vmatpush2.msra.mxu0 0.0
    %895 = vmatprep.subr.mxu0 0.0
    %896 = vmatpush2.msra.mxu0 0.0
    %897 = vmatprep.subr.mxu0 0.0
    %898 = vmatpush2.msra.mxu0 0.0
    %899 = vmatprep.subr.mxu0 0.0
    %900 = vmatpush2.msra.mxu0 0.0
    %901 = vmatprep.subr.mxu0 0.0
    %902 = vmatpush2.msra.mxu0 0.0
    %903 = vmatprep.subr.mxu0 0.0
    %904 = vmatpush2.msra.mxu0 0.0
    %905 = vmatprep.subr.mxu0 0.0
    %906 = vmatpush2.msra.mxu0 0.0
    %907 = vmatprep.subr.mxu0 0.0
    %908 = vmatpush2.msra.mxu0 0.0
    %909 = vmatprep.mubr.f32.mxu0 0.0
    %910 = vmatmul.mubr.f32.gmra.mxu0 %v843
    %v911 = vpop.f32.mrf.mxu0
    %v912 = vadd.f32 %v495, %v911
    %v913 = vpop.f32.mrf.mxu0
    %914 = vdwg.mxu0
    %915 = vst [vmem:[%s9 + $0x8] sm:$0xff] %v912
    %916 = vmatprep.subr.mxu0 0.0
    %917 = vmatpush1.msra.mxu0 0.0
    %918 = vmatprep.subr.mxu0 0.0
    %919 = vmatpush1.msra.mxu0 0.0
    %920 = vmatprep.subr.mxu0 0.0
    %921 = vmatpush1.msra.mxu0 0.0
    %922 = vmatprep.subr.mxu0 0.0
    %923 = vmatpush1.msra.mxu0 0.0
    %924 = vmatprep.subr.mxu0 0.0
    %925 = vmatpush1.msra.mxu0 0.0
    %926 = vmatprep.subr.mxu0 0.0
    %927 = vmatpush1.msra.mxu0 0.0
    %928 = vmatprep.subr.mxu0 0.0
    %929 = vmatpush1.msra.mxu0 0.0
    %930 = vmatprep.subr.mxu0 0.0
    %931 = vmatpush1.msra.mxu0 0.0
    %932 = vmatprep.subr.mxu0 0.0
    %933 = vmatpush1.msra.mxu0 0.0
    %934 = vmatprep.subr.mxu0 0.0
    %935 = vmatpush1.msra.mxu0 0.0
    %936 = vmatprep.subr.mxu0 0.0
    %937 = vmatpush1.msra.mxu0 0.0
    %938 = vmatprep.subr.mxu0 0.0
    %939 = vmatpush1.msra.mxu0 0.0
    %940 = vmatprep.subr.mxu0 0.0
    %941 = vmatpush1.msra.mxu0 %v199
    %942 = vmatprep.subr.mxu0 0.0
    %943 = vmatpush1.msra.mxu0 %v198
    %944 = vmatprep.subr.mxu0 0.0
    %945 = vmatpush1.msra.mxu0 %v197
    %946 = vmatprep.subr.mxu0 0.0
    %947 = vmatpush1.msra.mxu0 %v196
    %948 = vmatprep.subr.mxu0 0.0
    %949 = vmatpush2.msra.mxu0 0.0
    %950 = vmatprep.subr.mxu0 0.0
    %951 = vmatpush2.msra.mxu0 0.0
    %952 = vmatprep.subr.mxu0 0.0
    %953 = vmatpush2.msra.mxu0 0.0
    %954 = vmatprep.subr.mxu0 0.0
    %955 = vmatpush2.msra.mxu0 0.0
    %956 = vmatprep.subr.mxu0 0.0
    %957 = vmatpush2.msra.mxu0 0.0
    %958 = vmatprep.subr.mxu0 0.0
    %959 = vmatpush2.msra.mxu0 0.0
    %960 = vmatprep.subr.mxu0 0.0
    %961 = vmatpush2.msra.mxu0 0.0
    %962 = vmatprep.subr.mxu0 0.0
    %963 = vmatpush2.msra.mxu0 0.0
    %964 = vmatprep.subr.mxu0 0.0
    %965 = vmatpush2.msra.mxu0 0.0
    %966 = vmatprep.subr.mxu0 0.0
    %967 = vmatpush2.msra.mxu0 0.0
    %968 = vmatprep.subr.mxu0 0.0
    %969 = vmatpush2.msra.mxu0 0.0
    %970 = vmatprep.subr.mxu0 0.0
    %971 = vmatpush2.msra.mxu0 0.0
    %972 = vmatprep.subr.mxu0 0.0
    %973 = vmatpush2.msra.mxu0 0.0
    %974 = vmatprep.subr.mxu0 0.0
    %975 = vmatpush2.msra.mxu0 0.0
    %976 = vmatprep.subr.mxu0 0.0
    %977 = vmatpush2.msra.mxu0 0.0
    %978 = vmatprep.subr.mxu0 0.0
    %979 = vmatpush2.msra.mxu0 0.0
    %980 = vmatprep.mubr.f32.mxu0 0.0
    %981 = vmatmul.mubr.f32.gmra.mxu0 %v672
    %v982 = vpop.f32.mrf.mxu0
    %v983 = vadd.f32 0.0, %v982
    %v984 = vpop.f32.mrf.mxu0
    %985 = vdwg.mxu0
    %v986 = vadd.f32 %v193, %v983
    %v987 = vxor.u32 %v986, 2147483648
    %v988 = vmul.f32 %v987, 1.442695
    %v989 = vpow.pop %v988
    %v990 = vadd.f32 %v989, 1.0
    %v991 = vrcp.pop %v990
    %v992 = vmul.f32 1.0, %v991
    %v993 = vmul.f32 %v992, 2.0
    %v994 = vsub.f32 %v993, 1.0
    %v995 = vmul.f32 %v992, %v662
    %997 = vrot.lane.b32.xlu0 %v994, 64
    %v998 = vpop.permute.xlu0 %997
    %v1000 = vmul.f32 %v992, %v998
    %1002 = vrot.lane.b32.xlu0 %v1000, 32
    %v1003 = vpop.permute.xlu0 %1002
    %v1005 = vadd.f32 %v995, %v1003
    %v1006 = vtanh.pop %v1005
    %1008 = vrot.lane.b32.xlu0 %v1006, 64
    %v1009 = vpop.permute.xlu0 %1008
    %v1011 = vmul.f32 %v992, %v1009
    %1013 = vrot.lane.b32.xlu0 %v1011, 32
    %v1014 = vpop.permute.xlu0 %1013
    %v1015 = vsel %vm214, %v1014, 0
    %1017 = vmatprep.subr.mxu0 0.0
    %1018 = vmatpush1.msra.mxu0 0.0
    %1019 = vmatprep.subr.mxu0 0.0
    %1020 = vmatpush1.msra.mxu0 0.0
    %1021 = vmatprep.subr.mxu0 0.0
    %1022 = vmatpush1.msra.mxu0 0.0
    %1023 = vmatprep.subr.mxu0 0.0
    %1024 = vmatpush1.msra.mxu0 0.0
    %1025 = vmatprep.subr.mxu0 0.0
    %1026 = vmatpush1.msra.mxu0 0.0
    %1027 = vmatprep.subr.mxu0 0.0
    %1028 = vmatpush1.msra.mxu0 0.0
    %1029 = vmatprep.subr.mxu0 0.0
    %1030 = vmatpush1.msra.mxu0 0.0
    %1031 = vmatprep.subr.mxu0 0.0
    %1032 = vmatpush1.msra.mxu0 0.0
    %1033 = vmatprep.subr.mxu0 0.0
    %1034 = vmatpush1.msra.mxu0 0.0
    %1035 = vmatprep.subr.mxu0 0.0
    %1036 = vmatpush1.msra.mxu0 0.0
    %1037 = vmatprep.subr.mxu0 0.0
    %1038 = vmatpush1.msra.mxu0 0.0
    %1039 = vmatprep.subr.mxu0 0.0
    %1040 = vmatpush1.msra.mxu0 0.0
    %1041 = vmatprep.subr.mxu0 0.0
    %1042 = vmatpush1.msra.mxu0 %v203
    %1043 = vmatprep.subr.mxu0 0.0
    %1044 = vmatpush1.msra.mxu0 %v202
    %1045 = vmatprep.subr.mxu0 0.0
    %1046 = vmatpush1.msra.mxu0 %v201
    %1047 = vmatprep.subr.mxu0 0.0
    %1048 = vmatpush1.msra.mxu0 %v200
    %1049 = vmatprep.subr.mxu0 0.0
    %1050 = vmatpush2.msra.mxu0 0.0
    %1051 = vmatprep.subr.mxu0 0.0
    %1052 = vmatpush2.msra.mxu0 0.0
    %1053 = vmatprep.subr.mxu0 0.0
    %1054 = vmatpush2.msra.mxu0 0.0
    %1055 = vmatprep.subr.mxu0 0.0
    %1056 = vmatpush2.msra.mxu0 0.0
    %1057 = vmatprep.subr.mxu0 0.0
    %1058 = vmatpush2.msra.mxu0 0.0
    %1059 = vmatprep.subr.mxu0 0.0
    %1060 = vmatpush2.msra.mxu0 0.0
    %1061 = vmatprep.subr.mxu0 0.0
    %1062 = vmatpush2.msra.mxu0 0.0
    %1063 = vmatprep.subr.mxu0 0.0
    %1064 = vmatpush2.msra.mxu0 0.0
    %1065 = vmatprep.subr.mxu0 0.0
    %1066 = vmatpush2.msra.mxu0 0.0
    %1067 = vmatprep.subr.mxu0 0.0
    %1068 = vmatpush2.msra.mxu0 0.0
    %1069 = vmatprep.subr.mxu0 0.0
    %1070 = vmatpush2.msra.mxu0 0.0
    %1071 = vmatprep.subr.mxu0 0.0
    %1072 = vmatpush2.msra.mxu0 0.0
    %1073 = vmatprep.subr.mxu0 0.0
    %1074 = vmatpush2.msra.mxu0 0.0
    %1075 = vmatprep.subr.mxu0 0.0
    %1076 = vmatpush2.msra.mxu0 0.0
    %1077 = vmatprep.subr.mxu0 0.0
    %1078 = vmatpush2.msra.mxu0 0.0
    %1079 = vmatprep.subr.mxu0 0.0
    %1080 = vmatpush2.msra.mxu0 0.0
    %1081 = vmatprep.mubr.f32.mxu0 0.0
    %1082 = vmatmul.mubr.f32.gmra.mxu0 %v1015
    %v1083 = vpop.f32.mrf.mxu0
    %v1084 = vadd.f32 0.0, %v1083
    %v1085 = vpop.f32.mrf.mxu0
    %1086 = vdwg.mxu0
    %1087 = vmatprep.subr.mxu0 0.0
    %1088 = vmatpush1.msra.mxu0 0.0
    %1089 = vmatprep.subr.mxu0 0.0
    %1090 = vmatpush1.msra.mxu0 0.0
    %1091 = vmatprep.subr.mxu0 0.0
    %1092 = vmatpush1.msra.mxu0 0.0
    %1093 = vmatprep.subr.mxu0 0.0
    %1094 = vmatpush1.msra.mxu0 0.0
    %1095 = vmatprep.subr.mxu0 0.0
    %1096 = vmatpush1.msra.mxu0 0.0
    %1097 = vmatprep.subr.mxu0 0.0
    %1098 = vmatpush1.msra.mxu0 0.0
    %1099 = vmatprep.subr.mxu0 0.0
    %1100 = vmatpush1.msra.mxu0 0.0
    %1101 = vmatprep.subr.mxu0 0.0
    %1102 = vmatpush1.msra.mxu0 0.0
    %1103 = vmatprep.subr.mxu0 0.0
    %1104 = vmatpush1.msra.mxu0 0.0
    %1105 = vmatprep.subr.mxu0 0.0
    %1106 = vmatpush1.msra.mxu0 0.0
    %1107 = vmatprep.subr.mxu0 0.0
    %1108 = vmatpush1.msra.mxu0 0.0
    %1109 = vmatprep.subr.mxu0 0.0
    %1110 = vmatpush1.msra.mxu0 0.0
    %1111 = vmatprep.subr.mxu0 0.0
    %1112 = vmatpush1.msra.mxu0 %v207
    %1113 = vmatprep.subr.mxu0 0.0
    %1114 = vmatpush1.msra.mxu0 %v206
    %1115 = vmatprep.subr.mxu0 0.0
    %1116 = vmatpush1.msra.mxu0 %v205
    %1117 = vmatprep.subr.mxu0 0.0
    %1118 = vmatpush1.msra.mxu0 %v204
    %1119 = vmatprep.subr.mxu0 0.0
    %1120 = vmatpush2.msra.mxu0 0.0
    %1121 = vmatprep.subr.mxu0 0.0
    %1122 = vmatpush2.msra.mxu0 0.0
    %1123 = vmatprep.subr.mxu0 0.0
    %1124 = vmatpush2.msra.mxu0 0.0
    %1125 = vmatprep.subr.mxu0 0.0
    %1126 = vmatpush2.msra.mxu0 0.0
    %1127 = vmatprep.subr.mxu0 0.0
    %1128 = vmatpush2.msra.mxu0 0.0
    %1129 = vmatprep.subr.mxu0 0.0
    %1130 = vmatpush2.msra.mxu0 0.0
    %1131 = vmatprep.subr.mxu0 0.0
    %1132 = vmatpush2.msra.mxu0 0.0
    %1133 = vmatprep.subr.mxu0 0.0
    %1134 = vmatpush2.msra.mxu0 0.0
    %1135 = vmatprep.subr.mxu0 0.0
    %1136 = vmatpush2.msra.mxu0 0.0
    %1137 = vmatprep.subr.mxu0 0.0
    %1138 = vmatpush2.msra.mxu0 0.0
    %1139 = vmatprep.subr.mxu0 0.0
    %1140 = vmatpush2.msra.mxu0 0.0
    %1141 = vmatprep.subr.mxu0 0.0
    %1142 = vmatpush2.msra.mxu0 0.0
    %1143 = vmatprep.subr.mxu0 0.0
    %1144 = vmatpush2.msra.mxu0 0.0
    %1145 = vmatprep.subr.mxu0 0.0
    %1146 = vmatpush2.msra.mxu0 0.0
    %1147 = vmatprep.subr.mxu0 0.0
    %1148 = vmatpush2.msra.mxu0 0.0
    %1149 = vmatprep.subr.mxu0 0.0
    %1150 = vmatpush2.msra.mxu0 0.0
    %1151 = vmatprep.mubr.f32.mxu0 0.0
    %1152 = vmatmul.mubr.f32.gmra.mxu0 %v843
    %v1153 = vpop.f32.mrf.mxu0
    %v1154 = vadd.f32 %v1084, %v1153
    %v1155 = vpop.f32.mrf.mxu0
    %1156 = vdwg.mxu0
    %v1157 = vadd.f32 %v1154, %v463
    %v1158 = vxor.u32 %v1157, 2147483648
    %v1159 = vmul.f32 %v1158, 1.442695
    %v1160 = vpow.pop %v1159
    %v1161 = vadd.f32 %v1160, 1.0
    %v1162 = vrcp.pop %v1161
    %v1163 = vmul.f32 1.0, %v1162
    %v1164 = vmul.f32 %v1163, 2.0
    %v1165 = vsub.f32 %v1164, 1.0
    %v1166 = vmul.f32 %v1163, %v833
    %1168 = vrot.lane.b32.xlu0 %v1165, 64
    %v1169 = vpop.permute.xlu0 %1168
    %v1171 = vmul.f32 %v1163, %v1169
    %1173 = vrot.lane.b32.xlu0 %v1171, 32
    %v1174 = vpop.permute.xlu0 %1173
    %v1176 = vadd.f32 %v1166, %v1174
    %v1177 = vtanh.pop %v1176
    %1179 = vrot.lane.b32.xlu0 %v1177, 64
    %v1180 = vpop.permute.xlu0 %1179
    %v1182 = vmul.f32 %v1163, %v1180
    %1184 = vrot.lane.b32.xlu0 %v1182, 32
    %v1185 = vpop.permute.xlu0 %1184
    %v1186 = vsel %vm214, %v1185, 0
    %1188 = vmatprep.subr.mxu0 0.0
    %1189 = vmatpush1.msra.mxu0 0.0
    %1190 = vmatprep.subr.mxu0 0.0
    %1191 = vmatpush1.msra.mxu0 0.0
    %1192 = vmatprep.subr.mxu0 0.0
    %1193 = vmatpush1.msra.mxu0 0.0
    %1194 = vmatprep.subr.mxu0 0.0
    %1195 = vmatpush1.msra.mxu0 0.0
    %1196 = vmatprep.subr.mxu0 0.0
    %1197 = vmatpush1.msra.mxu0 0.0
    %1198 = vmatprep.subr.mxu0 0.0
    %1199 = vmatpush1.msra.mxu0 0.0
    %1200 = vmatprep.subr.mxu0 0.0
    %1201 = vmatpush1.msra.mxu0 0.0
    %1202 = vmatprep.subr.mxu0 0.0
    %1203 = vmatpush1.msra.mxu0 0.0
    %1204 = vmatprep.subr.mxu0 0.0
    %1205 = vmatpush1.msra.mxu0 0.0
    %1206 = vmatprep.subr.mxu0 0.0
    %1207 = vmatpush1.msra.mxu0 0.0
    %1208 = vmatprep.subr.mxu0 0.0
    %1209 = vmatpush1.msra.mxu0 0.0
    %1210 = vmatprep.subr.mxu0 0.0
    %1211 = vmatpush1.msra.mxu0 0.0
    %1212 = vmatprep.subr.mxu0 0.0
    %1213 = vmatpush1.msra.mxu0 %v212
    %1214 = vmatprep.subr.mxu0 0.0
    %1215 = vmatpush1.msra.mxu0 %v211
    %1216 = vmatprep.subr.mxu0 0.0
    %1217 = vmatpush1.msra.mxu0 %v210
    %1218 = vmatprep.subr.mxu0 0.0
    %1219 = vmatpush1.msra.mxu0 %v209
    %1220 = vmatprep.subr.mxu0 0.0
    %1221 = vmatpush2.msra.mxu0 0.0
    %1222 = vmatprep.subr.mxu0 0.0
    %1223 = vmatpush2.msra.mxu0 0.0
    %1224 = vmatprep.subr.mxu0 0.0
    %1225 = vmatpush2.msra.mxu0 0.0
    %1226 = vmatprep.subr.mxu0 0.0
    %1227 = vmatpush2.msra.mxu0 0.0
    %1228 = vmatprep.subr.mxu0 0.0
    %1229 = vmatpush2.msra.mxu0 0.0
    %1230 = vmatprep.subr.mxu0 0.0
    %1231 = vmatpush2.msra.mxu0 0.0
    %1232 = vmatprep.subr.mxu0 0.0
    %1233 = vmatpush2.msra.mxu0 0.0
    %1234 = vmatprep.subr.mxu0 0.0
    %1235 = vmatpush2.msra.mxu0 0.0
    %1236 = vmatprep.subr.mxu0 0.0
    %1237 = vmatpush2.msra.mxu0 0.0
    %1238 = vmatprep.subr.mxu0 0.0
    %1239 = vmatpush2.msra.mxu0 0.0
    %1240 = vmatprep.subr.mxu0 0.0
    %1241 = vmatpush2.msra.mxu0 0.0
    %1242 = vmatprep.subr.mxu0 0.0
    %1243 = vmatpush2.msra.mxu0 0.0
    %1244 = vmatprep.subr.mxu0 0.0
    %1245 = vmatpush2.msra.mxu0 0.0
    %1246 = vmatprep.subr.mxu0 0.0
    %1247 = vmatpush2.msra.mxu0 0.0
    %1248 = vmatprep.subr.mxu0 0.0
    %1249 = vmatpush2.msra.mxu0 0.0
    %1250 = vmatprep.subr.mxu0 0.0
    %1251 = vmatpush2.msra.mxu0 0.0
    %1252 = vmatprep.mubr.f32.mxu0 0.0
    %1253 = vmatmul.mubr.f32.gmra.mxu0 %v1186
    %v1254 = vpop.f32.mrf.mxu0
    %v1255 = vadd.f32 %v495, %v1254
    %v1256 = vpop.f32.mrf.mxu0
    %1257 = vdwg.mxu0
    %1258 = vst [vmem:[%s9 + $0x10] sm:$0xff] %v1255
    %1259 = vmatprep.subr.mxu0 0.0
    %1260 = vmatpush1.msra.mxu0 0.0
    %1261 = vmatprep.subr.mxu0 0.0
    %1262 = vmatpush1.msra.mxu0 0.0
    %1263 = vmatprep.subr.mxu0 0.0
    %1264 = vmatpush1.msra.mxu0 0.0
    %1265 = vmatprep.subr.mxu0 0.0
    %1266 = vmatpush1.msra.mxu0 0.0
    %1267 = vmatprep.subr.mxu0 0.0
    %1268 = vmatpush1.msra.mxu0 0.0
    %1269 = vmatprep.subr.mxu0 0.0
    %1270 = vmatpush1.msra.mxu0 0.0
    %1271 = vmatprep.subr.mxu0 0.0
    %1272 = vmatpush1.msra.mxu0 0.0
    %1273 = vmatprep.subr.mxu0 0.0
    %1274 = vmatpush1.msra.mxu0 0.0
    %1275 = vmatprep.subr.mxu0 0.0
    %1276 = vmatpush1.msra.mxu0 0.0
    %1277 = vmatprep.subr.mxu0 0.0
    %1278 = vmatpush1.msra.mxu0 0.0
    %1279 = vmatprep.subr.mxu0 0.0
    %1280 = vmatpush1.msra.mxu0 0.0
    %1281 = vmatprep.subr.mxu0 0.0
    %1282 = vmatpush1.msra.mxu0 0.0
    %1283 = vmatprep.subr.mxu0 0.0
    %1284 = vmatpush1.msra.mxu0 %v199
    %1285 = vmatprep.subr.mxu0 0.0
    %1286 = vmatpush1.msra.mxu0 %v198
    %1287 = vmatprep.subr.mxu0 0.0
    %1288 = vmatpush1.msra.mxu0 %v197
    %1289 = vmatprep.subr.mxu0 0.0
    %1290 = vmatpush1.msra.mxu0 %v196
    %1291 = vmatprep.subr.mxu0 0.0
    %1292 = vmatpush2.msra.mxu0 0.0
    %1293 = vmatprep.subr.mxu0 0.0
    %1294 = vmatpush2.msra.mxu0 0.0
    %1295 = vmatprep.subr.mxu0 0.0
    %1296 = vmatpush2.msra.mxu0 0.0
    %1297 = vmatprep.subr.mxu0 0.0
    %1298 = vmatpush2.msra.mxu0 0.0
    %1299 = vmatprep.subr.mxu0 0.0
    %1300 = vmatpush2.msra.mxu0 0.0
    %1301 = vmatprep.subr.mxu0 0.0
    %1302 = vmatpush2.msra.mxu0 0.0
    %1303 = vmatprep.subr.mxu0 0.0
    %1304 = vmatpush2.msra.mxu0 0.0
    %1305 = vmatprep.subr.mxu0 0.0
    %1306 = vmatpush2.msra.mxu0 0.0
    %1307 = vmatprep.subr.mxu0 0.0
    %1308 = vmatpush2.msra.mxu0 0.0
    %1309 = vmatprep.subr.mxu0 0.0
    %1310 = vmatpush2.msra.mxu0 0.0
    %1311 = vmatprep.subr.mxu0 0.0
    %1312 = vmatpush2.msra.mxu0 0.0
    %1313 = vmatprep.subr.mxu0 0.0
    %1314 = vmatpush2.msra.mxu0 0.0
    %1315 = vmatprep.subr.mxu0 0.0
    %1316 = vmatpush2.msra.mxu0 0.0
    %1317 = vmatprep.subr.mxu0 0.0
    %1318 = vmatpush2.msra.mxu0 0.0
    %1319 = vmatprep.subr.mxu0 0.0
    %1320 = vmatpush2.msra.mxu0 0.0
    %1321 = vmatprep.subr.mxu0 0.0
    %1322 = vmatpush2.msra.mxu0 0.0
    %1323 = vmatprep.mubr.f32.mxu0 0.0
    %1324 = vmatmul.mubr.f32.gmra.mxu0 %v1015
    %v1325 = vpop.f32.mrf.mxu0
    %v1326 = vadd.f32 0.0, %v1325
    %v1327 = vpop.f32.mrf.mxu0
    %1328 = vdwg.mxu0
    %v1329 = vadd.f32 %v193, %v1326
    %v1330 = vxor.u32 %v1329, 2147483648
    %v1331 = vmul.f32 %v1330, 1.442695
    %v1332 = vpow.pop %v1331
    %v1333 = vadd.f32 %v1332, 1.0
    %v1334 = vrcp.pop %v1333
    %v1335 = vmul.f32 1.0, %v1334
    %v1336 = vmul.f32 %v1335, 2.0
    %v1337 = vsub.f32 %v1336, 1.0
    %v1338 = vmul.f32 %v1335, %v1005
    %1340 = vrot.lane.b32.xlu0 %v1337, 64
    %v1341 = vpop.permute.xlu0 %1340
    %v1343 = vmul.f32 %v1335, %v1341
    %1345 = vrot.lane.b32.xlu0 %v1343, 32
    %v1346 = vpop.permute.xlu0 %1345
    %v1348 = vadd.f32 %v1338, %v1346
    %v1349 = vtanh.pop %v1348
    %1351 = vrot.lane.b32.xlu0 %v1349, 64
    %v1352 = vpop.permute.xlu0 %1351
    %v1354 = vmul.f32 %v1335, %v1352
    %1356 = vrot.lane.b32.xlu0 %v1354, 32
    %v1357 = vpop.permute.xlu0 %1356
    %v1358 = vsel %vm214, %v1357, 0
    %1360 = vmatprep.subr.mxu0 0.0
    %1361 = vmatpush1.msra.mxu0 0.0
    %1362 = vmatprep.subr.mxu0 0.0
    %1363 = vmatpush1.msra.mxu0 0.0
    %1364 = vmatprep.subr.mxu0 0.0
    %1365 = vmatpush1.msra.mxu0 0.0
    %1366 = vmatprep.subr.mxu0 0.0
    %1367 = vmatpush1.msra.mxu0 0.0
    %1368 = vmatprep.subr.mxu0 0.0
    %1369 = vmatpush1.msra.mxu0 0.0
    %1370 = vmatprep.subr.mxu0 0.0
    %1371 = vmatpush1.msra.mxu0 0.0
    %1372 = vmatprep.subr.mxu0 0.0
    %1373 = vmatpush1.msra.mxu0 0.0
    %1374 = vmatprep.subr.mxu0 0.0
    %1375 = vmatpush1.msra.mxu0 0.0
    %1376 = vmatprep.subr.mxu0 0.0
    %1377 = vmatpush1.msra.mxu0 0.0
    %1378 = vmatprep.subr.mxu0 0.0
    %1379 = vmatpush1.msra.mxu0 0.0
    %1380 = vmatprep.subr.mxu0 0.0
    %1381 = vmatpush1.msra.mxu0 0.0
    %1382 = vmatprep.subr.mxu0 0.0
    %1383 = vmatpush1.msra.mxu0 0.0
    %1384 = vmatprep.subr.mxu0 0.0
    %1385 = vmatpush1.msra.mxu0 %v203
    %1386 = vmatprep.subr.mxu0 0.0
    %1387 = vmatpush1.msra.mxu0 %v202
    %1388 = vmatprep.subr.mxu0 0.0
    %1389 = vmatpush1.msra.mxu0 %v201
    %1390 = vmatprep.subr.mxu0 0.0
    %1391 = vmatpush1.msra.mxu0 %v200
    %1392 = vmatprep.subr.mxu0 0.0
    %1393 = vmatpush2.msra.mxu0 0.0
    %1394 = vmatprep.subr.mxu0 0.0
    %1395 = vmatpush2.msra.mxu0 0.0
    %1396 = vmatprep.subr.mxu0 0.0
    %1397 = vmatpush2.msra.mxu0 0.0
    %1398 = vmatprep.subr.mxu0 0.0
    %1399 = vmatpush2.msra.mxu0 0.0
    %1400 = vmatprep.subr.mxu0 0.0
    %1401 = vmatpush2.msra.mxu0 0.0
    %1402 = vmatprep.subr.mxu0 0.0
    %1403 = vmatpush2.msra.mxu0 0.0
    %1404 = vmatprep.subr.mxu0 0.0
    %1405 = vmatpush2.msra.mxu0 0.0
    %1406 = vmatprep.subr.mxu0 0.0
    %1407 = vmatpush2.msra.mxu0 0.0
    %1408 = vmatprep.subr.mxu0 0.0
    %1409 = vmatpush2.msra.mxu0 0.0
    %1410 = vmatprep.subr.mxu0 0.0
    %1411 = vmatpush2.msra.mxu0 0.0
    %1412 = vmatprep.subr.mxu0 0.0
    %1413 = vmatpush2.msra.mxu0 0.0
    %1414 = vmatprep.subr.mxu0 0.0
    %1415 = vmatpush2.msra.mxu0 0.0
    %1416 = vmatprep.subr.mxu0 0.0
    %1417 = vmatpush2.msra.mxu0 0.0
    %1418 = vmatprep.subr.mxu0 0.0
    %1419 = vmatpush2.msra.mxu0 0.0
    %1420 = vmatprep.subr.mxu0 0.0
    %1421 = vmatpush2.msra.mxu0 0.0
    %1422 = vmatprep.subr.mxu0 0.0
    %1423 = vmatpush2.msra.mxu0 0.0
    %1424 = vmatprep.mubr.f32.mxu0 0.0
    %1425 = vmatmul.mubr.f32.gmra.mxu0 %v1358
    %v1426 = vpop.f32.mrf.mxu0
    %v1427 = vadd.f32 0.0, %v1426
    %v1428 = vpop.f32.mrf.mxu0
    %1429 = vdwg.mxu0
    %1430 = vmatprep.subr.mxu0 0.0
    %1431 = vmatpush1.msra.mxu0 0.0
    %1432 = vmatprep.subr.mxu0 0.0
    %1433 = vmatpush1.msra.mxu0 0.0
    %1434 = vmatprep.subr.mxu0 0.0
    %1435 = vmatpush1.msra.mxu0 0.0
    %1436 = vmatprep.subr.mxu0 0.0
    %1437 = vmatpush1.msra.mxu0 0.0
    %1438 = vmatprep.subr.mxu0 0.0
    %1439 = vmatpush1.msra.mxu0 0.0
    %1440 = vmatprep.subr.mxu0 0.0
    %1441 = vmatpush1.msra.mxu0 0.0
    %1442 = vmatprep.subr.mxu0 0.0
    %1443 = vmatpush1.msra.mxu0 0.0
    %1444 = vmatprep.subr.mxu0 0.0
    %1445 = vmatpush1.msra.mxu0 0.0
    %1446 = vmatprep.subr.mxu0 0.0
    %1447 = vmatpush1.msra.mxu0 0.0
    %1448 = vmatprep.subr.mxu0 0.0
    %1449 = vmatpush1.msra.mxu0 0.0
    %1450 = vmatprep.subr.mxu0 0.0
    %1451 = vmatpush1.msra.mxu0 0.0
    %1452 = vmatprep.subr.mxu0 0.0
    %1453 = vmatpush1.msra.mxu0 0.0
    %1454 = vmatprep.subr.mxu0 0.0
    %1455 = vmatpush1.msra.mxu0 %v207
    %1456 = vmatprep.subr.mxu0 0.0
    %1457 = vmatpush1.msra.mxu0 %v206
    %1458 = vmatprep.subr.mxu0 0.0
    %1459 = vmatpush1.msra.mxu0 %v205
    %1460 = vmatprep.subr.mxu0 0.0
    %1461 = vmatpush1.msra.mxu0 %v204
    %1462 = vmatprep.subr.mxu0 0.0
    %1463 = vmatpush2.msra.mxu0 0.0
    %1464 = vmatprep.subr.mxu0 0.0
    %1465 = vmatpush2.msra.mxu0 0.0
    %1466 = vmatprep.subr.mxu0 0.0
    %1467 = vmatpush2.msra.mxu0 0.0
    %1468 = vmatprep.subr.mxu0 0.0
    %1469 = vmatpush2.msra.mxu0 0.0
    %1470 = vmatprep.subr.mxu0 0.0
    %1471 = vmatpush2.msra.mxu0 0.0
    %1472 = vmatprep.subr.mxu0 0.0
    %1473 = vmatpush2.msra.mxu0 0.0
    %1474 = vmatprep.subr.mxu0 0.0
    %1475 = vmatpush2.msra.mxu0 0.0
    %1476 = vmatprep.subr.mxu0 0.0
    %1477 = vmatpush2.msra.mxu0 0.0
    %1478 = vmatprep.subr.mxu0 0.0
    %1479 = vmatpush2.msra.mxu0 0.0
    %1480 = vmatprep.subr.mxu0 0.0
    %1481 = vmatpush2.msra.mxu0 0.0
    %1482 = vmatprep.subr.mxu0 0.0
    %1483 = vmatpush2.msra.mxu0 0.0
    %1484 = vmatprep.subr.mxu0 0.0
    %1485 = vmatpush2.msra.mxu0 0.0
    %1486 = vmatprep.subr.mxu0 0.0
    %1487 = vmatpush2.msra.mxu0 0.0
    %1488 = vmatprep.subr.mxu0 0.0
    %1489 = vmatpush2.msra.mxu0 0.0
    %1490 = vmatprep.subr.mxu0 0.0
    %1491 = vmatpush2.msra.mxu0 0.0
    %1492 = vmatprep.subr.mxu0 0.0
    %1493 = vmatpush2.msra.mxu0 0.0
    %1494 = vmatprep.mubr.f32.mxu0 0.0
    %1495 = vmatmul.mubr.f32.gmra.mxu0 %v1186
    %v1496 = vpop.f32.mrf.mxu0
    %v1497 = vadd.f32 %v1427, %v1496
    %v1498 = vpop.f32.mrf.mxu0
    %1499 = vdwg.mxu0
    %v1500 = vadd.f32 %v1497, %v463
    %v1501 = vxor.u32 %v1500, 2147483648
    %v1502 = vmul.f32 %v1501, 1.442695
    %v1503 = vpow.pop %v1502
    %v1504 = vadd.f32 %v1503, 1.0
    %v1505 = vrcp.pop %v1504
    %v1506 = vmul.f32 1.0, %v1505
    %v1507 = vmul.f32 %v1506, 2.0
    %v1508 = vsub.f32 %v1507, 1.0
    %v1509 = vmul.f32 %v1506, %v1176
    %1511 = vrot.lane.b32.xlu0 %v1508, 64
    %v1512 = vpop.permute.xlu0 %1511
    %v1514 = vmul.f32 %v1506, %v1512
    %1516 = vrot.lane.b32.xlu0 %v1514, 32
    %v1517 = vpop.permute.xlu0 %1516
    %v1519 = vadd.f32 %v1509, %v1517
    %v1520 = vtanh.pop %v1519
    %1522 = vrot.lane.b32.xlu0 %v1520, 64
    %v1523 = vpop.permute.xlu0 %1522
    %v1525 = vmul.f32 %v1506, %v1523
    %1527 = vrot.lane.b32.xlu0 %v1525, 32
    %v1528 = vpop.permute.xlu0 %1527
    %v1529 = vsel %vm214, %v1528, 0
    %1531 = vmatprep.subr.mxu0 0.0
    %1532 = vmatpush1.msra.mxu0 0.0
    %1533 = vmatprep.subr.mxu0 0.0
    %1534 = vmatpush1.msra.mxu0 0.0
    %1535 = vmatprep.subr.mxu0 0.0
    %1536 = vmatpush1.msra.mxu0 0.0
    %1537 = vmatprep.subr.mxu0 0.0
    %1538 = vmatpush1.msra.mxu0 0.0
    %1539 = vmatprep.subr.mxu0 0.0
    %1540 = vmatpush1.msra.mxu0 0.0
    %1541 = vmatprep.subr.mxu0 0.0
    %1542 = vmatpush1.msra.mxu0 0.0
    %1543 = vmatprep.subr.mxu0 0.0
    %1544 = vmatpush1.msra.mxu0 0.0
    %1545 = vmatprep.subr.mxu0 0.0
    %1546 = vmatpush1.msra.mxu0 0.0
    %1547 = vmatprep.subr.mxu0 0.0
    %1548 = vmatpush1.msra.mxu0 0.0
    %1549 = vmatprep.subr.mxu0 0.0
    %1550 = vmatpush1.msra.mxu0 0.0
    %1551 = vmatprep.subr.mxu0 0.0
    %1552 = vmatpush1.msra.mxu0 0.0
    %1553 = vmatprep.subr.mxu0 0.0
    %1554 = vmatpush1.msra.mxu0 0.0
    %1555 = vmatprep.subr.mxu0 0.0
    %1556 = vmatpush1.msra.mxu0 %v212
    %1557 = vmatprep.subr.mxu0 0.0
    %1558 = vmatpush1.msra.mxu0 %v211
    %1559 = vmatprep.subr.mxu0 0.0
    %1560 = vmatpush1.msra.mxu0 %v210
    %1561 = vmatprep.subr.mxu0 0.0
    %1562 = vmatpush1.msra.mxu0 %v209
    %1563 = vmatprep.subr.mxu0 0.0
    %1564 = vmatpush2.msra.mxu0 0.0
    %1565 = vmatprep.subr.mxu0 0.0
    %1566 = vmatpush2.msra.mxu0 0.0
    %1567 = vmatprep.subr.mxu0 0.0
    %1568 = vmatpush2.msra.mxu0 0.0
    %1569 = vmatprep.subr.mxu0 0.0
    %1570 = vmatpush2.msra.mxu0 0.0
    %1571 = vmatprep.subr.mxu0 0.0
    %1572 = vmatpush2.msra.mxu0 0.0
    %1573 = vmatprep.subr.mxu0 0.0
    %1574 = vmatpush2.msra.mxu0 0.0
    %1575 = vmatprep.subr.mxu0 0.0
    %1576 = vmatpush2.msra.mxu0 0.0
    %1577 = vmatprep.subr.mxu0 0.0
    %1578 = vmatpush2.msra.mxu0 0.0
    %1579 = vmatprep.subr.mxu0 0.0
    %1580 = vmatpush2.msra.mxu0 0.0
    %1581 = vmatprep.subr.mxu0 0.0
    %1582 = vmatpush2.msra.mxu0 0.0
    %1583 = vmatprep.subr.mxu0 0.0
    %1584 = vmatpush2.msra.mxu0 0.0
    %1585 = vmatprep.subr.mxu0 0.0
    %1586 = vmatpush2.msra.mxu0 0.0
    %1587 = vmatprep.subr.mxu0 0.0
    %1588 = vmatpush2.msra.mxu0 0.0
    %1589 = vmatprep.subr.mxu0 0.0
    %1590 = vmatpush2.msra.mxu0 0.0
    %1591 = vmatprep.subr.mxu0 0.0
    %1592 = vmatpush2.msra.mxu0 0.0
    %1593 = vmatprep.subr.mxu0 0.0
    %1594 = vmatpush2.msra.mxu0 0.0
    %1595 = vmatprep.mubr.f32.mxu0 0.0
    %1596 = vmatmul.mubr.f32.gmra.mxu0 %v1529
    %v1597 = vpop.f32.mrf.mxu0
    %v1598 = vadd.f32 %v495, %v1597
    %v1599 = vpop.f32.mrf.mxu0
    %1600 = vdwg.mxu0
    %1601 = vst [vmem:[%s9 + $0x18] sm:$0xff] %v1598
    %1602 = vmatprep.subr.mxu0 0.0
    %1603 = vmatpush1.msra.mxu0 0.0
    %1604 = vmatprep.subr.mxu0 0.0
    %1605 = vmatpush1.msra.mxu0 0.0
    %1606 = vmatprep.subr.mxu0 0.0
    %1607 = vmatpush1.msra.mxu0 0.0
    %1608 = vmatprep.subr.mxu0 0.0
    %1609 = vmatpush1.msra.mxu0 0.0
    %1610 = vmatprep.subr.mxu0 0.0
    %1611 = vmatpush1.msra.mxu0 0.0
    %1612 = vmatprep.subr.mxu0 0.0
    %1613 = vmatpush1.msra.mxu0 0.0
    %1614 = vmatprep.subr.mxu0 0.0
    %1615 = vmatpush1.msra.mxu0 0.0
    %1616 = vmatprep.subr.mxu0 0.0
    %1617 = vmatpush1.msra.mxu0 0.0
    %1618 = vmatprep.subr.mxu0 0.0
    %1619 = vmatpush1.msra.mxu0 0.0
    %1620 = vmatprep.subr.mxu0 0.0
    %1621 = vmatpush1.msra.mxu0 0.0
    %1622 = vmatprep.subr.mxu0 0.0
    %1623 = vmatpush1.msra.mxu0 0.0
    %1624 = vmatprep.subr.mxu0 0.0
    %1625 = vmatpush1.msra.mxu0 0.0
    %1626 = vmatprep.subr.mxu0 0.0
    %1627 = vmatpush1.msra.mxu0 %v199
    %1628 = vmatprep.subr.mxu0 0.0
    %1629 = vmatpush1.msra.mxu0 %v198
    %1630 = vmatprep.subr.mxu0 0.0
    %1631 = vmatpush1.msra.mxu0 %v197
    %1632 = vmatprep.subr.mxu0 0.0
    %1633 = vmatpush1.msra.mxu0 %v196
    %1634 = vmatprep.subr.mxu0 0.0
    %1635 = vmatpush2.msra.mxu0 0.0
    %1636 = vmatprep.subr.mxu0 0.0
    %1637 = vmatpush2.msra.mxu0 0.0
    %1638 = vmatprep.subr.mxu0 0.0
    %1639 = vmatpush2.msra.mxu0 0.0
    %1640 = vmatprep.subr.mxu0 0.0
    %1641 = vmatpush2.msra.mxu0 0.0
    %1642 = vmatprep.subr.mxu0 0.0
    %1643 = vmatpush2.msra.mxu0 0.0
    %1644 = vmatprep.subr.mxu0 0.0
    %1645 = vmatpush2.msra.mxu0 0.0
    %1646 = vmatprep.subr.mxu0 0.0
    %1647 = vmatpush2.msra.mxu0 0.0
    %1648 = vmatprep.subr.mxu0 0.0
    %1649 = vmatpush2.msra.mxu0 0.0
    %1650 = vmatprep.subr.mxu0 0.0
    %1651 = vmatpush2.msra.mxu0 0.0
    %1652 = vmatprep.subr.mxu0 0.0
    %1653 = vmatpush2.msra.mxu0 0.0
    %1654 = vmatprep.subr.mxu0 0.0
    %1655 = vmatpush2.msra.mxu0 0.0
    %1656 = vmatprep.subr.mxu0 0.0
    %1657 = vmatpush2.msra.mxu0 0.0
    %1658 = vmatprep.subr.mxu0 0.0
    %1659 = vmatpush2.msra.mxu0 0.0
    %1660 = vmatprep.subr.mxu0 0.0
    %1661 = vmatpush2.msra.mxu0 0.0
    %1662 = vmatprep.subr.mxu0 0.0
    %1663 = vmatpush2.msra.mxu0 0.0
    %1664 = vmatprep.subr.mxu0 0.0
    %1665 = vmatpush2.msra.mxu0 0.0
    %1666 = vmatprep.mubr.f32.mxu0 0.0
    %1667 = vmatmul.mubr.f32.gmra.mxu0 %v1358
    %v1668 = vpop.f32.mrf.mxu0
    %v1669 = vadd.f32 0.0, %v1668
    %v1670 = vpop.f32.mrf.mxu0
    %1671 = vdwg.mxu0
    %v1672 = vadd.f32 %v193, %v1669
    %v1673 = vxor.u32 %v1672, 2147483648
    %v1674 = vmul.f32 %v1673, 1.442695
    %v1675 = vpow.pop %v1674
    %v1676 = vadd.f32 %v1675, 1.0
    %v1677 = vrcp.pop %v1676
    %v1678 = vmul.f32 1.0, %v1677
    %v1679 = vmul.f32 %v1678, 2.0
    %v1680 = vsub.f32 %v1679, 1.0
    %v1681 = vmul.f32 %v1678, %v1348
    %1683 = vrot.lane.b32.xlu0 %v1680, 64
    %v1684 = vpop.permute.xlu0 %1683
    %v1686 = vmul.f32 %v1678, %v1684
    %1688 = vrot.lane.b32.xlu0 %v1686, 32
    %v1689 = vpop.permute.xlu0 %1688
    %v1691 = vadd.f32 %v1681, %v1689
    %v1692 = vtanh.pop %v1691
    %1694 = vrot.lane.b32.xlu0 %v1692, 64
    %v1695 = vpop.permute.xlu0 %1694
    %v1697 = vmul.f32 %v1678, %v1695
    %1699 = vrot.lane.b32.xlu0 %v1697, 32
    %v1700 = vpop.permute.xlu0 %1699
    %v1701 = vsel %vm214, %v1700, 0
    %1703 = vmatprep.subr.mxu0 0.0
    %1704 = vmatpush1.msra.mxu0 0.0
    %1705 = vmatprep.subr.mxu0 0.0
    %1706 = vmatpush1.msra.mxu0 0.0
    %1707 = vmatprep.subr.mxu0 0.0
    %1708 = vmatpush1.msra.mxu0 0.0
    %1709 = vmatprep.subr.mxu0 0.0
    %1710 = vmatpush1.msra.mxu0 0.0
    %1711 = vmatprep.subr.mxu0 0.0
    %1712 = vmatpush1.msra.mxu0 0.0
    %1713 = vmatprep.subr.mxu0 0.0
    %1714 = vmatpush1.msra.mxu0 0.0
    %1715 = vmatprep.subr.mxu0 0.0
    %1716 = vmatpush1.msra.mxu0 0.0
    %1717 = vmatprep.subr.mxu0 0.0
    %1718 = vmatpush1.msra.mxu0 0.0
    %1719 = vmatprep.subr.mxu0 0.0
    %1720 = vmatpush1.msra.mxu0 0.0
    %1721 = vmatprep.subr.mxu0 0.0
    %1722 = vmatpush1.msra.mxu0 0.0
    %1723 = vmatprep.subr.mxu0 0.0
    %1724 = vmatpush1.msra.mxu0 0.0
    %1725 = vmatprep.subr.mxu0 0.0
    %1726 = vmatpush1.msra.mxu0 0.0
    %1727 = vmatprep.subr.mxu0 0.0
    %1728 = vmatpush1.msra.mxu0 %v203
    %1729 = vmatprep.subr.mxu0 0.0
    %1730 = vmatpush1.msra.mxu0 %v202
    %1731 = vmatprep.subr.mxu0 0.0
    %1732 = vmatpush1.msra.mxu0 %v201
    %1733 = vmatprep.subr.mxu0 0.0
    %1734 = vmatpush1.msra.mxu0 %v200
    %1735 = vmatprep.subr.mxu0 0.0
    %1736 = vmatpush2.msra.mxu0 0.0
    %1737 = vmatprep.subr.mxu0 0.0
    %1738 = vmatpush2.msra.mxu0 0.0
    %1739 = vmatprep.subr.mxu0 0.0
    %1740 = vmatpush2.msra.mxu0 0.0
    %1741 = vmatprep.subr.mxu0 0.0
    %1742 = vmatpush2.msra.mxu0 0.0
    %1743 = vmatprep.subr.mxu0 0.0
    %1744 = vmatpush2.msra.mxu0 0.0
    %1745 = vmatprep.subr.mxu0 0.0
    %1746 = vmatpush2.msra.mxu0 0.0
    %1747 = vmatprep.subr.mxu0 0.0
    %1748 = vmatpush2.msra.mxu0 0.0
    %1749 = vmatprep.subr.mxu0 0.0
    %1750 = vmatpush2.msra.mxu0 0.0
    %1751 = vmatprep.subr.mxu0 0.0
    %1752 = vmatpush2.msra.mxu0 0.0
    %1753 = vmatprep.subr.mxu0 0.0
    %1754 = vmatpush2.msra.mxu0 0.0
    %1755 = vmatprep.subr.mxu0 0.0
    %1756 = vmatpush2.msra.mxu0 0.0
    %1757 = vmatprep.subr.mxu0 0.0
    %1758 = vmatpush2.msra.mxu0 0.0
    %1759 = vmatprep.subr.mxu0 0.0
    %1760 = vmatpush2.msra.mxu0 0.0
    %1761 = vmatprep.subr.mxu0 0.0
    %1762 = vmatpush2.msra.mxu0 0.0
    %1763 = vmatprep.subr.mxu0 0.0
    %1764 = vmatpush2.msra.mxu0 0.0
    %1765 = vmatprep.subr.mxu0 0.0
    %1766 = vmatpush2.msra.mxu0 0.0
    %1767 = vmatprep.mubr.f32.mxu0 0.0
    %1768 = vmatmul.mubr.f32.gmra.mxu0 %v1701
    %v1769 = vpop.f32.mrf.mxu0
    %v1770 = vadd.f32 0.0, %v1769
    %v1771 = vpop.f32.mrf.mxu0
    %1772 = vdwg.mxu0
    %1773 = vmatprep.subr.mxu0 0.0
    %1774 = vmatpush1.msra.mxu0 0.0
    %1775 = vmatprep.subr.mxu0 0.0
    %1776 = vmatpush1.msra.mxu0 0.0
    %1777 = vmatprep.subr.mxu0 0.0
    %1778 = vmatpush1.msra.mxu0 0.0
    %1779 = vmatprep.subr.mxu0 0.0
    %1780 = vmatpush1.msra.mxu0 0.0
    %1781 = vmatprep.subr.mxu0 0.0
    %1782 = vmatpush1.msra.mxu0 0.0
    %1783 = vmatprep.subr.mxu0 0.0
    %1784 = vmatpush1.msra.mxu0 0.0
    %1785 = vmatprep.subr.mxu0 0.0
    %1786 = vmatpush1.msra.mxu0 0.0
    %1787 = vmatprep.subr.mxu0 0.0
    %1788 = vmatpush1.msra.mxu0 0.0
    %1789 = vmatprep.subr.mxu0 0.0
    %1790 = vmatpush1.msra.mxu0 0.0
    %1791 = vmatprep.subr.mxu0 0.0
    %1792 = vmatpush1.msra.mxu0 0.0
    %1793 = vmatprep.subr.mxu0 0.0
    %1794 = vmatpush1.msra.mxu0 0.0
    %1795 = vmatprep.subr.mxu0 0.0
    %1796 = vmatpush1.msra.mxu0 0.0
    %1797 = vmatprep.subr.mxu0 0.0
    %1798 = vmatpush1.msra.mxu0 %v207
    %1799 = vmatprep.subr.mxu0 0.0
    %1800 = vmatpush1.msra.mxu0 %v206
    %1801 = vmatprep.subr.mxu0 0.0
    %1802 = vmatpush1.msra.mxu0 %v205
    %1803 = vmatprep.subr.mxu0 0.0
    %1804 = vmatpush1.msra.mxu0 %v204
    %1805 = vmatprep.subr.mxu0 0.0
    %1806 = vmatpush2.msra.mxu0 0.0
    %1807 = vmatprep.subr.mxu0 0.0
    %1808 = vmatpush2.msra.mxu0 0.0
    %1809 = vmatprep.subr.mxu0 0.0
    %1810 = vmatpush2.msra.mxu0 0.0
    %1811 = vmatprep.subr.mxu0 0.0
    %1812 = vmatpush2.msra.mxu0 0.0
    %1813 = vmatprep.subr.mxu0 0.0
    %1814 = vmatpush2.msra.mxu0 0.0
    %1815 = vmatprep.subr.mxu0 0.0
    %1816 = vmatpush2.msra.mxu0 0.0
    %1817 = vmatprep.subr.mxu0 0.0
    %1818 = vmatpush2.msra.mxu0 0.0
    %1819 = vmatprep.subr.mxu0 0.0
    %1820 = vmatpush2.msra.mxu0 0.0
    %1821 = vmatprep.subr.mxu0 0.0
    %1822 = vmatpush2.msra.mxu0 0.0
    %1823 = vmatprep.subr.mxu0 0.0
    %1824 = vmatpush2.msra.mxu0 0.0
    %1825 = vmatprep.subr.mxu0 0.0
    %1826 = vmatpush2.msra.mxu0 0.0
    %1827 = vmatprep.subr.mxu0 0.0
    %1828 = vmatpush2.msra.mxu0 0.0
    %1829 = vmatprep.subr.mxu0 0.0
    %1830 = vmatpush2.msra.mxu0 0.0
    %1831 = vmatprep.subr.mxu0 0.0
    %1832 = vmatpush2.msra.mxu0 0.0
    %1833 = vmatprep.subr.mxu0 0.0
    %1834 = vmatpush2.msra.mxu0 0.0
    %1835 = vmatprep.subr.mxu0 0.0
    %1836 = vmatpush2.msra.mxu0 0.0
    %1837 = vmatprep.mubr.f32.mxu0 0.0
    %1838 = vmatmul.mubr.f32.gmra.mxu0 %v1529
    %v1839 = vpop.f32.mrf.mxu0
    %v1840 = vadd.f32 %v1770, %v1839
    %v1841 = vpop.f32.mrf.mxu0
    %1842 = vdwg.mxu0
    %v1843 = vadd.f32 %v1840, %v463
    %v1844 = vxor.u32 %v1843, 2147483648
    %v1845 = vmul.f32 %v1844, 1.442695
    %v1846 = vpow.pop %v1845
    %v1847 = vadd.f32 %v1846, 1.0
    %v1848 = vrcp.pop %v1847
    %v1849 = vmul.f32 1.0, %v1848
    %v1850 = vmul.f32 %v1849, 2.0
    %v1851 = vsub.f32 %v1850, 1.0
    %v1852 = vmul.f32 %v1849, %v1519
    %1854 = vrot.lane.b32.xlu0 %v1851, 64
    %v1855 = vpop.permute.xlu0 %1854
    %v1857 = vmul.f32 %v1849, %v1855
    %1859 = vrot.lane.b32.xlu0 %v1857, 32
    %v1860 = vpop.permute.xlu0 %1859
    %v1862 = vadd.f32 %v1852, %v1860
    %v1863 = vtanh.pop %v1862
    %1865 = vrot.lane.b32.xlu0 %v1863, 64
    %v1866 = vpop.permute.xlu0 %1865
    %v1868 = vmul.f32 %v1849, %v1866
    %1870 = vrot.lane.b32.xlu0 %v1868, 32
    %v1871 = vpop.permute.xlu0 %1870
    %v1872 = vsel %vm214, %v1871, 0
    %1874 = vmatprep.subr.mxu0 0.0
    %1875 = vmatpush1.msra.mxu0 0.0
    %1876 = vmatprep.subr.mxu0 0.0
    %1877 = vmatpush1.msra.mxu0 0.0
    %1878 = vmatprep.subr.mxu0 0.0
    %1879 = vmatpush1.msra.mxu0 0.0
    %1880 = vmatprep.subr.mxu0 0.0
    %1881 = vmatpush1.msra.mxu0 0.0
    %1882 = vmatprep.subr.mxu0 0.0
    %1883 = vmatpush1.msra.mxu0 0.0
    %1884 = vmatprep.subr.mxu0 0.0
    %1885 = vmatpush1.msra.mxu0 0.0
    %1886 = vmatprep.subr.mxu0 0.0
    %1887 = vmatpush1.msra.mxu0 0.0
    %1888 = vmatprep.subr.mxu0 0.0
    %1889 = vmatpush1.msra.mxu0 0.0
    %1890 = vmatprep.subr.mxu0 0.0
    %1891 = vmatpush1.msra.mxu0 0.0
    %1892 = vmatprep.subr.mxu0 0.0
    %1893 = vmatpush1.msra.mxu0 0.0
    %1894 = vmatprep.subr.mxu0 0.0
    %1895 = vmatpush1.msra.mxu0 0.0
    %1896 = vmatprep.subr.mxu0 0.0
    %1897 = vmatpush1.msra.mxu0 0.0
    %1898 = vmatprep.subr.mxu0 0.0
    %1899 = vmatpush1.msra.mxu0 %v212
    %1900 = vmatprep.subr.mxu0 0.0
    %1901 = vmatpush1.msra.mxu0 %v211
    %1902 = vmatprep.subr.mxu0 0.0
    %1903 = vmatpush1.msra.mxu0 %v210
    %1904 = vmatprep.subr.mxu0 0.0
    %1905 = vmatpush1.msra.mxu0 %v209
    %1906 = vmatprep.subr.mxu0 0.0
    %1907 = vmatpush2.msra.mxu0 0.0
    %1908 = vmatprep.subr.mxu0 0.0
    %1909 = vmatpush2.msra.mxu0 0.0
    %1910 = vmatprep.subr.mxu0 0.0
    %1911 = vmatpush2.msra.mxu0 0.0
    %1912 = vmatprep.subr.mxu0 0.0
    %1913 = vmatpush2.msra.mxu0 0.0
    %1914 = vmatprep.subr.mxu0 0.0
    %1915 = vmatpush2.msra.mxu0 0.0
    %1916 = vmatprep.subr.mxu0 0.0
    %1917 = vmatpush2.msra.mxu0 0.0
    %1918 = vmatprep.subr.mxu0 0.0
    %1919 = vmatpush2.msra.mxu0 0.0
    %1920 = vmatprep.subr.mxu0 0.0
    %1921 = vmatpush2.msra.mxu0 0.0
    %1922 = vmatprep.subr.mxu0 0.0
    %1923 = vmatpush2.msra.mxu0 0.0
    %1924 = vmatprep.subr.mxu0 0.0
    %1925 = vmatpush2.msra.mxu0 0.0
    %1926 = vmatprep.subr.mxu0 0.0
    %1927 = vmatpush2.msra.mxu0 0.0
    %1928 = vmatprep.subr.mxu0 0.0
    %1929 = vmatpush2.msra.mxu0 0.0
    %1930 = vmatprep.subr.mxu0 0.0
    %1931 = vmatpush2.msra.mxu0 0.0
    %1932 = vmatprep.subr.mxu0 0.0
    %1933 = vmatpush2.msra.mxu0 0.0
    %1934 = vmatprep.subr.mxu0 0.0
    %1935 = vmatpush2.msra.mxu0 0.0
    %1936 = vmatprep.subr.mxu0 0.0
    %1937 = vmatpush2.msra.mxu0 0.0
    %1938 = vmatprep.mubr.f32.mxu0 0.0
    %1939 = vmatmul.mubr.f32.gmra.mxu0 %v1872
    %v1940 = vpop.f32.mrf.mxu0
    %v1941 = vadd.f32 %v495, %v1940
    %v1942 = vpop.f32.mrf.mxu0
    %1943 = vdwg.mxu0
    %1944 = vst [vmem:[%s9 + $0x20] sm:$0xff] %v1941
    %1945 = vmatprep.subr.mxu0 0.0
    %1946 = vmatpush1.msra.mxu0 0.0
    %1947 = vmatprep.subr.mxu0 0.0
    %1948 = vmatpush1.msra.mxu0 0.0
    %1949 = vmatprep.subr.mxu0 0.0
    %1950 = vmatpush1.msra.mxu0 0.0
    %1951 = vmatprep.subr.mxu0 0.0
    %1952 = vmatpush1.msra.mxu0 0.0
    %1953 = vmatprep.subr.mxu0 0.0
    %1954 = vmatpush1.msra.mxu0 0.0
    %1955 = vmatprep.subr.mxu0 0.0
    %1956 = vmatpush1.msra.mxu0 0.0
    %1957 = vmatprep.subr.mxu0 0.0
    %1958 = vmatpush1.msra.mxu0 0.0
    %1959 = vmatprep.subr.mxu0 0.0
    %1960 = vmatpush1.msra.mxu0 0.0
    %1961 = vmatprep.subr.mxu0 0.0
    %1962 = vmatpush1.msra.mxu0 0.0
    %1963 = vmatprep.subr.mxu0 0.0
    %1964 = vmatpush1.msra.mxu0 0.0
    %1965 = vmatprep.subr.mxu0 0.0
    %1966 = vmatpush1.msra.mxu0 0.0
    %1967 = vmatprep.subr.mxu0 0.0
    %1968 = vmatpush1.msra.mxu0 0.0
    %1969 = vmatprep.subr.mxu0 0.0
    %1970 = vmatpush1.msra.mxu0 %v199
    %1971 = vmatprep.subr.mxu0 0.0
    %1972 = vmatpush1.msra.mxu0 %v198
    %1973 = vmatprep.subr.mxu0 0.0
    %1974 = vmatpush1.msra.mxu0 %v197
    %1975 = vmatprep.subr.mxu0 0.0
    %1976 = vmatpush1.msra.mxu0 %v196
    %1977 = vmatprep.subr.mxu0 0.0
    %1978 = vmatpush2.msra.mxu0 0.0
    %1979 = vmatprep.subr.mxu0 0.0
    %1980 = vmatpush2.msra.mxu0 0.0
    %1981 = vmatprep.subr.mxu0 0.0
    %1982 = vmatpush2.msra.mxu0 0.0
    %1983 = vmatprep.subr.mxu0 0.0
    %1984 = vmatpush2.msra.mxu0 0.0
    %1985 = vmatprep.subr.mxu0 0.0
    %1986 = vmatpush2.msra.mxu0 0.0
    %1987 = vmatprep.subr.mxu0 0.0
    %1988 = vmatpush2.msra.mxu0 0.0
    %1989 = vmatprep.subr.mxu0 0.0
    %1990 = vmatpush2.msra.mxu0 0.0
    %1991 = vmatprep.subr.mxu0 0.0
    %1992 = vmatpush2.msra.mxu0 0.0
    %1993 = vmatprep.subr.mxu0 0.0
    %1994 = vmatpush2.msra.mxu0 0.0
    %1995 = vmatprep.subr.mxu0 0.0
    %1996 = vmatpush2.msra.mxu0 0.0
    %1997 = vmatprep.subr.mxu0 0.0
    %1998 = vmatpush2.msra.mxu0 0.0
    %1999 = vmatprep.subr.mxu0 0.0
    %2000 = vmatpush2.msra.mxu0 0.0
    %2001 = vmatprep.subr.mxu0 0.0
    %2002 = vmatpush2.msra.mxu0 0.0
    %2003 = vmatprep.subr.mxu0 0.0
    %2004 = vmatpush2.msra.mxu0 0.0
    %2005 = vmatprep.subr.mxu0 0.0
    %2006 = vmatpush2.msra.mxu0 0.0
    %2007 = vmatprep.subr.mxu0 0.0
    %2008 = vmatpush2.msra.mxu0 0.0
    %2009 = vmatprep.mubr.f32.mxu0 0.0
    %2010 = vmatmul.mubr.f32.gmra.mxu0 %v1701
    %v2011 = vpop.f32.mrf.mxu0
    %v2012 = vadd.f32 0.0, %v2011
    %v2013 = vpop.f32.mrf.mxu0
    %2014 = vdwg.mxu0
    %v2015 = vadd.f32 %v193, %v2012
    %v2016 = vxor.u32 %v2015, 2147483648
    %v2017 = vmul.f32 %v2016, 1.442695
    %v2018 = vpow.pop %v2017
    %v2019 = vadd.f32 %v2018, 1.0
    %v2020 = vrcp.pop %v2019
    %v2021 = vmul.f32 1.0, %v2020
    %v2022 = vmul.f32 %v2021, 2.0
    %v2023 = vsub.f32 %v2022, 1.0
    %v2024 = vmul.f32 %v2021, %v1691
    %2026 = vrot.lane.b32.xlu0 %v2023, 64
    %v2027 = vpop.permute.xlu0 %2026
    %v2029 = vmul.f32 %v2021, %v2027
    %2031 = vrot.lane.b32.xlu0 %v2029, 32
    %v2032 = vpop.permute.xlu0 %2031
    %v2034 = vadd.f32 %v2024, %v2032
    %v2035 = vtanh.pop %v2034
    %2037 = vrot.lane.b32.xlu0 %v2035, 64
    %v2038 = vpop.permute.xlu0 %2037
    %v2040 = vmul.f32 %v2021, %v2038
    %2042 = vrot.lane.b32.xlu0 %v2040, 32
    %v2043 = vpop.permute.xlu0 %2042
    %v2044 = vsel %vm214, %v2043, 0
    %2046 = vmatprep.subr.mxu0 0.0
    %2047 = vmatpush1.msra.mxu0 0.0
    %2048 = vmatprep.subr.mxu0 0.0
    %2049 = vmatpush1.msra.mxu0 0.0
    %2050 = vmatprep.subr.mxu0 0.0
    %2051 = vmatpush1.msra.mxu0 0.0
    %2052 = vmatprep.subr.mxu0 0.0
    %2053 = vmatpush1.msra.mxu0 0.0
    %2054 = vmatprep.subr.mxu0 0.0
    %2055 = vmatpush1.msra.mxu0 0.0
    %2056 = vmatprep.subr.mxu0 0.0
    %2057 = vmatpush1.msra.mxu0 0.0
    %2058 = vmatprep.subr.mxu0 0.0
    %2059 = vmatpush1.msra.mxu0 0.0
    %2060 = vmatprep.subr.mxu0 0.0
    %2061 = vmatpush1.msra.mxu0 0.0
    %2062 = vmatprep.subr.mxu0 0.0
    %2063 = vmatpush1.msra.mxu0 0.0
    %2064 = vmatprep.subr.mxu0 0.0
    %2065 = vmatpush1.msra.mxu0 0.0
    %2066 = vmatprep.subr.mxu0 0.0
    %2067 = vmatpush1.msra.mxu0 0.0
    %2068 = vmatprep.subr.mxu0 0.0
    %2069 = vmatpush1.msra.mxu0 0.0
    %2070 = vmatprep.subr.mxu0 0.0
    %2071 = vmatpush1.msra.mxu0 %v203
    %2072 = vmatprep.subr.mxu0 0.0
    %2073 = vmatpush1.msra.mxu0 %v202
    %2074 = vmatprep.subr.mxu0 0.0
    %2075 = vmatpush1.msra.mxu0 %v201
    %2076 = vmatprep.subr.mxu0 0.0
    %2077 = vmatpush1.msra.mxu0 %v200
    %2078 = vmatprep.subr.mxu0 0.0
    %2079 = vmatpush2.msra.mxu0 0.0
    %2080 = vmatprep.subr.mxu0 0.0
    %2081 = vmatpush2.msra.mxu0 0.0
    %2082 = vmatprep.subr.mxu0 0.0
    %2083 = vmatpush2.msra.mxu0 0.0
    %2084 = vmatprep.subr.mxu0 0.0
    %2085 = vmatpush2.msra.mxu0 0.0
    %2086 = vmatprep.subr.mxu0 0.0
    %2087 = vmatpush2.msra.mxu0 0.0
    %2088 = vmatprep.subr.mxu0 0.0
    %2089 = vmatpush2.msra.mxu0 0.0
    %2090 = vmatprep.subr.mxu0 0.0
    %2091 = vmatpush2.msra.mxu0 0.0
    %2092 = vmatprep.subr.mxu0 0.0
    %2093 = vmatpush2.msra.mxu0 0.0
    %2094 = vmatprep.subr.mxu0 0.0
    %2095 = vmatpush2.msra.mxu0 0.0
    %2096 = vmatprep.subr.mxu0 0.0
    %2097 = vmatpush2.msra.mxu0 0.0
    %2098 = vmatprep.subr.mxu0 0.0
    %2099 = vmatpush2.msra.mxu0 0.0
    %2100 = vmatprep.subr.mxu0 0.0
    %2101 = vmatpush2.msra.mxu0 0.0
    %2102 = vmatprep.subr.mxu0 0.0
    %2103 = vmatpush2.msra.mxu0 0.0
    %2104 = vmatprep.subr.mxu0 0.0
    %2105 = vmatpush2.msra.mxu0 0.0
    %2106 = vmatprep.subr.mxu0 0.0
    %2107 = vmatpush2.msra.mxu0 0.0
    %2108 = vmatprep.subr.mxu0 0.0
    %2109 = vmatpush2.msra.mxu0 0.0
    %2110 = vmatprep.mubr.f32.mxu0 0.0
    %2111 = vmatmul.mubr.f32.gmra.mxu0 %v2044
    %v2112 = vpop.f32.mrf.mxu0
    %v2113 = vadd.f32 0.0, %v2112
    %v2114 = vpop.f32.mrf.mxu0
    %2115 = vdwg.mxu0
    %2116 = vmatprep.subr.mxu0 0.0
    %2117 = vmatpush1.msra.mxu0 0.0
    %2118 = vmatprep.subr.mxu0 0.0
    %2119 = vmatpush1.msra.mxu0 0.0
    %2120 = vmatprep.subr.mxu0 0.0
    %2121 = vmatpush1.msra.mxu0 0.0
    %2122 = vmatprep.subr.mxu0 0.0
    %2123 = vmatpush1.msra.mxu0 0.0
    %2124 = vmatprep.subr.mxu0 0.0
    %2125 = vmatpush1.msra.mxu0 0.0
    %2126 = vmatprep.subr.mxu0 0.0
    %2127 = vmatpush1.msra.mxu0 0.0
    %2128 = vmatprep.subr.mxu0 0.0
    %2129 = vmatpush1.msra.mxu0 0.0
    %2130 = vmatprep.subr.mxu0 0.0
    %2131 = vmatpush1.msra.mxu0 0.0
    %2132 = vmatprep.subr.mxu0 0.0
    %2133 = vmatpush1.msra.mxu0 0.0
    %2134 = vmatprep.subr.mxu0 0.0
    %2135 = vmatpush1.msra.mxu0 0.0
    %2136 = vmatprep.subr.mxu0 0.0
    %2137 = vmatpush1.msra.mxu0 0.0
    %2138 = vmatprep.subr.mxu0 0.0
    %2139 = vmatpush1.msra.mxu0 0.0
    %2140 = vmatprep.subr.mxu0 0.0
    %2141 = vmatpush1.msra.mxu0 %v207
    %2142 = vmatprep.subr.mxu0 0.0
    %2143 = vmatpush1.msra.mxu0 %v206
    %2144 = vmatprep.subr.mxu0 0.0
    %2145 = vmatpush1.msra.mxu0 %v205
    %2146 = vmatprep.subr.mxu0 0.0
    %2147 = vmatpush1.msra.mxu0 %v204
    %2148 = vmatprep.subr.mxu0 0.0
    %2149 = vmatpush2.msra.mxu0 0.0
    %2150 = vmatprep.subr.mxu0 0.0
    %2151 = vmatpush2.msra.mxu0 0.0
    %2152 = vmatprep.subr.mxu0 0.0
    %2153 = vmatpush2.msra.mxu0 0.0
    %2154 = vmatprep.subr.mxu0 0.0
    %2155 = vmatpush2.msra.mxu0 0.0
    %2156 = vmatprep.subr.mxu0 0.0
    %2157 = vmatpush2.msra.mxu0 0.0
    %2158 = vmatprep.subr.mxu0 0.0
    %2159 = vmatpush2.msra.mxu0 0.0
    %2160 = vmatprep.subr.mxu0 0.0
    %2161 = vmatpush2.msra.mxu0 0.0
    %2162 = vmatprep.subr.mxu0 0.0
    %2163 = vmatpush2.msra.mxu0 0.0
    %2164 = vmatprep.subr.mxu0 0.0
    %2165 = vmatpush2.msra.mxu0 0.0
    %2166 = vmatprep.subr.mxu0 0.0
    %2167 = vmatpush2.msra.mxu0 0.0
    %2168 = vmatprep.subr.mxu0 0.0
    %2169 = vmatpush2.msra.mxu0 0.0
    %2170 = vmatprep.subr.mxu0 0.0
    %2171 = vmatpush2.msra.mxu0 0.0
    %2172 = vmatprep.subr.mxu0 0.0
    %2173 = vmatpush2.msra.mxu0 0.0
    %2174 = vmatprep.subr.mxu0 0.0
    %2175 = vmatpush2.msra.mxu0 0.0
    %2176 = vmatprep.subr.mxu0 0.0
    %2177 = vmatpush2.msra.mxu0 0.0
    %2178 = vmatprep.subr.mxu0 0.0
    %2179 = vmatpush2.msra.mxu0 0.0
    %2180 = vmatprep.mubr.f32.mxu0 0.0
    %2181 = vmatmul.mubr.f32.gmra.mxu0 %v1872
    %v2182 = vpop.f32.mrf.mxu0
    %v2183 = vadd.f32 %v2113, %v2182
    %v2184 = vpop.f32.mrf.mxu0
    %2185 = vdwg.mxu0
    %v2186 = vadd.f32 %v2183, %v463
    %v2187 = vxor.u32 %v2186, 2147483648
    %v2188 = vmul.f32 %v2187, 1.442695
    %v2189 = vpow.pop %v2188
    %v2190 = vadd.f32 %v2189, 1.0
    %v2191 = vrcp.pop %v2190
    %v2192 = vmul.f32 1.0, %v2191
    %v2193 = vmul.f32 %v2192, 2.0
    %v2194 = vsub.f32 %v2193, 1.0
    %v2195 = vmul.f32 %v2192, %v1862
    %2197 = vrot.lane.b32.xlu0 %v2194, 64
    %v2198 = vpop.permute.xlu0 %2197
    %v2200 = vmul.f32 %v2192, %v2198
    %2202 = vrot.lane.b32.xlu0 %v2200, 32
    %v2203 = vpop.permute.xlu0 %2202
    %v2205 = vadd.f32 %v2195, %v2203
    %v2206 = vtanh.pop %v2205
    %2208 = vrot.lane.b32.xlu0 %v2206, 64
    %v2209 = vpop.permute.xlu0 %2208
    %v2211 = vmul.f32 %v2192, %v2209
    %2213 = vrot.lane.b32.xlu0 %v2211, 32
    %v2214 = vpop.permute.xlu0 %2213
    %v2215 = vsel %vm214, %v2214, 0
    %2217 = vmatprep.subr.mxu0 0.0
    %2218 = vmatpush1.msra.mxu0 0.0
    %2219 = vmatprep.subr.mxu0 0.0
    %2220 = vmatpush1.msra.mxu0 0.0
    %2221 = vmatprep.subr.mxu0 0.0
    %2222 = vmatpush1.msra.mxu0 0.0
    %2223 = vmatprep.subr.mxu0 0.0
    %2224 = vmatpush1.msra.mxu0 0.0
    %2225 = vmatprep.subr.mxu0 0.0
    %2226 = vmatpush1.msra.mxu0 0.0
    %2227 = vmatprep.subr.mxu0 0.0
    %2228 = vmatpush1.msra.mxu0 0.0
    %2229 = vmatprep.subr.mxu0 0.0
    %2230 = vmatpush1.msra.mxu0 0.0
    %2231 = vmatprep.subr.mxu0 0.0
    %2232 = vmatpush1.msra.mxu0 0.0
    %2233 = vmatprep.subr.mxu0 0.0
    %2234 = vmatpush1.msra.mxu0 0.0
    %2235 = vmatprep.subr.mxu0 0.0
    %2236 = vmatpush1.msra.mxu0 0.0
    %2237 = vmatprep.subr.mxu0 0.0
    %2238 = vmatpush1.msra.mxu0 0.0
    %2239 = vmatprep.subr.mxu0 0.0
    %2240 = vmatpush1.msra.mxu0 0.0
    %2241 = vmatprep.subr.mxu0 0.0
    %2242 = vmatpush1.msra.mxu0 %v212
    %2243 = vmatprep.subr.mxu0 0.0
    %2244 = vmatpush1.msra.mxu0 %v211
    %2245 = vmatprep.subr.mxu0 0.0
    %2246 = vmatpush1.msra.mxu0 %v210
    %2247 = vmatprep.subr.mxu0 0.0
    %2248 = vmatpush1.msra.mxu0 %v209
    %2249 = vmatprep.subr.mxu0 0.0
    %2250 = vmatpush2.msra.mxu0 0.0
    %2251 = vmatprep.subr.mxu0 0.0
    %2252 = vmatpush2.msra.mxu0 0.0
    %2253 = vmatprep.subr.mxu0 0.0
    %2254 = vmatpush2.msra.mxu0 0.0
    %2255 = vmatprep.subr.mxu0 0.0
    %2256 = vmatpush2.msra.mxu0 0.0
    %2257 = vmatprep.subr.mxu0 0.0
    %2258 = vmatpush2.msra.mxu0 0.0
    %2259 = vmatprep.subr.mxu0 0.0
    %2260 = vmatpush2.msra.mxu0 0.0
    %2261 = vmatprep.subr.mxu0 0.0
    %2262 = vmatpush2.msra.mxu0 0.0
    %2263 = vmatprep.subr.mxu0 0.0
    %2264 = vmatpush2.msra.mxu0 0.0
    %2265 = vmatprep.subr.mxu0 0.0
    %2266 = vmatpush2.msra.mxu0 0.0
    %2267 = vmatprep.subr.mxu0 0.0
    %2268 = vmatpush2.msra.mxu0 0.0
    %2269 = vmatprep.subr.mxu0 0.0
    %2270 = vmatpush2.msra.mxu0 0.0
    %2271 = vmatprep.subr.mxu0 0.0
    %2272 = vmatpush2.msra.mxu0 0.0
    %2273 = vmatprep.subr.mxu0 0.0
    %2274 = vmatpush2.msra.mxu0 0.0
    %2275 = vmatprep.subr.mxu0 0.0
    %2276 = vmatpush2.msra.mxu0 0.0
    %2277 = vmatprep.subr.mxu0 0.0
    %2278 = vmatpush2.msra.mxu0 0.0
    %2279 = vmatprep.subr.mxu0 0.0
    %2280 = vmatpush2.msra.mxu0 0.0
    %2281 = vmatprep.mubr.f32.mxu0 0.0
    %2282 = vmatmul.mubr.f32.gmra.mxu0 %v2215
    %v2283 = vpop.f32.mrf.mxu0
    %v2284 = vadd.f32 %v495, %v2283
    %v2285 = vpop.f32.mrf.mxu0
    %2286 = vdwg.mxu0
    %2287 = vst [vmem:[%s9 + $0x28] sm:$0xff] %v2284
    %2288 = vmatprep.subr.mxu0 0.0
    %2289 = vmatpush1.msra.mxu0 0.0
    %2290 = vmatprep.subr.mxu0 0.0
    %2291 = vmatpush1.msra.mxu0 0.0
    %2292 = vmatprep.subr.mxu0 0.0
    %2293 = vmatpush1.msra.mxu0 0.0
    %2294 = vmatprep.subr.mxu0 0.0
    %2295 = vmatpush1.msra.mxu0 0.0
    %2296 = vmatprep.subr.mxu0 0.0
    %2297 = vmatpush1.msra.mxu0 0.0
    %2298 = vmatprep.subr.mxu0 0.0
    %2299 = vmatpush1.msra.mxu0 0.0
    %2300 = vmatprep.subr.mxu0 0.0
    %2301 = vmatpush1.msra.mxu0 0.0
    %2302 = vmatprep.subr.mxu0 0.0
    %2303 = vmatpush1.msra.mxu0 0.0
    %2304 = vmatprep.subr.mxu0 0.0
    %2305 = vmatpush1.msra.mxu0 0.0
    %2306 = vmatprep.subr.mxu0 0.0
    %2307 = vmatpush1.msra.mxu0 0.0
    %2308 = vmatprep.subr.mxu0 0.0
    %2309 = vmatpush1.msra.mxu0 0.0
    %2310 = vmatprep.subr.mxu0 0.0
    %2311 = vmatpush1.msra.mxu0 0.0
    %2312 = vmatprep.subr.mxu0 0.0
    %2313 = vmatpush1.msra.mxu0 %v199
    %2314 = vmatprep.subr.mxu0 0.0
    %2315 = vmatpush1.msra.mxu0 %v198
    %2316 = vmatprep.subr.mxu0 0.0
    %2317 = vmatpush1.msra.mxu0 %v197
    %2318 = vmatprep.subr.mxu0 0.0
    %2319 = vmatpush1.msra.mxu0 %v196
    %2320 = vmatprep.subr.mxu0 0.0
    %2321 = vmatpush2.msra.mxu0 0.0
    %2322 = vmatprep.subr.mxu0 0.0
    %2323 = vmatpush2.msra.mxu0 0.0
    %2324 = vmatprep.subr.mxu0 0.0
    %2325 = vmatpush2.msra.mxu0 0.0
    %2326 = vmatprep.subr.mxu0 0.0
    %2327 = vmatpush2.msra.mxu0 0.0
    %2328 = vmatprep.subr.mxu0 0.0
    %2329 = vmatpush2.msra.mxu0 0.0
    %2330 = vmatprep.subr.mxu0 0.0
    %2331 = vmatpush2.msra.mxu0 0.0
    %2332 = vmatprep.subr.mxu0 0.0
    %2333 = vmatpush2.msra.mxu0 0.0
    %2334 = vmatprep.subr.mxu0 0.0
    %2335 = vmatpush2.msra.mxu0 0.0
    %2336 = vmatprep.subr.mxu0 0.0
    %2337 = vmatpush2.msra.mxu0 0.0
    %2338 = vmatprep.subr.mxu0 0.0
    %2339 = vmatpush2.msra.mxu0 0.0
    %2340 = vmatprep.subr.mxu0 0.0
    %2341 = vmatpush2.msra.mxu0 0.0
    %2342 = vmatprep.subr.mxu0 0.0
    %2343 = vmatpush2.msra.mxu0 0.0
    %2344 = vmatprep.subr.mxu0 0.0
    %2345 = vmatpush2.msra.mxu0 0.0
    %2346 = vmatprep.subr.mxu0 0.0
    %2347 = vmatpush2.msra.mxu0 0.0
    %2348 = vmatprep.subr.mxu0 0.0
    %2349 = vmatpush2.msra.mxu0 0.0
    %2350 = vmatprep.subr.mxu0 0.0
    %2351 = vmatpush2.msra.mxu0 0.0
    %2352 = vmatprep.mubr.f32.mxu0 0.0
    %2353 = vmatmul.mubr.f32.gmra.mxu0 %v2044
    %v2354 = vpop.f32.mrf.mxu0
    %v2355 = vadd.f32 0.0, %v2354
    %v2356 = vpop.f32.mrf.mxu0
    %2357 = vdwg.mxu0
    %v2358 = vadd.f32 %v193, %v2355
    %v2359 = vxor.u32 %v2358, 2147483648
    %v2360 = vmul.f32 %v2359, 1.442695
    %v2361 = vpow.pop %v2360
    %v2362 = vadd.f32 %v2361, 1.0
    %v2363 = vrcp.pop %v2362
    %v2364 = vmul.f32 1.0, %v2363
    %v2365 = vmul.f32 %v2364, 2.0
    %v2366 = vsub.f32 %v2365, 1.0
    %v2367 = vmul.f32 %v2364, %v2034
    %2369 = vrot.lane.b32.xlu0 %v2366, 64
    %v2370 = vpop.permute.xlu0 %2369
    %v2372 = vmul.f32 %v2364, %v2370
    %2374 = vrot.lane.b32.xlu0 %v2372, 32
    %v2375 = vpop.permute.xlu0 %2374
    %v2377 = vadd.f32 %v2367, %v2375
    %v2378 = vtanh.pop %v2377
    %2380 = vrot.lane.b32.xlu0 %v2378, 64
    %v2381 = vpop.permute.xlu0 %2380
    %v2383 = vmul.f32 %v2364, %v2381
    %2385 = vrot.lane.b32.xlu0 %v2383, 32
    %v2386 = vpop.permute.xlu0 %2385
    %v2387 = vsel %vm214, %v2386, 0
    %2389 = vmatprep.subr.mxu0 0.0
    %2390 = vmatpush1.msra.mxu0 0.0
    %2391 = vmatprep.subr.mxu0 0.0
    %2392 = vmatpush1.msra.mxu0 0.0
    %2393 = vmatprep.subr.mxu0 0.0
    %2394 = vmatpush1.msra.mxu0 0.0
    %2395 = vmatprep.subr.mxu0 0.0
    %2396 = vmatpush1.msra.mxu0 0.0
    %2397 = vmatprep.subr.mxu0 0.0
    %2398 = vmatpush1.msra.mxu0 0.0
    %2399 = vmatprep.subr.mxu0 0.0
    %2400 = vmatpush1.msra.mxu0 0.0
    %2401 = vmatprep.subr.mxu0 0.0
    %2402 = vmatpush1.msra.mxu0 0.0
    %2403 = vmatprep.subr.mxu0 0.0
    %2404 = vmatpush1.msra.mxu0 0.0
    %2405 = vmatprep.subr.mxu0 0.0
    %2406 = vmatpush1.msra.mxu0 0.0
    %2407 = vmatprep.subr.mxu0 0.0
    %2408 = vmatpush1.msra.mxu0 0.0
    %2409 = vmatprep.subr.mxu0 0.0
    %2410 = vmatpush1.msra.mxu0 0.0
    %2411 = vmatprep.subr.mxu0 0.0
    %2412 = vmatpush1.msra.mxu0 0.0
    %2413 = vmatprep.subr.mxu0 0.0
    %2414 = vmatpush1.msra.mxu0 %v203
    %2415 = vmatprep.subr.mxu0 0.0
    %2416 = vmatpush1.msra.mxu0 %v202
    %2417 = vmatprep.subr.mxu0 0.0
    %2418 = vmatpush1.msra.mxu0 %v201
    %2419 = vmatprep.subr.mxu0 0.0
    %2420 = vmatpush1.msra.mxu0 %v200
    %2421 = vmatprep.subr.mxu0 0.0
    %2422 = vmatpush2.msra.mxu0 0.0
    %2423 = vmatprep.subr.mxu0 0.0
    %2424 = vmatpush2.msra.mxu0 0.0
    %2425 = vmatprep.subr.mxu0 0.0
    %2426 = vmatpush2.msra.mxu0 0.0
    %2427 = vmatprep.subr.mxu0 0.0
    %2428 = vmatpush2.msra.mxu0 0.0
    %2429 = vmatprep.subr.mxu0 0.0
    %2430 = vmatpush2.msra.mxu0 0.0
    %2431 = vmatprep.subr.mxu0 0.0
    %2432 = vmatpush2.msra.mxu0 0.0
    %2433 = vmatprep.subr.mxu0 0.0
    %2434 = vmatpush2.msra.mxu0 0.0
    %2435 = vmatprep.subr.mxu0 0.0
    %2436 = vmatpush2.msra.mxu0 0.0
    %2437 = vmatprep.subr.mxu0 0.0
    %2438 = vmatpush2.msra.mxu0 0.0
    %2439 = vmatprep.subr.mxu0 0.0
    %2440 = vmatpush2.msra.mxu0 0.0
    %2441 = vmatprep.subr.mxu0 0.0
    %2442 = vmatpush2.msra.mxu0 0.0
    %2443 = vmatprep.subr.mxu0 0.0
    %2444 = vmatpush2.msra.mxu0 0.0
    %2445 = vmatprep.subr.mxu0 0.0
    %2446 = vmatpush2.msra.mxu0 0.0
    %2447 = vmatprep.subr.mxu0 0.0
    %2448 = vmatpush2.msra.mxu0 0.0
    %2449 = vmatprep.subr.mxu0 0.0
    %2450 = vmatpush2.msra.mxu0 0.0
    %2451 = vmatprep.subr.mxu0 0.0
    %2452 = vmatpush2.msra.mxu0 0.0
    %2453 = vmatprep.mubr.f32.mxu0 0.0
    %2454 = vmatmul.mubr.f32.gmra.mxu0 %v2387
    %v2455 = vpop.f32.mrf.mxu0
    %v2456 = vadd.f32 0.0, %v2455
    %v2457 = vpop.f32.mrf.mxu0
    %2458 = vdwg.mxu0
    %2459 = vmatprep.subr.mxu0 0.0
    %2460 = vmatpush1.msra.mxu0 0.0
    %2461 = vmatprep.subr.mxu0 0.0
    %2462 = vmatpush1.msra.mxu0 0.0
    %2463 = vmatprep.subr.mxu0 0.0
    %2464 = vmatpush1.msra.mxu0 0.0
    %2465 = vmatprep.subr.mxu0 0.0
    %2466 = vmatpush1.msra.mxu0 0.0
    %2467 = vmatprep.subr.mxu0 0.0
    %2468 = vmatpush1.msra.mxu0 0.0
    %2469 = vmatprep.subr.mxu0 0.0
    %2470 = vmatpush1.msra.mxu0 0.0
    %2471 = vmatprep.subr.mxu0 0.0
    %2472 = vmatpush1.msra.mxu0 0.0
    %2473 = vmatprep.subr.mxu0 0.0
    %2474 = vmatpush1.msra.mxu0 0.0
    %2475 = vmatprep.subr.mxu0 0.0
    %2476 = vmatpush1.msra.mxu0 0.0
    %2477 = vmatprep.subr.mxu0 0.0
    %2478 = vmatpush1.msra.mxu0 0.0
    %2479 = vmatprep.subr.mxu0 0.0
    %2480 = vmatpush1.msra.mxu0 0.0
    %2481 = vmatprep.subr.mxu0 0.0
    %2482 = vmatpush1.msra.mxu0 0.0
    %2483 = vmatprep.subr.mxu0 0.0
    %2484 = vmatpush1.msra.mxu0 %v207
    %2485 = vmatprep.subr.mxu0 0.0
    %2486 = vmatpush1.msra.mxu0 %v206
    %2487 = vmatprep.subr.mxu0 0.0
    %2488 = vmatpush1.msra.mxu0 %v205
    %2489 = vmatprep.subr.mxu0 0.0
    %2490 = vmatpush1.msra.mxu0 %v204
    %2491 = vmatprep.subr.mxu0 0.0
    %2492 = vmatpush2.msra.mxu0 0.0
    %2493 = vmatprep.subr.mxu0 0.0
    %2494 = vmatpush2.msra.mxu0 0.0
    %2495 = vmatprep.subr.mxu0 0.0
    %2496 = vmatpush2.msra.mxu0 0.0
    %2497 = vmatprep.subr.mxu0 0.0
    %2498 = vmatpush2.msra.mxu0 0.0
    %2499 = vmatprep.subr.mxu0 0.0
    %2500 = vmatpush2.msra.mxu0 0.0
    %2501 = vmatprep.subr.mxu0 0.0
    %2502 = vmatpush2.msra.mxu0 0.0
    %2503 = vmatprep.subr.mxu0 0.0
    %2504 = vmatpush2.msra.mxu0 0.0
    %2505 = vmatprep.subr.mxu0 0.0
    %2506 = vmatpush2.msra.mxu0 0.0
    %2507 = vmatprep.subr.mxu0 0.0
    %2508 = vmatpush2.msra.mxu0 0.0
    %2509 = vmatprep.subr.mxu0 0.0
    %2510 = vmatpush2.msra.mxu0 0.0
    %2511 = vmatprep.subr.mxu0 0.0
    %2512 = vmatpush2.msra.mxu0 0.0
    %2513 = vmatprep.subr.mxu0 0.0
    %2514 = vmatpush2.msra.mxu0 0.0
    %2515 = vmatprep.subr.mxu0 0.0
    %2516 = vmatpush2.msra.mxu0 0.0
    %2517 = vmatprep.subr.mxu0 0.0
    %2518 = vmatpush2.msra.mxu0 0.0
    %2519 = vmatprep.subr.mxu0 0.0
    %2520 = vmatpush2.msra.mxu0 0.0
    %2521 = vmatprep.subr.mxu0 0.0
    %2522 = vmatpush2.msra.mxu0 0.0
    %2523 = vmatprep.mubr.f32.mxu0 0.0
    %2524 = vmatmul.mubr.f32.gmra.mxu0 %v2215
    %v2525 = vpop.f32.mrf.mxu0
    %v2526 = vadd.f32 %v2456, %v2525
    %v2527 = vpop.f32.mrf.mxu0
    %2528 = vdwg.mxu0
    %v2529 = vadd.f32 %v2526, %v463
    %v2530 = vxor.u32 %v2529, 2147483648
    %v2531 = vmul.f32 %v2530, 1.442695
    %v2532 = vpow.pop %v2531
    %v2533 = vadd.f32 %v2532, 1.0
    %v2534 = vrcp.pop %v2533
    %v2535 = vmul.f32 1.0, %v2534
    %v2536 = vmul.f32 %v2535, 2.0
    %v2537 = vsub.f32 %v2536, 1.0
    %v2538 = vmul.f32 %v2535, %v2205
    %2540 = vrot.lane.b32.xlu0 %v2537, 64
    %v2541 = vpop.permute.xlu0 %2540
    %v2543 = vmul.f32 %v2535, %v2541
    %2545 = vrot.lane.b32.xlu0 %v2543, 32
    %v2546 = vpop.permute.xlu0 %2545
    %v2548 = vadd.f32 %v2538, %v2546
    %v2549 = vtanh.pop %v2548
    %2551 = vrot.lane.b32.xlu0 %v2549, 64
    %v2552 = vpop.permute.xlu0 %2551
    %v2554 = vmul.f32 %v2535, %v2552
    %2556 = vrot.lane.b32.xlu0 %v2554, 32
    %v2557 = vpop.permute.xlu0 %2556
    %v2558 = vsel %vm214, %v2557, 0
    %2560 = vmatprep.subr.mxu0 0.0
    %2561 = vmatpush1.msra.mxu0 0.0
    %2562 = vmatprep.subr.mxu0 0.0
    %2563 = vmatpush1.msra.mxu0 0.0
    %2564 = vmatprep.subr.mxu0 0.0
    %2565 = vmatpush1.msra.mxu0 0.0
    %2566 = vmatprep.subr.mxu0 0.0
    %2567 = vmatpush1.msra.mxu0 0.0
    %2568 = vmatprep.subr.mxu0 0.0
    %2569 = vmatpush1.msra.mxu0 0.0
    %2570 = vmatprep.subr.mxu0 0.0
    %2571 = vmatpush1.msra.mxu0 0.0
    %2572 = vmatprep.subr.mxu0 0.0
    %2573 = vmatpush1.msra.mxu0 0.0
    %2574 = vmatprep.subr.mxu0 0.0
    %2575 = vmatpush1.msra.mxu0 0.0
    %2576 = vmatprep.subr.mxu0 0.0
    %2577 = vmatpush1.msra.mxu0 0.0
    %2578 = vmatprep.subr.mxu0 0.0
    %2579 = vmatpush1.msra.mxu0 0.0
    %2580 = vmatprep.subr.mxu0 0.0
    %2581 = vmatpush1.msra.mxu0 0.0
    %2582 = vmatprep.subr.mxu0 0.0
    %2583 = vmatpush1.msra.mxu0 0.0
    %2584 = vmatprep.subr.mxu0 0.0
    %2585 = vmatpush1.msra.mxu0 %v212
    %2586 = vmatprep.subr.mxu0 0.0
    %2587 = vmatpush1.msra.mxu0 %v211
    %2588 = vmatprep.subr.mxu0 0.0
    %2589 = vmatpush1.msra.mxu0 %v210
    %2590 = vmatprep.subr.mxu0 0.0
    %2591 = vmatpush1.msra.mxu0 %v209
    %2592 = vmatprep.subr.mxu0 0.0
    %2593 = vmatpush2.msra.mxu0 0.0
    %2594 = vmatprep.subr.mxu0 0.0
    %2595 = vmatpush2.msra.mxu0 0.0
    %2596 = vmatprep.subr.mxu0 0.0
    %2597 = vmatpush2.msra.mxu0 0.0
    %2598 = vmatprep.subr.mxu0 0.0
    %2599 = vmatpush2.msra.mxu0 0.0
    %2600 = vmatprep.subr.mxu0 0.0
    %2601 = vmatpush2.msra.mxu0 0.0
    %2602 = vmatprep.subr.mxu0 0.0
    %2603 = vmatpush2.msra.mxu0 0.0
    %2604 = vmatprep.subr.mxu0 0.0
    %2605 = vmatpush2.msra.mxu0 0.0
    %2606 = vmatprep.subr.mxu0 0.0
    %2607 = vmatpush2.msra.mxu0 0.0
    %2608 = vmatprep.subr.mxu0 0.0
    %2609 = vmatpush2.msra.mxu0 0.0
    %2610 = vmatprep.subr.mxu0 0.0
    %2611 = vmatpush2.msra.mxu0 0.0
    %2612 = vmatprep.subr.mxu0 0.0
    %2613 = vmatpush2.msra.mxu0 0.0
    %2614 = vmatprep.subr.mxu0 0.0
    %2615 = vmatpush2.msra.mxu0 0.0
    %2616 = vmatprep.subr.mxu0 0.0
    %2617 = vmatpush2.msra.mxu0 0.0
    %2618 = vmatprep.subr.mxu0 0.0
    %2619 = vmatpush2.msra.mxu0 0.0
    %2620 = vmatprep.subr.mxu0 0.0
    %2621 = vmatpush2.msra.mxu0 0.0
    %2622 = vmatprep.subr.mxu0 0.0
    %2623 = vmatpush2.msra.mxu0 0.0
    %2624 = vmatprep.mubr.f32.mxu0 0.0
    %2625 = vmatmul.mubr.f32.gmra.mxu0 %v2558
    %v2626 = vpop.f32.mrf.mxu0
    %v2627 = vadd.f32 %v495, %v2626
    %v2628 = vpop.f32.mrf.mxu0
    %2629 = vdwg.mxu0
    %2630 = vst [vmem:[%s9 + $0x30] sm:$0xff] %v2627
    %2631 = vmatprep.subr.mxu0 0.0
    %2632 = vmatpush1.msra.mxu0 0.0
    %2633 = vmatprep.subr.mxu0 0.0
    %2634 = vmatpush1.msra.mxu0 0.0
    %2635 = vmatprep.subr.mxu0 0.0
    %2636 = vmatpush1.msra.mxu0 0.0
    %2637 = vmatprep.subr.mxu0 0.0
    %2638 = vmatpush1.msra.mxu0 0.0
    %2639 = vmatprep.subr.mxu0 0.0
    %2640 = vmatpush1.msra.mxu0 0.0
    %2641 = vmatprep.subr.mxu0 0.0
    %2642 = vmatpush1.msra.mxu0 0.0
    %2643 = vmatprep.subr.mxu0 0.0
    %2644 = vmatpush1.msra.mxu0 0.0
    %2645 = vmatprep.subr.mxu0 0.0
    %2646 = vmatpush1.msra.mxu0 0.0
    %2647 = vmatprep.subr.mxu0 0.0
    %2648 = vmatpush1.msra.mxu0 0.0
    %2649 = vmatprep.subr.mxu0 0.0
    %2650 = vmatpush1.msra.mxu0 0.0
    %2651 = vmatprep.subr.mxu0 0.0
    %2652 = vmatpush1.msra.mxu0 0.0
    %2653 = vmatprep.subr.mxu0 0.0
    %2654 = vmatpush1.msra.mxu0 0.0
    %2655 = vmatprep.subr.mxu0 0.0
    %2656 = vmatpush1.msra.mxu0 %v199
    %2657 = vmatprep.subr.mxu0 0.0
    %2658 = vmatpush1.msra.mxu0 %v198
    %2659 = vmatprep.subr.mxu0 0.0
    %2660 = vmatpush1.msra.mxu0 %v197
    %2661 = vmatprep.subr.mxu0 0.0
    %2662 = vmatpush1.msra.mxu0 %v196
    %2663 = vmatprep.subr.mxu0 0.0
    %2664 = vmatpush2.msra.mxu0 0.0
    %2665 = vmatprep.subr.mxu0 0.0
    %2666 = vmatpush2.msra.mxu0 0.0
    %2667 = vmatprep.subr.mxu0 0.0
    %2668 = vmatpush2.msra.mxu0 0.0
    %2669 = vmatprep.subr.mxu0 0.0
    %2670 = vmatpush2.msra.mxu0 0.0
    %2671 = vmatprep.subr.mxu0 0.0
    %2672 = vmatpush2.msra.mxu0 0.0
    %2673 = vmatprep.subr.mxu0 0.0
    %2674 = vmatpush2.msra.mxu0 0.0
    %2675 = vmatprep.subr.mxu0 0.0
    %2676 = vmatpush2.msra.mxu0 0.0
    %2677 = vmatprep.subr.mxu0 0.0
    %2678 = vmatpush2.msra.mxu0 0.0
    %2679 = vmatprep.subr.mxu0 0.0
    %2680 = vmatpush2.msra.mxu0 0.0
    %2681 = vmatprep.subr.mxu0 0.0
    %2682 = vmatpush2.msra.mxu0 0.0
    %2683 = vmatprep.subr.mxu0 0.0
    %2684 = vmatpush2.msra.mxu0 0.0
    %2685 = vmatprep.subr.mxu0 0.0
    %2686 = vmatpush2.msra.mxu0 0.0
    %2687 = vmatprep.subr.mxu0 0.0
    %2688 = vmatpush2.msra.mxu0 0.0
    %2689 = vmatprep.subr.mxu0 0.0
    %2690 = vmatpush2.msra.mxu0 0.0
    %2691 = vmatprep.subr.mxu0 0.0
    %2692 = vmatpush2.msra.mxu0 0.0
    %2693 = vmatprep.subr.mxu0 0.0
    %2694 = vmatpush2.msra.mxu0 0.0
    %2695 = vmatprep.mubr.f32.mxu0 0.0
    %2696 = vmatmul.mubr.f32.gmra.mxu0 %v2387
    %v2697 = vpop.f32.mrf.mxu0
    %v2698 = vadd.f32 0.0, %v2697
    %v2699 = vpop.f32.mrf.mxu0
    %2700 = vdwg.mxu0
    %v2701 = vadd.f32 %v193, %v2698
    %v2702 = vxor.u32 %v2701, 2147483648
    %v2703 = vmul.f32 %v2702, 1.442695
    %v2704 = vpow.pop %v2703
    %v2705 = vadd.f32 %v2704, 1.0
    %v2706 = vrcp.pop %v2705
    %v2707 = vmul.f32 1.0, %v2706
    %v2708 = vmul.f32 %v2707, 2.0
    %v2709 = vsub.f32 %v2708, 1.0
    %v2710 = vmul.f32 %v2707, %v2377
    %2712 = vrot.lane.b32.xlu0 %v2709, 64
    %v2713 = vpop.permute.xlu0 %2712
    %v2715 = vmul.f32 %v2707, %v2713
    %2717 = vrot.lane.b32.xlu0 %v2715, 32
    %v2718 = vpop.permute.xlu0 %2717
    %v2720 = vadd.f32 %v2710, %v2718
    %v2721 = vtanh.pop %v2720
    %2723 = vrot.lane.b32.xlu0 %v2721, 64
    %v2724 = vpop.permute.xlu0 %2723
    %v2726 = vmul.f32 %v2707, %v2724
    %2728 = vrot.lane.b32.xlu0 %v2726, 32
    %v2729 = vpop.permute.xlu0 %2728
    %v2730 = vsel %vm214, %v2729, 0
    %2732 = vmatprep.subr.mxu0 0.0
    %2733 = vmatpush1.msra.mxu0 0.0
    %2734 = vmatprep.subr.mxu0 0.0
    %2735 = vmatpush1.msra.mxu0 0.0
    %2736 = vmatprep.subr.mxu0 0.0
    %2737 = vmatpush1.msra.mxu0 0.0
    %2738 = vmatprep.subr.mxu0 0.0
    %2739 = vmatpush1.msra.mxu0 0.0
    %2740 = vmatprep.subr.mxu0 0.0
    %2741 = vmatpush1.msra.mxu0 0.0
    %2742 = vmatprep.subr.mxu0 0.0
    %2743 = vmatpush1.msra.mxu0 0.0
    %2744 = vmatprep.subr.mxu0 0.0
    %2745 = vmatpush1.msra.mxu0 0.0
    %2746 = vmatprep.subr.mxu0 0.0
    %2747 = vmatpush1.msra.mxu0 0.0
    %2748 = vmatprep.subr.mxu0 0.0
    %2749 = vmatpush1.msra.mxu0 0.0
    %2750 = vmatprep.subr.mxu0 0.0
    %2751 = vmatpush1.msra.mxu0 0.0
    %2752 = vmatprep.subr.mxu0 0.0
    %2753 = vmatpush1.msra.mxu0 0.0
    %2754 = vmatprep.subr.mxu0 0.0
    %2755 = vmatpush1.msra.mxu0 0.0
    %2756 = vmatprep.subr.mxu0 0.0
    %2757 = vmatpush1.msra.mxu0 %v203
    %2758 = vmatprep.subr.mxu0 0.0
    %2759 = vmatpush1.msra.mxu0 %v202
    %2760 = vmatprep.subr.mxu0 0.0
    %2761 = vmatpush1.msra.mxu0 %v201
    %2762 = vmatprep.subr.mxu0 0.0
    %2763 = vmatpush1.msra.mxu0 %v200
    %2764 = vmatprep.subr.mxu0 0.0
    %2765 = vmatpush2.msra.mxu0 0.0
    %2766 = vmatprep.subr.mxu0 0.0
    %2767 = vmatpush2.msra.mxu0 0.0
    %2768 = vmatprep.subr.mxu0 0.0
    %2769 = vmatpush2.msra.mxu0 0.0
    %2770 = vmatprep.subr.mxu0 0.0
    %2771 = vmatpush2.msra.mxu0 0.0
    %2772 = vmatprep.subr.mxu0 0.0
    %2773 = vmatpush2.msra.mxu0 0.0
    %2774 = vmatprep.subr.mxu0 0.0
    %2775 = vmatpush2.msra.mxu0 0.0
    %2776 = vmatprep.subr.mxu0 0.0
    %2777 = vmatpush2.msra.mxu0 0.0
    %2778 = vmatprep.subr.mxu0 0.0
    %2779 = vmatpush2.msra.mxu0 0.0
    %2780 = vmatprep.subr.mxu0 0.0
    %2781 = vmatpush2.msra.mxu0 0.0
    %2782 = vmatprep.subr.mxu0 0.0
    %2783 = vmatpush2.msra.mxu0 0.0
    %2784 = vmatprep.subr.mxu0 0.0
    %2785 = vmatpush2.msra.mxu0 0.0
    %2786 = vmatprep.subr.mxu0 0.0
    %2787 = vmatpush2.msra.mxu0 0.0
    %2788 = vmatprep.subr.mxu0 0.0
    %2789 = vmatpush2.msra.mxu0 0.0
    %2790 = vmatprep.subr.mxu0 0.0
    %2791 = vmatpush2.msra.mxu0 0.0
    %2792 = vmatprep.subr.mxu0 0.0
    %2793 = vmatpush2.msra.mxu0 0.0
    %2794 = vmatprep.subr.mxu0 0.0
    %2795 = vmatpush2.msra.mxu0 0.0
    %2796 = vmatprep.mubr.f32.mxu0 0.0
    %2797 = vmatmul.mubr.f32.gmra.mxu0 %v2730
    %v2798 = vpop.f32.mrf.mxu0
    %v2799 = vadd.f32 0.0, %v2798
    %v2800 = vpop.f32.mrf.mxu0
    %2801 = vdwg.mxu0
    %2802 = vmatprep.subr.mxu0 0.0
    %2803 = vmatpush1.msra.mxu0 0.0
    %2804 = vmatprep.subr.mxu0 0.0
    %2805 = vmatpush1.msra.mxu0 0.0
    %2806 = vmatprep.subr.mxu0 0.0
    %2807 = vmatpush1.msra.mxu0 0.0
    %2808 = vmatprep.subr.mxu0 0.0
    %2809 = vmatpush1.msra.mxu0 0.0
    %2810 = vmatprep.subr.mxu0 0.0
    %2811 = vmatpush1.msra.mxu0 0.0
    %2812 = vmatprep.subr.mxu0 0.0
    %2813 = vmatpush1.msra.mxu0 0.0
    %2814 = vmatprep.subr.mxu0 0.0
    %2815 = vmatpush1.msra.mxu0 0.0
    %2816 = vmatprep.subr.mxu0 0.0
    %2817 = vmatpush1.msra.mxu0 0.0
    %2818 = vmatprep.subr.mxu0 0.0
    %2819 = vmatpush1.msra.mxu0 0.0
    %2820 = vmatprep.subr.mxu0 0.0
    %2821 = vmatpush1.msra.mxu0 0.0
    %2822 = vmatprep.subr.mxu0 0.0
    %2823 = vmatpush1.msra.mxu0 0.0
    %2824 = vmatprep.subr.mxu0 0.0
    %2825 = vmatpush1.msra.mxu0 0.0
    %2826 = vmatprep.subr.mxu0 0.0
    %2827 = vmatpush1.msra.mxu0 %v207
    %2828 = vmatprep.subr.mxu0 0.0
    %2829 = vmatpush1.msra.mxu0 %v206
    %2830 = vmatprep.subr.mxu0 0.0
    %2831 = vmatpush1.msra.mxu0 %v205
    %2832 = vmatprep.subr.mxu0 0.0
    %2833 = vmatpush1.msra.mxu0 %v204
    %2834 = vmatprep.subr.mxu0 0.0
    %2835 = vmatpush2.msra.mxu0 0.0
    %2836 = vmatprep.subr.mxu0 0.0
    %2837 = vmatpush2.msra.mxu0 0.0
    %2838 = vmatprep.subr.mxu0 0.0
    %2839 = vmatpush2.msra.mxu0 0.0
    %2840 = vmatprep.subr.mxu0 0.0
    %2841 = vmatpush2.msra.mxu0 0.0
    %2842 = vmatprep.subr.mxu0 0.0
    %2843 = vmatpush2.msra.mxu0 0.0
    %2844 = vmatprep.subr.mxu0 0.0
    %2845 = vmatpush2.msra.mxu0 0.0
    %2846 = vmatprep.subr.mxu0 0.0
    %2847 = vmatpush2.msra.mxu0 0.0
    %2848 = vmatprep.subr.mxu0 0.0
    %2849 = vmatpush2.msra.mxu0 0.0
    %2850 = vmatprep.subr.mxu0 0.0
    %2851 = vmatpush2.msra.mxu0 0.0
    %2852 = vmatprep.subr.mxu0 0.0
    %2853 = vmatpush2.msra.mxu0 0.0
    %2854 = vmatprep.subr.mxu0 0.0
    %2855 = vmatpush2.msra.mxu0 0.0
    %2856 = vmatprep.subr.mxu0 0.0
    %2857 = vmatpush2.msra.mxu0 0.0
    %2858 = vmatprep.subr.mxu0 0.0
    %2859 = vmatpush2.msra.mxu0 0.0
    %2860 = vmatprep.subr.mxu0 0.0
    %2861 = vmatpush2.msra.mxu0 0.0
    %2862 = vmatprep.subr.mxu0 0.0
    %2863 = vmatpush2.msra.mxu0 0.0
    %2864 = vmatprep.subr.mxu0 0.0
    %2865 = vmatpush2.msra.mxu0 0.0
    %2866 = vmatprep.mubr.f32.mxu0 0.0
    %2867 = vmatmul.mubr.f32.gmra.mxu0 %v2558
    %v2868 = vpop.f32.mrf.mxu0
    %v2869 = vadd.f32 %v2799, %v2868
    %v2870 = vpop.f32.mrf.mxu0
    %2871 = vdwg.mxu0
    %v2872 = vadd.f32 %v2869, %v463
    %v2873 = vxor.u32 %v2872, 2147483648
    %v2874 = vmul.f32 %v2873, 1.442695
    %v2875 = vpow.pop %v2874
    %v2876 = vadd.f32 %v2875, 1.0
    %v2877 = vrcp.pop %v2876
    %v2878 = vmul.f32 1.0, %v2877
    %v2879 = vmul.f32 %v2878, 2.0
    %v2880 = vsub.f32 %v2879, 1.0
    %v2881 = vmul.f32 %v2878, %v2548
    %2883 = vrot.lane.b32.xlu0 %v2880, 64
    %v2884 = vpop.permute.xlu0 %2883
    %v2886 = vmul.f32 %v2878, %v2884
    %2888 = vrot.lane.b32.xlu0 %v2886, 32
    %v2889 = vpop.permute.xlu0 %2888
    %v2891 = vadd.f32 %v2881, %v2889
    %v2892 = vtanh.pop %v2891
    %2894 = vrot.lane.b32.xlu0 %v2892, 64
    %v2895 = vpop.permute.xlu0 %2894
    %v2897 = vmul.f32 %v2878, %v2895
    %2899 = vrot.lane.b32.xlu0 %v2897, 32
    %v2900 = vpop.permute.xlu0 %2899
    %v2901 = vsel %vm214, %v2900, 0
    %2903 = vmatprep.subr.mxu0 0.0
    %2904 = vmatpush1.msra.mxu0 0.0
    %2905 = vmatprep.subr.mxu0 0.0
    %2906 = vmatpush1.msra.mxu0 0.0
    %2907 = vmatprep.subr.mxu0 0.0
    %2908 = vmatpush1.msra.mxu0 0.0
    %2909 = vmatprep.subr.mxu0 0.0
    %2910 = vmatpush1.msra.mxu0 0.0
    %2911 = vmatprep.subr.mxu0 0.0
    %2912 = vmatpush1.msra.mxu0 0.0
    %2913 = vmatprep.subr.mxu0 0.0
    %2914 = vmatpush1.msra.mxu0 0.0
    %2915 = vmatprep.subr.mxu0 0.0
    %2916 = vmatpush1.msra.mxu0 0.0
    %2917 = vmatprep.subr.mxu0 0.0
    %2918 = vmatpush1.msra.mxu0 0.0
    %2919 = vmatprep.subr.mxu0 0.0
    %2920 = vmatpush1.msra.mxu0 0.0
    %2921 = vmatprep.subr.mxu0 0.0
    %2922 = vmatpush1.msra.mxu0 0.0
    %2923 = vmatprep.subr.mxu0 0.0
    %2924 = vmatpush1.msra.mxu0 0.0
    %2925 = vmatprep.subr.mxu0 0.0
    %2926 = vmatpush1.msra.mxu0 0.0
    %2927 = vmatprep.subr.mxu0 0.0
    %2928 = vmatpush1.msra.mxu0 %v212
    %2929 = vmatprep.subr.mxu0 0.0
    %2930 = vmatpush1.msra.mxu0 %v211
    %2931 = vmatprep.subr.mxu0 0.0
    %2932 = vmatpush1.msra.mxu0 %v210
    %2933 = vmatprep.subr.mxu0 0.0
    %2934 = vmatpush1.msra.mxu0 %v209
    %2935 = vmatprep.subr.mxu0 0.0
    %2936 = vmatpush2.msra.mxu0 0.0
    %2937 = vmatprep.subr.mxu0 0.0
    %2938 = vmatpush2.msra.mxu0 0.0
    %2939 = vmatprep.subr.mxu0 0.0
    %2940 = vmatpush2.msra.mxu0 0.0
    %2941 = vmatprep.subr.mxu0 0.0
    %2942 = vmatpush2.msra.mxu0 0.0
    %2943 = vmatprep.subr.mxu0 0.0
    %2944 = vmatpush2.msra.mxu0 0.0
    %2945 = vmatprep.subr.mxu0 0.0
    %2946 = vmatpush2.msra.mxu0 0.0
    %2947 = vmatprep.subr.mxu0 0.0
    %2948 = vmatpush2.msra.mxu0 0.0
    %2949 = vmatprep.subr.mxu0 0.0
    %2950 = vmatpush2.msra.mxu0 0.0
    %2951 = vmatprep.subr.mxu0 0.0
    %2952 = vmatpush2.msra.mxu0 0.0
    %2953 = vmatprep.subr.mxu0 0.0
    %2954 = vmatpush2.msra.mxu0 0.0
    %2955 = vmatprep.subr.mxu0 0.0
    %2956 = vmatpush2.msra.mxu0 0.0
    %2957 = vmatprep.subr.mxu0 0.0
    %2958 = vmatpush2.msra.mxu0 0.0
    %2959 = vmatprep.subr.mxu0 0.0
    %2960 = vmatpush2.msra.mxu0 0.0
    %2961 = vmatprep.subr.mxu0 0.0
    %2962 = vmatpush2.msra.mxu0 0.0
    %2963 = vmatprep.subr.mxu0 0.0
    %2964 = vmatpush2.msra.mxu0 0.0
    %2965 = vmatprep.subr.mxu0 0.0
    %2966 = vmatpush2.msra.mxu0 0.0
    %2967 = vmatprep.mubr.f32.mxu0 0.0
    %2968 = vmatmul.mubr.f32.gmra.mxu0 %v2901
    %v2969 = vpop.f32.mrf.mxu0
    %v2970 = vadd.f32 %v495, %v2969
    %v2971 = vpop.f32.mrf.mxu0
    %2972 = vdwg.mxu0
    %2973 = vst [vmem:[%s9 + $0x38] sm:$0xff] %v2970
    // Predicated region
    $region62: #{decoder_forward.1} parent=1 // pred_check
      _
    $region63: #{decoder_forward.1} parent=1 // pred_check_branch
      %2975 = sbr.rel (0) target = $region65
    $region64: #{decoder_forward.1} parent=1 // pred_region
      _
    $region65: #{decoder_forward.1} parent=1 // pred_fallthru
      _
    // Predicated region
    $region66: #{decoder_forward.1} parent=1 // pred_check
      _
    $region67: #{decoder_forward.1} parent=1 // pred_check_branch
      %2977 = sbr.rel (0) target = $region69
    $region68: #{decoder_forward.1} parent=1 // pred_region
      _
    $region69: #{decoder_forward.1} parent=1 // pred_fallthru
      _
    %2978 = vsyncpa [#allocation3], 1
    %2979 = vsyncpa [#allocation5], 1
    %2980 = vsyncpa [#allocation8], 1
    %2981 = vsyncpa [#allocation11], 1

</llo_original>
